<compile_context>
chip_gen: v6e
topology: v6e:2x2x1
jax: 0.10.0
libtpu: 0.0.40
codegen_flags: <defaults>
</compile_context>

<pallas_src>
import functools

import jax
import jax.numpy as jnp
from jax.experimental import pallas as pl
from jax.experimental.pallas import tpu as pltpu

LEAKY_SLOPE = 0.2
BN_EPS = 1e-5
TM_TARGET = 512                      # rows (M) per grid step
VMEM_LIMIT = 48 * 1024 * 1024        # explicit scoped-VMEM budget (safe on v5e/v6e/v7x)


# ------------------------------ small helpers --------------------------------
def _round_up(x, m):
    return (x + m - 1) // m * m


def _m_tiling(m):
    """Pad M so a sublane-aligned tile divides it exactly; returns (m_pad, tm)."""
    m_pad = _round_up(m, 8)
    if m_pad > TM_TARGET:
        return _round_up(m, TM_TARGET), TM_TARGET
    return m_pad, m_pad


def _mosaic_params(semantics):
    return pltpu.CompilerParams(dimension_semantics=semantics,
                                vmem_limit_bytes=VMEM_LIMIT)


# ------------------------------ Pallas kernels --------------------------------
def _conv_act_kernel(x_ref, w_ref, o_ref, *, activation):
    """Fused conv-matmul + activation for layers without BatchNorm."""
    y = jnp.dot(x_ref[...], w_ref[...], preferred_element_type=jnp.float32)
    if activation == "leaky":
        y = jnp.where(y >= 0.0, y, LEAKY_SLOPE * y)
    elif activation == "sigmoid":
        y = jax.nn.sigmoid(y)
    o_ref[...] = y.astype(o_ref.dtype)


def _conv_stats_kernel(x_ref, w_ref, y_ref, stats_ref):
    """Pass A of BN layers: tiled matmul + per-channel sum / sum-of-squares accumulator.

    stats_ref is a (2, Cout) output whose block index is constant across the grid
    (resident accumulator, grid axis marked "arbitrary")."""
    y = jnp.dot(x_ref[...], w_ref[...], preferred_element_type=jnp.float32)
    y_ref[...] = y

    @pl.when(pl.program_id(0) == 0)
    def _():
        stats_ref[...] = jnp.zeros_like(stats_ref)

    s1 = jnp.sum(y, axis=0, keepdims=True)          # (1, Cout)
    s2 = jnp.sum(y * y, axis=0, keepdims=True)      # (1, Cout)
    stats_ref[...] += jnp.concatenate([s1, s2], axis=0)


def _bn_act_kernel(y_ref, scale_ref, shift_ref, o_ref):
    """Pass B of BN layers: folded scale/shift + LeakyReLU (all f32 math)."""
    z = y_ref[...] * scale_ref[...] + shift_ref[...]
    z = jnp.where(z >= 0.0, z, LEAKY_SLOPE * z)
    o_ref[...] = z.astype(o_ref.dtype)


# ------------------------------ layer wrappers --------------------------------
def conv_act(x_patches, w_mat, *, activation, out_dtype):
    """Conv (no BN) + activation, tiled over M, lane-dense padded Cout."""
    m, kk = x_patches.shape
    cout = w_mat.shape[1]
    m_pad, tm = _m_tiling(m)
    cout_pad = _round_up(cout, 128)

    xp = jnp.pad(x_patches, ((0, m_pad - m), (0, 0))).astype(jnp.bfloat16)
    wp = jnp.pad(w_mat, ((0, 0), (0, cout_pad - cout))).astype(jnp.bfloat16)

    out = pl.pallas_call(
        functools.partial(_conv_act_kernel, activation=activation),
        grid=(m_pad // tm,),
        in_specs=[
            pl.BlockSpec((tm, kk), lambda i: (i, 0)),
            pl.BlockSpec((kk, cout_pad), lambda i: (0, 0)),   # weight stays resident
        ],
        out_specs=pl.BlockSpec((tm, cout_pad), lambda i: (i, 0)),
        out_shape=jax.ShapeDtypeStruct((m_pad, cout_pad), out_dtype),
        compiler_params=_mosaic_params(("parallel",)),
    )(xp, wp)
    return out[:m, :cout]


def conv_bn_leaky(x_patches, w_mat, gamma, beta):
    """Conv + train-mode BatchNorm + LeakyReLU via the two-pass scheme."""
    m, kk = x_patches.shape
    cout = w_mat.shape[1]
    m_pad, tm = _m_tiling(m)
    cout_pad = _round_up(cout, 128)

    xp = jnp.pad(x_patches, ((0, m_pad - m), (0, 0))).astype(jnp.bfloat16)
    wp = jnp.pad(w_mat, ((0, 0), (0, cout_pad - cout))).astype(jnp.bfloat16)
    grid = (m_pad // tm,)

    # ---- pass A: matmul + per-channel sum / sumsq accumulation ----
    y, stats = pl.pallas_call(
        _conv_stats_kernel,
        grid=grid,
        in_specs=[
            pl.BlockSpec((tm, kk), lambda i: (i, 0)),
            pl.BlockSpec((kk, cout_pad), lambda i: (0, 0)),
        ],
        out_specs=[
            pl.BlockSpec((tm, cout_pad), lambda i: (i, 0)),
            pl.BlockSpec((2, cout_pad), lambda i: (0, 0)),    # resident accumulator
        ],
        out_shape=[
            jax.ShapeDtypeStruct((m_pad, cout_pad), jnp.float32),
            jax.ShapeDtypeStruct((2, cout_pad), jnp.float32),
        ],
        compiler_params=_mosaic_params(("arbitrary",)),
    )(xp, wp)

    # Fold batch statistics + affine into per-channel scale/shift.
    # Padded rows of x are exact zeros -> contribute 0 to sums; divide by the true M.
    inv_m = 1.0 / float(m)
    mean = stats[0:1] * inv_m
    var = stats[1:2] * inv_m - mean * mean            # biased variance (BN normalization)
    gp = jnp.pad(gamma, ((0, 0), (0, cout_pad - cout)), constant_values=1.0)
    bp = jnp.pad(beta, ((0, 0), (0, cout_pad - cout)))
    scale = gp * jax.lax.rsqrt(var + BN_EPS)
    shift = bp - mean * scale

    # ---- pass B: normalize + LeakyReLU (tiled, megacore-parallel) ----
    out = pl.pallas_call(
        _bn_act_kernel,
        grid=grid,
        in_specs=[
            pl.BlockSpec((tm, cout_pad), lambda i: (i, 0)),
            pl.BlockSpec((1, cout_pad), lambda i: (0, 0)),
            pl.BlockSpec((1, cout_pad), lambda i: (0, 0)),
        ],
        out_specs=pl.BlockSpec((tm, cout_pad), lambda i: (i, 0)),
        out_shape=jax.ShapeDtypeStruct((m_pad, cout_pad), jnp.bfloat16),
        compiler_params=_mosaic_params(("parallel",)),
    )(y, scale, shift)
    return out[:m, :cout]


# ------------------------------ JAX glue -------------------------------------
def im2col_nhwc(x, k, stride, pad):
    """x: (N, H, W, C) -> patches (N*OH*OW, k*k*C), plus output geometry."""
    n, h, w, c = x.shape
    xp = jnp.pad(x, ((0, 0), (pad, pad), (pad, pad), (0, 0)))
    oh = (h + 2 * pad - k) // stride + 1
    ow = (w + 2 * pad - k) // stride + 1
    cols = []
    for ki in range(k):
        for kj in range(k):
            cols.append(
                xp[:, ki:ki + stride * oh:stride, kj:kj + stride * ow:stride, :])
    patches = jnp.stack(cols, axis=3)            # (N, OH, OW, k*k, C)
    return patches.reshape(n * oh * ow, k * k * c), (n, oh, ow)


def weight_to_mat(w_oihw):
    """PyTorch conv weight (Cout, Cin, kh, kw) -> (kh*kw*Cin, Cout)."""
    cout = w_oihw.shape[0]
    return jnp.transpose(w_oihw, (2, 3, 1, 0)).reshape(-1, cout)


def init_params(key, nc=3, ndf=64):
    """Deterministic DCGAN-style init (conv ~ N(0, 0.02), BN gamma ~ N(1, 0.02))."""
    chans = [nc, ndf, ndf * 2, ndf * 4, ndf * 8, 1]
    keys = jax.random.split(key, 8)
    params = {"conv": [], "gamma": [], "beta": []}
    for i in range(5):
        cin, cout = chans[i], chans[i + 1]
        params["conv"].append(
            0.02 * jax.random.normal(keys[i], (cout, cin, 4, 4), jnp.float32))
    for j, c in enumerate([ndf * 2, ndf * 4, ndf * 8]):
        params["gamma"].append(
            1.0 + 0.02 * jax.random.normal(keys[5 + j], (1, c), jnp.float32))
        params["beta"].append(jnp.zeros((1, c), jnp.float32))
    return params


def discriminator_forward(params, x_nchw):
    # NCHW (PyTorch) -> NHWC (kernel layout); bf16 activations between layers.
    x = jnp.transpose(x_nchw, (0, 2, 3, 1)).astype(jnp.bfloat16)

    # (stride, pad, apply_bn, activation) per Conv2d in nn.Sequential
    layer_cfg = [
        (2, 1, False, "leaky"),    # Conv(nc, ndf)      + LeakyReLU
        (2, 1, True,  "leaky"),    # Conv(ndf, 2ndf)    + BN + LeakyReLU
        (2, 1, True,  "leaky"),    # Conv(2ndf, 4ndf)   + BN + LeakyReLU
        (2, 1, True,  "leaky"),    # Conv(4ndf, 8ndf)   + BN + LeakyReLU
        (1, 0, False, "sigmoid"),  # Conv(8ndf, 1)      + Sigmoid
    ]

    bn_idx = 0
    for i, (stride, pad, apply_bn, act) in enumerate(layer_cfg):
        patches, (n, oh, ow) = im2col_nhwc(x, 4, stride, pad)
        w_mat = weight_to_mat(params["conv"][i])
        cout = w_mat.shape[1]
        is_last = i == len(layer_cfg) - 1
        if apply_bn:
            y = conv_bn_leaky(patches, w_mat,
                              params["gamma"][bn_idx], params["beta"][bn_idx])
            bn_idx += 1
        else:
            y = conv_act(patches, w_mat, activation=act,
                         out_dtype=jnp.float32 if is_last else jnp.bfloat16)
        x = y.reshape(n, oh, ow, cout)

    # NHWC -> NCHW; final shape (N, 1, 1, 1), f32, as in PyTorch
    return jnp.transpose(x, (0, 3, 1, 2))


if __name__ == "__main__":
    key = jax.random.PRNGKey(0)
    k_x, k_p = jax.random.split(key)

    # Spatial must be 64 for the final 4x4 valid conv to produce a 1x1 map;
    # small ndf for speed while keeping every layer structurally valid.
    N, NC, NDF, HW = 2, 3, 8, 64
    x = jax.random.normal(k_x, (N, NC, HW, HW), jnp.float32)
    params = init_params(k_p, nc=NC, ndf=NDF)

    fwd = jax.jit(discriminator_forward)
    out = jax.block_until_ready(fwd(params, x))

    assert out.shape == (N, 1, 1, 1), out.shape
    assert out.dtype == jnp.float32
    assert bool(jnp.all((out >= 0.0) & (out <= 1.0)))  # sigmoid range

    print("KERNEL_OK")
</pallas_src>

<mosaic_0001>
module attributes {stable_mosaic.version = 11 : i64} {
  func.func @_conv_act_kernel(%arg0: i32, %arg1: memref<512x48xbf16, #tpu.memory_space<vmem>>, %arg2: memref<48x128xbf16, #tpu.memory_space<vmem>>, %arg3: memref<512x128xbf16, #tpu.memory_space<vmem>>) attributes {dimension_semantics = [#tpu.dimension_semantics<parallel>], iteration_bounds = array<i64: 4>, scalar_prefetch = 0 : i64, scratch_operands = 0 : i64, tpu.core_type = #tpu.core_type<tc>, window_params = [{transform_indices = @transform_0, window_bounds = array<i64: 512, 48>}, {pipeline_mode = #tpu.pipeline_mode<synchronous>, transform_indices = @transform_1, window_bounds = array<i64: 48, 128>}, {transform_indices = @transform_2, window_bounds = array<i64: 512, 128>}]} {
    %c0 = arith.constant 0 : index
    %c0_0 = arith.constant 0 : index
    %0 = vector.load %arg1[%c0, %c0_0] : memref<512x48xbf16, #tpu.memory_space<vmem>>, vector<512x48xbf16>
    %c0_1 = arith.constant 0 : index
    %c0_2 = arith.constant 0 : index
    %1 = vector.load %arg2[%c0_1, %c0_2] : memref<48x128xbf16, #tpu.memory_space<vmem>>, vector<48x128xbf16>
    %cst = arith.constant dense<0.000000e+00> : vector<512x128xf32>
    %2 = tpu.matmul %0, %1, %cst {dimension_numbers = #tpu.dot_dimension_numbers<[1], [0], [0], [1], [0, 0, 1, 1], [], []>} : vector<512x48xbf16>, vector<48x128xbf16>, vector<512x128xf32> -> vector<512x128xf32>
    %cst_3 = arith.constant 0.000000e+00 : f32
    %3 = vector.broadcast %cst_3 : f32 to vector<512x128xf32>
    %4 = arith.cmpf oge, %2, %3 : vector<512x128xf32>
    %cst_4 = arith.constant 2.000000e-01 : f32
    %5 = vector.broadcast %cst_4 : f32 to vector<512x128xf32>
    %6 = arith.mulf %5, %2 : vector<512x128xf32>
    %7 = arith.select %4, %2, %6 : vector<512x128xi1>, vector<512x128xf32>
    %8 = arith.truncf %7 : vector<512x128xf32> to vector<512x128xbf16>
    %c0_5 = arith.constant 0 : index
    %c0_6 = arith.constant 0 : index
    %9 = vector.load %arg3[%c0_5, %c0_6] : memref<512x128xbf16, #tpu.memory_space<vmem>>, vector<512x128xbf16>
    tpu.vector_store %arg3[%c0_5, %c0_6], %8 {strides = array<i32>} : memref<512x128xbf16, #tpu.memory_space<vmem>>, vector<512x128xbf16>,
    return
  }
  func.func @transform_0(%arg0: i32) -> (i32, i32) {
    %c0_i32 = arith.constant 0 : i32
    %c0_i32_0 = arith.constant 0 : i32
    return %arg0, %c0_i32 : i32, i32
  }
  func.func @transform_1(%arg0: i32) -> (i32, i32) {
    %c0_i32 = arith.constant 0 : i32
    %c0_i32_0 = arith.constant 0 : i32
    %c0_i32_1 = arith.constant 0 : i32
    return %c0_i32, %c0_i32_0 : i32, i32
  }
  func.func @transform_2(%arg0: i32) -> (i32, i32) {
    %c0_i32 = arith.constant 0 : i32
    %c0_i32_0 = arith.constant 0 : i32
    return %arg0, %c0_i32 : i32, i32
  }
}

module attributes {stable_mosaic.version = 11 : i64} {
  func.func @_conv_stats_kernel(%arg0: i32, %arg1: memref<512x128xbf16, #tpu.memory_space<vmem>>, %arg2: memref<128x128xbf16, #tpu.memory_space<vmem>>, %arg3: memref<512x128xf32, #tpu.memory_space<vmem>>, %arg4: memref<2x128xf32, #tpu.memory_space<vmem>>) attributes {dimension_semantics = [#tpu.dimension_semantics<arbitrary>], iteration_bounds = array<i64: 1>, scalar_prefetch = 0 : i64, scratch_operands = 0 : i64, tpu.core_type = #tpu.core_type<tc>, window_params = [{transform_indices = @transform_0, window_bounds = array<i64: 512, 128>}, {pipeline_mode = #tpu.pipeline_mode<synchronous>, transform_indices = @transform_1, window_bounds = array<i64: 128, 128>}, {transform_indices = @transform_2, window_bounds = array<i64: 512, 128>}, {pipeline_mode = #tpu.pipeline_mode<synchronous>, transform_indices = @transform_3, window_bounds = array<i64: 2, 128>}]} {
    %c0 = arith.constant 0 : index
    %c0_0 = arith.constant 0 : index
    %0 = vector.load %arg1[%c0, %c0_0] : memref<512x128xbf16, #tpu.memory_space<vmem>>, vector<512x128xbf16>
    %c0_1 = arith.constant 0 : index
    %c0_2 = arith.constant 0 : index
    %1 = vector.load %arg2[%c0_1, %c0_2] : memref<128x128xbf16, #tpu.memory_space<vmem>>, vector<128x128xbf16>
    %cst = arith.constant dense<0.000000e+00> : vector<512x128xf32>
    %2 = tpu.matmul %0, %1, %cst {dimension_numbers = #tpu.dot_dimension_numbers<[1], [0], [0], [1], [0, 0, 1, 1], [], []>} : vector<512x128xbf16>, vector<128x128xbf16>, vector<512x128xf32> -> vector<512x128xf32>
    %c0_3 = arith.constant 0 : index
    %c0_4 = arith.constant 0 : index
    %3 = vector.load %arg3[%c0_3, %c0_4] : memref<512x128xf32, #tpu.memory_space<vmem>>, vector<512x128xf32>
    tpu.vector_store %arg3[%c0_3, %c0_4], %2 {strides = array<i32>} : memref<512x128xf32, #tpu.memory_space<vmem>>, vector<512x128xf32>,
    %c0_i32 = arith.constant 0 : i32
    %4 = arith.cmpi eq, %arg0, %c0_i32 : i32
    %5 = arith.extui %4 : i1 to i32
    %c0_i32_5 = arith.constant 0 : i32
    %6 = arith.cmpi ne, %5, %c0_i32_5 : i32
    scf.if %6 {
      %cst_12 = arith.constant 0.000000e+00 : f32
      %16 = vector.broadcast %cst_12 : f32 to vector<2x128xf32>
      %c0_13 = arith.constant 0 : index
      %c0_14 = arith.constant 0 : index
      %17 = vector.load %arg4[%c0_13, %c0_14] : memref<2x128xf32, #tpu.memory_space<vmem>>, vector<2x128xf32>
      tpu.vector_store %arg4[%c0_13, %c0_14], %16 {strides = array<i32>} : memref<2x128xf32, #tpu.memory_space<vmem>>, vector<2x128xf32>,
    } else {
    }
    %cst_6 = arith.constant dense<0.000000e+00> : vector<128xf32>
    %7 = vector.multi_reduction <add>, %2, %cst_6 [0] : vector<512x128xf32> to vector<128xf32>
    %8 = vector.shape_cast %7 : vector<128xf32> to vector<1x128xf32>
    %9 = arith.mulf %2, %2 : vector<512x128xf32>
    %cst_7 = arith.constant dense<0.000000e+00> : vector<128xf32>
    %10 = vector.multi_reduction <add>, %9, %cst_7 [0] : vector<512x128xf32> to vector<128xf32>
    %11 = vector.shape_cast %10 : vector<128xf32> to vector<1x128xf32>
    %c0_8 = arith.constant 0 : index
    %c0_9 = arith.constant 0 : index
    %12 = vector.load %arg4[%c0_8, %c0_9] : memref<2x128xf32, #tpu.memory_space<vmem>>, vector<2x128xf32>
    %13 = tpu.concatenate %8, %11 in 0 : vector<1x128xf32>, vector<1x128xf32> -> vector<2x128xf32>
    %14 = arith.addf %12, %13 : vector<2x128xf32>
    %c0_10 = arith.constant 0 : index
    %c0_11 = arith.constant 0 : index
    %15 = vector.load %arg4[%c0_10, %c0_11] : memref<2x128xf32, #tpu.memory_space<vmem>>, vector<2x128xf32>
    tpu.vector_store %arg4[%c0_10, %c0_11], %14 {strides = array<i32>} : memref<2x128xf32, #tpu.memory_space<vmem>>, vector<2x128xf32>,
    return
  }
  func.func @transform_0(%arg0: i32) -> (i32, i32) {
    %c0_i32 = arith.constant 0 : i32
    %c0_i32_0 = arith.constant 0 : i32
    return %arg0, %c0_i32 : i32, i32
  }
  func.func @transform_1(%arg0: i32) -> (i32, i32) {
    %c0_i32 = arith.constant 0 : i32
    %c0_i32_0 = arith.constant 0 : i32
    %c0_i32_1 = arith.constant 0 : i32
    return %c0_i32, %c0_i32_0 : i32, i32
  }
  func.func @transform_2(%arg0: i32) -> (i32, i32) {
    %c0_i32 = arith.constant 0 : i32
    %c0_i32_0 = arith.constant 0 : i32
    return %arg0, %c0_i32 : i32, i32
  }
  func.func @transform_3(%arg0: i32) -> (i32, i32) {
    %c0_i32 = arith.constant 0 : i32
    %c0_i32_0 = arith.constant 0 : i32
    %c0_i32_1 = arith.constant 0 : i32
    return %c0_i32, %c0_i32_0 : i32, i32
  }
}

module attributes {stable_mosaic.version = 11 : i64} {
  func.func @_bn_act_kernel(%arg0: i32, %arg1: memref<512x128xf32, #tpu.memory_space<vmem>>, %arg2: memref<1x128xf32, #tpu.memory_space<vmem>>, %arg3: memref<1x128xf32, #tpu.memory_space<vmem>>, %arg4: memref<512x128xbf16, #tpu.memory_space<vmem>>) attributes {dimension_semantics = [#tpu.dimension_semantics<parallel>], iteration_bounds = array<i64: 1>, scalar_prefetch = 0 : i64, scratch_operands = 0 : i64, tpu.core_type = #tpu.core_type<tc>, window_params = [{transform_indices = @transform_0, window_bounds = array<i64: 512, 128>}, {pipeline_mode = #tpu.pipeline_mode<synchronous>, transform_indices = @transform_1, window_bounds = array<i64: 1, 128>}, {pipeline_mode = #tpu.pipeline_mode<synchronous>, transform_indices = @transform_2, window_bounds = array<i64: 1, 128>}, {transform_indices = @transform_3, window_bounds = array<i64: 512, 128>}]} {
    %c0 = arith.constant 0 : index
    %c0_0 = arith.constant 0 : index
    %0 = vector.load %arg1[%c0, %c0_0] : memref<512x128xf32, #tpu.memory_space<vmem>>, vector<512x128xf32>
    %c0_1 = arith.constant 0 : index
    %c0_2 = arith.constant 0 : index
    %1 = vector.load %arg2[%c0_1, %c0_2] : memref<1x128xf32, #tpu.memory_space<vmem>>, vector<1x128xf32>
    %2 = vector.broadcast %1 : vector<1x128xf32> to vector<512x128xf32>
    %3 = arith.mulf %0, %2 : vector<512x128xf32>
    %c0_3 = arith.constant 0 : index
    %c0_4 = arith.constant 0 : index
    %4 = vector.load %arg3[%c0_3, %c0_4] : memref<1x128xf32, #tpu.memory_space<vmem>>, vector<1x128xf32>
    %5 = vector.broadcast %4 : vector<1x128xf32> to vector<512x128xf32>
    %6 = arith.addf %3, %5 : vector<512x128xf32>
    %cst = arith.constant 0.000000e+00 : f32
    %7 = vector.broadcast %cst : f32 to vector<512x128xf32>
    %8 = arith.cmpf oge, %6, %7 : vector<512x128xf32>
    %cst_5 = arith.constant 2.000000e-01 : f32
    %9 = vector.broadcast %cst_5 : f32 to vector<512x128xf32>
    %10 = arith.mulf %9, %6 : vector<512x128xf32>
    %11 = arith.select %8, %6, %10 : vector<512x128xi1>, vector<512x128xf32>
    %12 = arith.truncf %11 : vector<512x128xf32> to vector<512x128xbf16>
    %c0_6 = arith.constant 0 : index
    %c0_7 = arith.constant 0 : index
    %13 = vector.load %arg4[%c0_6, %c0_7] : memref<512x128xbf16, #tpu.memory_space<vmem>>, vector<512x128xbf16>
    tpu.vector_store %arg4[%c0_6, %c0_7], %12 {strides = array<i32>} : memref<512x128xbf16, #tpu.memory_space<vmem>>, vector<512x128xbf16>,
    return
  }
  func.func @transform_0(%arg0: i32) -> (i32, i32) {
    %c0_i32 = arith.constant 0 : i32
    %c0_i32_0 = arith.constant 0 : i32
    return %arg0, %c0_i32 : i32, i32
  }
  func.func @transform_1(%arg0: i32) -> (i32, i32) {
    %c0_i32 = arith.constant 0 : i32
    %c0_i32_0 = arith.constant 0 : i32
    %c0_i32_1 = arith.constant 0 : i32
    return %c0_i32, %c0_i32_0 : i32, i32
  }
  func.func @transform_2(%arg0: i32) -> (i32, i32) {
    %c0_i32 = arith.constant 0 : i32
    %c0_i32_0 = arith.constant 0 : i32
    %c0_i32_1 = arith.constant 0 : i32
    return %c0_i32, %c0_i32_0 : i32, i32
  }
  func.func @transform_3(%arg0: i32) -> (i32, i32) {
    %c0_i32 = arith.constant 0 : i32
    %c0_i32_0 = arith.constant 0 : i32
    return %arg0, %c0_i32 : i32, i32
  }
}

module attributes {stable_mosaic.version = 11 : i64} {
  func.func @_conv_stats_kernel(%arg0: i32, %arg1: memref<128x256xbf16, #tpu.memory_space<vmem>>, %arg2: memref<256x128xbf16, #tpu.memory_space<vmem>>, %arg3: memref<128x128xf32, #tpu.memory_space<vmem>>, %arg4: memref<2x128xf32, #tpu.memory_space<vmem>>) attributes {dimension_semantics = [#tpu.dimension_semantics<arbitrary>], iteration_bounds = array<i64: 1>, scalar_prefetch = 0 : i64, scratch_operands = 0 : i64, tpu.core_type = #tpu.core_type<tc>, window_params = [{transform_indices = @transform_0, window_bounds = array<i64: 128, 256>}, {pipeline_mode = #tpu.pipeline_mode<synchronous>, transform_indices = @transform_1, window_bounds = array<i64: 256, 128>}, {transform_indices = @transform_2, window_bounds = array<i64: 128, 128>}, {pipeline_mode = #tpu.pipeline_mode<synchronous>, transform_indices = @transform_3, window_bounds = array<i64: 2, 128>}]} {
    %c0 = arith.constant 0 : index
    %c0_0 = arith.constant 0 : index
    %0 = vector.load %arg1[%c0, %c0_0] : memref<128x256xbf16, #tpu.memory_space<vmem>>, vector<128x256xbf16>
    %c0_1 = arith.constant 0 : index
    %c0_2 = arith.constant 0 : index
    %1 = vector.load %arg2[%c0_1, %c0_2] : memref<256x128xbf16, #tpu.memory_space<vmem>>, vector<256x128xbf16>
    %cst = arith.constant dense<0.000000e+00> : vector<128x128xf32>
    %2 = tpu.matmul %0, %1, %cst {dimension_numbers = #tpu.dot_dimension_numbers<[1], [0], [0], [1], [0, 0, 1, 1], [], []>} : vector<128x256xbf16>, vector<256x128xbf16>, vector<128x128xf32> -> vector<128x128xf32>
    %c0_3 = arith.constant 0 : index
    %c0_4 = arith.constant 0 : index
    %3 = vector.load %arg3[%c0_3, %c0_4] : memref<128x128xf32, #tpu.memory_space<vmem>>, vector<128x128xf32>
    tpu.vector_store %arg3[%c0_3, %c0_4], %2 {strides = array<i32>} : memref<128x128xf32, #tpu.memory_space<vmem>>, vector<128x128xf32>,
    %c0_i32 = arith.constant 0 : i32
    %4 = arith.cmpi eq, %arg0, %c0_i32 : i32
    %5 = arith.extui %4 : i1 to i32
    %c0_i32_5 = arith.constant 0 : i32
    %6 = arith.cmpi ne, %5, %c0_i32_5 : i32
    scf.if %6 {
      %cst_12 = arith.constant 0.000000e+00 : f32
      %16 = vector.broadcast %cst_12 : f32 to vector<2x128xf32>
      %c0_13 = arith.constant 0 : index
      %c0_14 = arith.constant 0 : index
      %17 = vector.load %arg4[%c0_13, %c0_14] : memref<2x128xf32, #tpu.memory_space<vmem>>, vector<2x128xf32>
      tpu.vector_store %arg4[%c0_13, %c0_14], %16 {strides = array<i32>} : memref<2x128xf32, #tpu.memory_space<vmem>>, vector<2x128xf32>,
    } else {
    }
    %cst_6 = arith.constant dense<0.000000e+00> : vector<128xf32>
    %7 = vector.multi_reduction <add>, %2, %cst_6 [0] : vector<128x128xf32> to vector<128xf32>
    %8 = vector.shape_cast %7 : vector<128xf32> to vector<1x128xf32>
    %9 = arith.mulf %2, %2 : vector<128x128xf32>
    %cst_7 = arith.constant dense<0.000000e+00> : vector<128xf32>
    %10 = vector.multi_reduction <add>, %9, %cst_7 [0] : vector<128x128xf32> to vector<128xf32>
    %11 = vector.shape_cast %10 : vector<128xf32> to vector<1x128xf32>
    %c0_8 = arith.constant 0 : index
    %c0_9 = arith.constant 0 : index
    %12 = vector.load %arg4[%c0_8, %c0_9] : memref<2x128xf32, #tpu.memory_space<vmem>>, vector<2x128xf32>
    %13 = tpu.concatenate %8, %11 in 0 : vector<1x128xf32>, vector<1x128xf32> -> vector<2x128xf32>
    %14 = arith.addf %12, %13 : vector<2x128xf32>
    %c0_10 = arith.constant 0 : index
    %c0_11 = arith.constant 0 : index
    %15 = vector.load %arg4[%c0_10, %c0_11] : memref<2x128xf32, #tpu.memory_space<vmem>>, vector<2x128xf32>
    tpu.vector_store %arg4[%c0_10, %c0_11], %14 {strides = array<i32>} : memref<2x128xf32, #tpu.memory_space<vmem>>, vector<2x128xf32>,
    return
  }
  func.func @transform_0(%arg0: i32) -> (i32, i32) {
    %c0_i32 = arith.constant 0 : i32
    %c0_i32_0 = arith.constant 0 : i32
    return %arg0, %c0_i32 : i32, i32
  }
  func.func @transform_1(%arg0: i32) -> (i32, i32) {
    %c0_i32 = arith.constant 0 : i32
    %c0_i32_0 = arith.constant 0 : i32
    %c0_i32_1 = arith.constant 0 : i32
    return %c0_i32, %c0_i32_0 : i32, i32
  }
  func.func @transform_2(%arg0: i32) -> (i32, i32) {
    %c0_i32 = arith.constant 0 : i32
    %c0_i32_0 = arith.constant 0 : i32
    return %arg0, %c0_i32 : i32, i32
  }
  func.func @transform_3(%arg0: i32) -> (i32, i32) {
    %c0_i32 = arith.constant 0 : i32
    %c0_i32_0 = arith.constant 0 : i32
    %c0_i32_1 = arith.constant 0 : i32
    return %c0_i32, %c0_i32_0 : i32, i32
  }
}

module attributes {stable_mosaic.version = 11 : i64} {
  func.func @_bn_act_kernel(%arg0: i32, %arg1: memref<128x128xf32, #tpu.memory_space<vmem>>, %arg2: memref<1x128xf32, #tpu.memory_space<vmem>>, %arg3: memref<1x128xf32, #tpu.memory_space<vmem>>, %arg4: memref<128x128xbf16, #tpu.memory_space<vmem>>) attributes {dimension_semantics = [#tpu.dimension_semantics<parallel>], iteration_bounds = array<i64: 1>, scalar_prefetch = 0 : i64, scratch_operands = 0 : i64, tpu.core_type = #tpu.core_type<tc>, window_params = [{transform_indices = @transform_0, window_bounds = array<i64: 128, 128>}, {pipeline_mode = #tpu.pipeline_mode<synchronous>, transform_indices = @transform_1, window_bounds = array<i64: 1, 128>}, {pipeline_mode = #tpu.pipeline_mode<synchronous>, transform_indices = @transform_2, window_bounds = array<i64: 1, 128>}, {transform_indices = @transform_3, window_bounds = array<i64: 128, 128>}]} {
    %c0 = arith.constant 0 : index
    %c0_0 = arith.constant 0 : index
    %0 = vector.load %arg1[%c0, %c0_0] : memref<128x128xf32, #tpu.memory_space<vmem>>, vector<128x128xf32>
    %c0_1 = arith.constant 0 : index
    %c0_2 = arith.constant 0 : index
    %1 = vector.load %arg2[%c0_1, %c0_2] : memref<1x128xf32, #tpu.memory_space<vmem>>, vector<1x128xf32>
    %2 = vector.broadcast %1 : vector<1x128xf32> to vector<128x128xf32>
    %3 = arith.mulf %0, %2 : vector<128x128xf32>
    %c0_3 = arith.constant 0 : index
    %c0_4 = arith.constant 0 : index
    %4 = vector.load %arg3[%c0_3, %c0_4] : memref<1x128xf32, #tpu.memory_space<vmem>>, vector<1x128xf32>
    %5 = vector.broadcast %4 : vector<1x128xf32> to vector<128x128xf32>
    %6 = arith.addf %3, %5 : vector<128x128xf32>
    %cst = arith.constant 0.000000e+00 : f32
    %7 = vector.broadcast %cst : f32 to vector<128x128xf32>
    %8 = arith.cmpf oge, %6, %7 : vector<128x128xf32>
    %cst_5 = arith.constant 2.000000e-01 : f32
    %9 = vector.broadcast %cst_5 : f32 to vector<128x128xf32>
    %10 = arith.mulf %9, %6 : vector<128x128xf32>
    %11 = arith.select %8, %6, %10 : vector<128x128xi1>, vector<128x128xf32>
    %12 = arith.truncf %11 : vector<128x128xf32> to vector<128x128xbf16>
    %c0_6 = arith.constant 0 : index
    %c0_7 = arith.constant 0 : index
    %13 = vector.load %arg4[%c0_6, %c0_7] : memref<128x128xbf16, #tpu.memory_space<vmem>>, vector<128x128xbf16>
    tpu.vector_store %arg4[%c0_6, %c0_7], %12 {strides = array<i32>} : memref<128x128xbf16, #tpu.memory_space<vmem>>, vector<128x128xbf16>,
    return
  }
  func.func @transform_0(%arg0: i32) -> (i32, i32) {
    %c0_i32 = arith.constant 0 : i32
    %c0_i32_0 = arith.constant 0 : i32
    return %arg0, %c0_i32 : i32, i32
  }
  func.func @transform_1(%arg0: i32) -> (i32, i32) {
    %c0_i32 = arith.constant 0 : i32
    %c0_i32_0 = arith.constant 0 : i32
    %c0_i32_1 = arith.constant 0 : i32
    return %c0_i32, %c0_i32_0 : i32, i32
  }
  func.func @transform_2(%arg0: i32) -> (i32, i32) {
    %c0_i32 = arith.constant 0 : i32
    %c0_i32_0 = arith.constant 0 : i32
    %c0_i32_1 = arith.constant 0 : i32
    return %c0_i32, %c0_i32_0 : i32, i32
  }
  func.func @transform_3(%arg0: i32) -> (i32, i32) {
    %c0_i32 = arith.constant 0 : i32
    %c0_i32_0 = arith.constant 0 : i32
    return %arg0, %c0_i32 : i32, i32
  }
}

module attributes {stable_mosaic.version = 11 : i64} {
  func.func @_conv_stats_kernel(%arg0: i32, %arg1: memref<32x512xbf16, #tpu.memory_space<vmem>>, %arg2: memref<512x128xbf16, #tpu.memory_space<vmem>>, %arg3: memref<32x128xf32, #tpu.memory_space<vmem>>, %arg4: memref<2x128xf32, #tpu.memory_space<vmem>>) attributes {dimension_semantics = [#tpu.dimension_semantics<arbitrary>], iteration_bounds = array<i64: 1>, scalar_prefetch = 0 : i64, scratch_operands = 0 : i64, tpu.core_type = #tpu.core_type<tc>, window_params = [{transform_indices = @transform_0, window_bounds = array<i64: 32, 512>}, {pipeline_mode = #tpu.pipeline_mode<synchronous>, transform_indices = @transform_1, window_bounds = array<i64: 512, 128>}, {transform_indices = @transform_2, window_bounds = array<i64: 32, 128>}, {pipeline_mode = #tpu.pipeline_mode<synchronous>, transform_indices = @transform_3, window_bounds = array<i64: 2, 128>}]} {
    %c0 = arith.constant 0 : index
    %c0_0 = arith.constant 0 : index
    %0 = vector.load %arg1[%c0, %c0_0] : memref<32x512xbf16, #tpu.memory_space<vmem>>, vector<32x512xbf16>
    %c0_1 = arith.constant 0 : index
    %c0_2 = arith.constant 0 : index
    %1 = vector.load %arg2[%c0_1, %c0_2] : memref<512x128xbf16, #tpu.memory_space<vmem>>, vector<512x128xbf16>
    %cst = arith.constant dense<0.000000e+00> : vector<32x128xf32>
    %2 = tpu.matmul %0, %1, %cst {dimension_numbers = #tpu.dot_dimension_numbers<[1], [0], [0], [1], [0, 0, 1, 1], [], []>} : vector<32x512xbf16>, vector<512x128xbf16>, vector<32x128xf32> -> vector<32x128xf32>
    %c0_3 = arith.constant 0 : index
    %c0_4 = arith.constant 0 : index
    %3 = vector.load %arg3[%c0_3, %c0_4] : memref<32x128xf32, #tpu.memory_space<vmem>>, vector<32x128xf32>
    tpu.vector_store %arg3[%c0_3, %c0_4], %2 {strides = array<i32>} : memref<32x128xf32, #tpu.memory_space<vmem>>, vector<32x128xf32>,
    %c0_i32 = arith.constant 0 : i32
    %4 = arith.cmpi eq, %arg0, %c0_i32 : i32
    %5 = arith.extui %4 : i1 to i32
    %c0_i32_5 = arith.constant 0 : i32
    %6 = arith.cmpi ne, %5, %c0_i32_5 : i32
    scf.if %6 {
      %cst_12 = arith.constant 0.000000e+00 : f32
      %16 = vector.broadcast %cst_12 : f32 to vector<2x128xf32>
      %c0_13 = arith.constant 0 : index
      %c0_14 = arith.constant 0 : index
      %17 = vector.load %arg4[%c0_13, %c0_14] : memref<2x128xf32, #tpu.memory_space<vmem>>, vector<2x128xf32>
      tpu.vector_store %arg4[%c0_13, %c0_14], %16 {strides = array<i32>} : memref<2x128xf32, #tpu.memory_space<vmem>>, vector<2x128xf32>,
    } else {
    }
    %cst_6 = arith.constant dense<0.000000e+00> : vector<128xf32>
    %7 = vector.multi_reduction <add>, %2, %cst_6 [0] : vector<32x128xf32> to vector<128xf32>
    %8 = vector.shape_cast %7 : vector<128xf32> to vector<1x128xf32>
    %9 = arith.mulf %2, %2 : vector<32x128xf32>
    %cst_7 = arith.constant dense<0.000000e+00> : vector<128xf32>
    %10 = vector.multi_reduction <add>, %9, %cst_7 [0] : vector<32x128xf32> to vector<128xf32>
    %11 = vector.shape_cast %10 : vector<128xf32> to vector<1x128xf32>
    %c0_8 = arith.constant 0 : index
    %c0_9 = arith.constant 0 : index
    %12 = vector.load %arg4[%c0_8, %c0_9] : memref<2x128xf32, #tpu.memory_space<vmem>>, vector<2x128xf32>
    %13 = tpu.concatenate %8, %11 in 0 : vector<1x128xf32>, vector<1x128xf32> -> vector<2x128xf32>
    %14 = arith.addf %12, %13 : vector<2x128xf32>
    %c0_10 = arith.constant 0 : index
    %c0_11 = arith.constant 0 : index
    %15 = vector.load %arg4[%c0_10, %c0_11] : memref<2x128xf32, #tpu.memory_space<vmem>>, vector<2x128xf32>
    tpu.vector_store %arg4[%c0_10, %c0_11], %14 {strides = array<i32>} : memref<2x128xf32, #tpu.memory_space<vmem>>, vector<2x128xf32>,
    return
  }
  func.func @transform_0(%arg0: i32) -> (i32, i32) {
    %c0_i32 = arith.constant 0 : i32
    %c0_i32_0 = arith.constant 0 : i32
    return %arg0, %c0_i32 : i32, i32
  }
  func.func @transform_1(%arg0: i32) -> (i32, i32) {
    %c0_i32 = arith.constant 0 : i32
    %c0_i32_0 = arith.constant 0 : i32
    %c0_i32_1 = arith.constant 0 : i32
    return %c0_i32, %c0_i32_0 : i32, i32
  }
  func.func @transform_2(%arg0: i32) -> (i32, i32) {
    %c0_i32 = arith.constant 0 : i32
    %c0_i32_0 = arith.constant 0 : i32
    return %arg0, %c0_i32 : i32, i32
  }
  func.func @transform_3(%arg0: i32) -> (i32, i32) {
    %c0_i32 = arith.constant 0 : i32
    %c0_i32_0 = arith.constant 0 : i32
    %c0_i32_1 = arith.constant 0 : i32
    return %c0_i32, %c0_i32_0 : i32, i32
  }
}

module attributes {stable_mosaic.version = 11 : i64} {
  func.func @_bn_act_kernel(%arg0: i32, %arg1: memref<32x128xf32, #tpu.memory_space<vmem>>, %arg2: memref<1x128xf32, #tpu.memory_space<vmem>>, %arg3: memref<1x128xf32, #tpu.memory_space<vmem>>, %arg4: memref<32x128xbf16, #tpu.memory_space<vmem>>) attributes {dimension_semantics = [#tpu.dimension_semantics<parallel>], iteration_bounds = array<i64: 1>, scalar_prefetch = 0 : i64, scratch_operands = 0 : i64, tpu.core_type = #tpu.core_type<tc>, window_params = [{transform_indices = @transform_0, window_bounds = array<i64: 32, 128>}, {pipeline_mode = #tpu.pipeline_mode<synchronous>, transform_indices = @transform_1, window_bounds = array<i64: 1, 128>}, {pipeline_mode = #tpu.pipeline_mode<synchronous>, transform_indices = @transform_2, window_bounds = array<i64: 1, 128>}, {transform_indices = @transform_3, window_bounds = array<i64: 32, 128>}]} {
    %c0 = arith.constant 0 : index
    %c0_0 = arith.constant 0 : index
    %0 = vector.load %arg1[%c0, %c0_0] : memref<32x128xf32, #tpu.memory_space<vmem>>, vector<32x128xf32>
    %c0_1 = arith.constant 0 : index
    %c0_2 = arith.constant 0 : index
    %1 = vector.load %arg2[%c0_1, %c0_2] : memref<1x128xf32, #tpu.memory_space<vmem>>, vector<1x128xf32>
    %2 = vector.broadcast %1 : vector<1x128xf32> to vector<32x128xf32>
    %3 = arith.mulf %0, %2 : vector<32x128xf32>
    %c0_3 = arith.constant 0 : index
    %c0_4 = arith.constant 0 : index
    %4 = vector.load %arg3[%c0_3, %c0_4] : memref<1x128xf32, #tpu.memory_space<vmem>>, vector<1x128xf32>
    %5 = vector.broadcast %4 : vector<1x128xf32> to vector<32x128xf32>
    %6 = arith.addf %3, %5 : vector<32x128xf32>
    %cst = arith.constant 0.000000e+00 : f32
    %7 = vector.broadcast %cst : f32 to vector<32x128xf32>
    %8 = arith.cmpf oge, %6, %7 : vector<32x128xf32>
    %cst_5 = arith.constant 2.000000e-01 : f32
    %9 = vector.broadcast %cst_5 : f32 to vector<32x128xf32>
    %10 = arith.mulf %9, %6 : vector<32x128xf32>
    %11 = arith.select %8, %6, %10 : vector<32x128xi1>, vector<32x128xf32>
    %12 = arith.truncf %11 : vector<32x128xf32> to vector<32x128xbf16>
    %c0_6 = arith.constant 0 : index
    %c0_7 = arith.constant 0 : index
    %13 = vector.load %arg4[%c0_6, %c0_7] : memref<32x128xbf16, #tpu.memory_space<vmem>>, vector<32x128xbf16>
    tpu.vector_store %arg4[%c0_6, %c0_7], %12 {strides = array<i32>} : memref<32x128xbf16, #tpu.memory_space<vmem>>, vector<32x128xbf16>,
    return
  }
  func.func @transform_0(%arg0: i32) -> (i32, i32) {
    %c0_i32 = arith.constant 0 : i32
    %c0_i32_0 = arith.constant 0 : i32
    return %arg0, %c0_i32 : i32, i32
  }
  func.func @transform_1(%arg0: i32) -> (i32, i32) {
    %c0_i32 = arith.constant 0 : i32
    %c0_i32_0 = arith.constant 0 : i32
    %c0_i32_1 = arith.constant 0 : i32
    return %c0_i32, %c0_i32_0 : i32, i32
  }
  func.func @transform_2(%arg0: i32) -> (i32, i32) {
    %c0_i32 = arith.constant 0 : i32
    %c0_i32_0 = arith.constant 0 : i32
    %c0_i32_1 = arith.constant 0 : i32
    return %c0_i32, %c0_i32_0 : i32, i32
  }
  func.func @transform_3(%arg0: i32) -> (i32, i32) {
    %c0_i32 = arith.constant 0 : i32
    %c0_i32_0 = arith.constant 0 : i32
    return %arg0, %c0_i32 : i32, i32
  }
}

module attributes {stable_mosaic.version = 11 : i64} {
  func.func @_conv_act_kernel(%arg0: i32, %arg1: memref<8x1024xbf16, #tpu.memory_space<vmem>>, %arg2: memref<1024x128xbf16, #tpu.memory_space<vmem>>, %arg3: memref<8x128xf32, #tpu.memory_space<vmem>>) attributes {dimension_semantics = [#tpu.dimension_semantics<parallel>], iteration_bounds = array<i64: 1>, scalar_prefetch = 0 : i64, scratch_operands = 0 : i64, tpu.core_type = #tpu.core_type<tc>, window_params = [{transform_indices = @transform_0, window_bounds = array<i64: 8, 1024>}, {pipeline_mode = #tpu.pipeline_mode<synchronous>, transform_indices = @transform_1, window_bounds = array<i64: 1024, 128>}, {transform_indices = @transform_2, window_bounds = array<i64: 8, 128>}]} {
    %c0 = arith.constant 0 : index
    %c0_0 = arith.constant 0 : index
    %0 = vector.load %arg1[%c0, %c0_0] : memref<8x1024xbf16, #tpu.memory_space<vmem>>, vector<8x1024xbf16>
    %c0_1 = arith.constant 0 : index
    %c0_2 = arith.constant 0 : index
    %1 = vector.load %arg2[%c0_1, %c0_2] : memref<1024x128xbf16, #tpu.memory_space<vmem>>, vector<1024x128xbf16>
    %cst = arith.constant dense<0.000000e+00> : vector<8x128xf32>
    %2 = tpu.matmul %0, %1, %cst {dimension_numbers = #tpu.dot_dimension_numbers<[1], [0], [0], [1], [0, 0, 1, 1], [], []>} : vector<8x1024xbf16>, vector<1024x128xbf16>, vector<8x128xf32> -> vector<8x128xf32>
    %3 = arith.negf %2 : vector<8x128xf32>
    %4 = math.exp %3 : vector<8x128xf32>
    %cst_3 = arith.constant 1.000000e+00 : f32
    %5 = vector.broadcast %cst_3 : f32 to vector<8x128xf32>
    %6 = arith.addf %5, %4 : vector<8x128xf32>
    %7 = arith.divf %5, %6 : vector<8x128xf32>
    %c0_4 = arith.constant 0 : index
    %c0_5 = arith.constant 0 : index
    %8 = vector.load %arg3[%c0_4, %c0_5] : memref<8x128xf32, #tpu.memory_space<vmem>>, vector<8x128xf32>
    tpu.vector_store %arg3[%c0_4, %c0_5], %7 {strides = array<i32>} : memref<8x128xf32, #tpu.memory_space<vmem>>, vector<8x128xf32>,
    return
  }
  func.func @transform_0(%arg0: i32) -> (i32, i32) {
    %c0_i32 = arith.constant 0 : i32
    %c0_i32_0 = arith.constant 0 : i32
    return %arg0, %c0_i32 : i32, i32
  }
  func.func @transform_1(%arg0: i32) -> (i32, i32) {
    %c0_i32 = arith.constant 0 : i32
    %c0_i32_0 = arith.constant 0 : i32
    %c0_i32_1 = arith.constant 0 : i32
    return %c0_i32, %c0_i32_0 : i32, i32
  }
  func.func @transform_2(%arg0: i32) -> (i32, i32) {
    %c0_i32 = arith.constant 0 : i32
    %c0_i32_0 = arith.constant 0 : i32
    return %arg0, %c0_i32 : i32, i32
  }
}

</mosaic_0001>

<llo_original>
// kernel: discriminator_forward.8
$region0: #{discriminator_forward.8}
  #allocation0 [shape = 'u32[]', space=smem, size = 0x4, offset = 0x4, fixed_abs, tag = 'smem constant byte address 0x4 - core index']
  #allocation1 [shape = 'u32[144,128]{1,0:T(1,128)}', space=vmem, size = 0x12000, scoped, tag = 'internal scratch']
  %s0 = inlined_call_operand.vmem [shape: bf16[2048,48], index: 0, kind: input, shape index: {}]
  %s1 = inlined_call_operand.vmem [shape: bf16[48,128], index: 1, kind: input, shape index: {}]
  %s2 = inlined_call_operand.vmem [shape: bf16[2048,128], index: 2, kind: output, shape index: {}]
  %s3 = sld [smem:[#allocation0]]
  $region41: #{discriminator_forward.8} parent=0
    _
  %s5 = ssub.s32 1, %s3
  %s6 = scalar_select 0, %s5, %s3
  loop: start=0, step=1, limit=6
  $region2: #{discriminator_forward.8} parent=0 // loop_pre_header
    _
  $region3: #{discriminator_forward.8} parent=0 // loop_header
    %s8 = sphi 0, %s12
    %p9 = scmp.ge.s32.totalorder %s8, 6
    %s18 = sphi 0, %s20
    %s21 = sphi 0, %s18
    %s22 = sphi 0, %s21
    %s38 = sphi 0, %s22
    %s42 = sphi 0, %s42
    %s44 = sphi 0, %s42
    %s45 = sphi 0, %s44
    %s59 = sphi 0, %s45
    %s65 = sphi 0, %s67
    %s68 = sphi 0, %s65
    %s69 = sphi 0, %s68
    %s85 = sphi 0, %s69
  $region4: #{discriminator_forward.8} parent=0 // loop_header_branch
    %11 = sbr.rel (%p9) target = $region8
  $region5: #{discriminator_forward.8} parent=0 // loop_body
    %s13 = ssub.s32 %s8, 1
    %s14 = ssub.s32 %s8, 2
    %s15 = sadd.s32 %s8, 1
    %s16 = ssub.s32 %s8, %s15
    %p17 = scmp.eq.s32.totalorder %s16, 0
    %s19 = sadd.s32 %s18, 1
    %s20 = scalar_select %p17, %s18, %s19
    %p23 = pneg %p17
    %p24 = scmp.eq.s32.totalorder %s8, 3
    %p25 = por %p23, %p24
    %p26 = scmp.ne.s32.totalorder %s18, %s21
    %p27 = scmp.eq.s32.totalorder %s8, 0
    %p28 = por %p26, %p27
    %p29 = scmp.ne.s32.totalorder %s18, %s21
    %p30 = scmp.eq.s32.totalorder %s13, 3
    %p31 = por %p29, %p30
    %p32 = scmp.ne.s32.totalorder %s21, %s22
    %p33 = scmp.eq.s32.totalorder %s13, 0
    %p34 = por %p32, %p33
    %p35 = scmp.ne.s32.totalorder %s21, %s22
    %p36 = scmp.eq.s32.totalorder %s14, 3
    %p37 = por %p35, %p36
    %p39 = scmp.ne.s32.totalorder %s22, %s38
    %p40 = scmp.eq.s32.totalorder %s14, 0
    %p41 = por %p39, %p40
    %s43 = sadd.s32 %s42, 1
    %p46 = scmp.eq.s32.totalorder %s8, 3
    %p47 = scmp.ne.s32.totalorder %s42, %s44
    %p48 = scmp.eq.s32.totalorder %s8, 0
    %p49 = por %p47, %p48
    %p50 = scmp.ne.s32.totalorder %s42, %s44
    %p51 = scmp.eq.s32.totalorder %s13, 3
    %p52 = por %p50, %p51
    %p53 = scmp.ne.s32.totalorder %s44, %s45
    %p54 = scmp.eq.s32.totalorder %s13, 0
    %p55 = por %p53, %p54
    %p56 = scmp.ne.s32.totalorder %s44, %s45
    %p57 = scmp.eq.s32.totalorder %s14, 3
    %p58 = por %p56, %p57
    %p60 = scmp.ne.s32.totalorder %s45, %s59
    %p61 = scmp.eq.s32.totalorder %s14, 0
    %p62 = por %p60, %p61
    %s63 = ssub.s32 %s8, %s15
    %p64 = scmp.eq.s32.totalorder %s63, 0
    %s66 = sadd.s32 %s65, 1
    %s67 = scalar_select %p64, %s65, %s66
    %p70 = pneg %p64
    %p71 = scmp.eq.s32.totalorder %s8, 3
    %p72 = por %p70, %p71
    %p73 = scmp.ne.s32.totalorder %s65, %s68
    %p74 = scmp.eq.s32.totalorder %s8, 0
    %p75 = por %p73, %p74
    %p76 = scmp.ne.s32.totalorder %s65, %s68
    %p77 = scmp.eq.s32.totalorder %s13, 3
    %p78 = por %p76, %p77
    %p79 = scmp.ne.s32.totalorder %s68, %s69
    %p80 = scmp.eq.s32.totalorder %s13, 0
    %p81 = por %p79, %p80
    %p82 = scmp.ne.s32.totalorder %s68, %s69
    %p83 = scmp.eq.s32.totalorder %s14, 3
    %p84 = por %p82, %p83
    %p86 = scmp.ne.s32.totalorder %s69, %s85
    %p87 = scmp.eq.s32.totalorder %s14, 0
    %p88 = por %p86, %p87
    %p89 = scmp.le.s32.totalorder 1, %s8
    %p90 = scmp.lt.s32.totalorder %s8, 5
    %p91 = pnand %p89, %p90
    %p92 = pneg %p91
    // Predicated region
    $region9: #{discriminator_forward.8} parent=5 // pred_check
      _
    $region10: #{discriminator_forward.8} parent=5 // pred_check_branch
      %94 = sbr.rel (%p91) target = $region12
    $region11: #{discriminator_forward.8} parent=5 // pred_region
      %s95 = ssub.s32 %s8, 1
      // Predicated region
      $region13: #{discriminator_forward.8} parent=11 // pred_check
        %p96 = pneg %p55
      $region14: #{discriminator_forward.8} parent=11 // pred_check_branch
        %98 = sbr.rel (%p96) target = $region16
      $region15: #{discriminator_forward.8} parent=11 // pred_region
        _
      $region16: #{discriminator_forward.8} parent=11 // pred_fallthru
        _
    $region12: #{discriminator_forward.8} parent=5 // pred_fallthru
      _
    %p99 = scmp.lt.s32.totalorder %s8, 4
    // Predicated region
    $region17: #{discriminator_forward.8} parent=5 // pred_check
      %p100 = pneg %p99
    $region18: #{discriminator_forward.8} parent=5 // pred_check_branch
      %102 = sbr.rel (%p100) target = $region20
    $region19: #{discriminator_forward.8} parent=5 // pred_region
      // Predicated region
      $region21: #{discriminator_forward.8} parent=19 // pred_check
        %p103 = pneg %p28
      $region22: #{discriminator_forward.8} parent=19 // pred_check_branch
        %105 = sbr.rel (%p103) target = $region24
      $region23: #{discriminator_forward.8} parent=19 // pred_region
        %s106 = smul.u32 64, %s8
        %p107 = scmp.lt.s32.totalorder %s106, 255
        %s108 = scalar_select %p107, %s106, 255
        %s109 = smul.addr %s108, 4
        %s110 = scalar_lea.vmem %s0, %s109
        %s111 = smul.u32 64, %s8
      $region24: #{discriminator_forward.8} parent=19 // pred_fallthru
        _
    $region20: #{discriminator_forward.8} parent=5 // pred_fallthru
      _
    %p112 = scmp.le.s32.totalorder 1, %s8
    %p113 = scmp.lt.s32.totalorder %s8, 5
    %p114 = pnand %p112, %p113
    %p115 = pneg %p114
    // Predicated region
    $region25: #{discriminator_forward.8} parent=5 // pred_check
      _
    $region26: #{discriminator_forward.8} parent=5 // pred_check_branch
      %117 = sbr.rel (%p114) target = $region28
    $region27: #{discriminator_forward.8} parent=5 // pred_region
      %s118 = ssub.s32 %s8, 1
      %s119 = smul.u32 64, %s13
      %p120 = scmp.lt.s32.totalorder %s119, 255
      %s121 = scalar_select %p120, %s119, 255
      %s122 = smul.addr %s121, 4
      %s123 = scalar_lea.vmem %s0, %s122
      %p124 = pneg %p34
      %p125 = pneg %p31
      %p126 = pneg %p55
      %p127 = pneg %p52
      %p128 = pneg %p81
      %p129 = pneg %p78
      %s130 = smul.u32 64, %s13
      %p131 = scmp.lt.s32.totalorder %s130, 255
      %s132 = scalar_select %p131, %s130, 255
      %s133 = smul.addr %s132, 4
      %s134 = scalar_lea.vmem %s2, %s133
      %s135 = smul.u32 64, %s13
      %p136 = scmp.lt.s32.totalorder %s135, 255
      %s137 = scalar_select %p136, %s135, 255
      %s138 = smul.addr %s137, 4
      %s139 = scalar_lea.vmem %s0, %s138
      %s140 = smul.u32 64, %s13
      %s141 = smul.u32 64, %s13
      %p142 = scmp.lt.s32.totalorder %s141, 255
      %s143 = scalar_select %p142, %s141, 255
      %s144 = smul.addr %s143, 4
      %s145 = scalar_lea.vmem %s2, %s144
      %s146 = smul.u32 64, %s13
      %v148 = vld [vmem:[%s139] sm:$0xf]
      %v149 = vld [vmem:[%s139 + $0x4] sm:$0xf]
      %v150 = vld [vmem:[%s139 + $0x8] sm:$0xf]
      %v151 = vld [vmem:[%s139 + $0xc] sm:$0xf]
      %v152 = vld [vmem:[%s139 + $0x10] sm:$0xf]
      %v153 = vld [vmem:[%s139 + $0x14] sm:$0xf]
      %v154 = vld [vmem:[%s139 + $0x18] sm:$0xf]
      %v155 = vld [vmem:[%s139 + $0x1c] sm:$0xf]
      %v156 = vld [vmem:[%s139 + $0x20] sm:$0xf]
      %v157 = vld [vmem:[%s139 + $0x24] sm:$0xf]
      %v158 = vld [vmem:[%s139 + $0x28] sm:$0xf]
      %v159 = vld [vmem:[%s139 + $0x2c] sm:$0xf]
      %v160 = vld [vmem:[%s139 + $0x30] sm:$0xf]
      %v161 = vld [vmem:[%s139 + $0x34] sm:$0xf]
      %v162 = vld [vmem:[%s139 + $0x38] sm:$0xf]
      %v163 = vld [vmem:[%s139 + $0x3c] sm:$0xf]
      %v164 = vld [vmem:[%s139 + $0x40] sm:$0xf]
      %v165 = vld [vmem:[%s139 + $0x44] sm:$0xf]
      %v166 = vld [vmem:[%s139 + $0x48] sm:$0xf]
      %v167 = vld [vmem:[%s139 + $0x4c] sm:$0xf]
      %v168 = vld [vmem:[%s139 + $0x50] sm:$0xf]
      %v169 = vld [vmem:[%s139 + $0x54] sm:$0xf]
      %v170 = vld [vmem:[%s139 + $0x58] sm:$0xf]
      %v171 = vld [vmem:[%s139 + $0x5c] sm:$0xf]
      %v172 = vld [vmem:[%s139 + $0x60] sm:$0xf]
      %v173 = vld [vmem:[%s139 + $0x64] sm:$0xf]
      %v174 = vld [vmem:[%s139 + $0x68] sm:$0xf]
      %v175 = vld [vmem:[%s139 + $0x6c] sm:$0xf]
      %v176 = vld [vmem:[%s139 + $0x70] sm:$0xf]
      %v177 = vld [vmem:[%s139 + $0x74] sm:$0xf]
      %v178 = vld [vmem:[%s139 + $0x78] sm:$0xf]
      %v179 = vld [vmem:[%s139 + $0x7c] sm:$0xf]
      %v180 = vld [vmem:[%s139 + $0x80] sm:$0xf]
      %v181 = vld [vmem:[%s139 + $0x84] sm:$0xf]
      %v182 = vld [vmem:[%s139 + $0x88] sm:$0xf]
      %v183 = vld [vmem:[%s139 + $0x8c] sm:$0xf]
      %v184 = vld [vmem:[%s139 + $0x90] sm:$0xf]
      %v185 = vld [vmem:[%s139 + $0x94] sm:$0xf]
      %v186 = vld [vmem:[%s139 + $0x98] sm:$0xf]
      %v187 = vld [vmem:[%s139 + $0x9c] sm:$0xf]
      %v188 = vld [vmem:[%s139 + $0xa0] sm:$0xf]
      %v189 = vld [vmem:[%s139 + $0xa4] sm:$0xf]
      %v190 = vld [vmem:[%s139 + $0xa8] sm:$0xf]
      %v191 = vld [vmem:[%s139 + $0xac] sm:$0xf]
      %v192 = vld [vmem:[%s139 + $0xb0] sm:$0xf]
      %v193 = vld [vmem:[%s139 + $0xb4] sm:$0xf]
      %v194 = vld [vmem:[%s139 + $0xb8] sm:$0xf]
      %v195 = vld [vmem:[%s139 + $0xbc] sm:$0xf]
      %v196 = vld [vmem:[%s139 + $0xc0] sm:$0xf]
      %v197 = vld [vmem:[%s139 + $0xc4] sm:$0xf]
      %v198 = vld [vmem:[%s139 + $0xc8] sm:$0xf]
      %v199 = vld [vmem:[%s139 + $0xcc] sm:$0xf]
      %v200 = vld [vmem:[%s139 + $0xd0] sm:$0xf]
      %v201 = vld [vmem:[%s139 + $0xd4] sm:$0xf]
      %v202 = vld [vmem:[%s139 + $0xd8] sm:$0xf]
      %v203 = vld [vmem:[%s139 + $0xdc] sm:$0xf]
      %v204 = vld [vmem:[%s139 + $0xe0] sm:$0xf]
      %v205 = vld [vmem:[%s139 + $0xe4] sm:$0xf]
      %v206 = vld [vmem:[%s139 + $0xe8] sm:$0xf]
      %v207 = vld [vmem:[%s139 + $0xec] sm:$0xf]
      %v208 = vld [vmem:[%s139 + $0xf0] sm:$0xf]
      %v209 = vld [vmem:[%s139 + $0xf4] sm:$0xf]
      %v210 = vld [vmem:[%s139 + $0xf8] sm:$0xf]
      %v211 = vld [vmem:[%s139 + $0xfc] sm:$0xf]
      %v212 = vld [vmem:[%s1] sm:$0xf]
      %v213 = vld [vmem:[%s1 + $0x4] sm:$0xf]
      %v214 = vld [vmem:[%s1 + $0x8] sm:$0xf]
      %v215 = vld [vmem:[%s1 + $0xc] sm:$0xf]
      %v216 = vld [vmem:[%s1 + $0x10] sm:$0xf]
      %v217 = vld [vmem:[%s1 + $0x14] sm:$0xf]
      %v282 = vunpack.c.l.b16 %v148
      %v283 = vunpack.c.l.b16 %v149
      %v284 = vunpack.c.l.b16 %v150
      %v285 = vunpack.c.l.b16 %v151
      %v286 = vunpack.c.l.b16 %v152
      %v287 = vunpack.c.l.b16 %v153
      %v288 = vunpack.c.l.b16 %v154
      %v289 = vunpack.c.l.b16 %v155
      %v290 = vunpack.c.l.b16 %v156
      %v291 = vunpack.c.l.b16 %v157
      %v292 = vunpack.c.l.b16 %v158
      %v293 = vunpack.c.l.b16 %v159
      %v294 = vunpack.c.l.b16 %v160
      %v295 = vunpack.c.l.b16 %v161
      %v296 = vunpack.c.l.b16 %v162
      %v297 = vunpack.c.l.b16 %v163
      %v298 = vunpack.c.l.b16 %v164
      %v299 = vunpack.c.l.b16 %v165
      %v300 = vunpack.c.l.b16 %v166
      %v301 = vunpack.c.l.b16 %v167
      %v302 = vunpack.c.l.b16 %v168
      %v303 = vunpack.c.l.b16 %v169
      %v304 = vunpack.c.l.b16 %v170
      %v305 = vunpack.c.l.b16 %v171
      %v306 = vunpack.c.l.b16 %v172
      %v307 = vunpack.c.l.b16 %v173
      %v308 = vunpack.c.l.b16 %v174
      %v309 = vunpack.c.l.b16 %v175
      %v310 = vunpack.c.l.b16 %v176
      %v311 = vunpack.c.l.b16 %v177
      %v312 = vunpack.c.l.b16 %v178
      %v313 = vunpack.c.l.b16 %v179
      %v314 = vunpack.c.l.b16 %v180
      %v315 = vunpack.c.l.b16 %v181
      %v316 = vunpack.c.l.b16 %v182
      %v317 = vunpack.c.l.b16 %v183
      %v318 = vunpack.c.l.b16 %v184
      %v319 = vunpack.c.l.b16 %v185
      %v320 = vunpack.c.l.b16 %v186
      %v321 = vunpack.c.l.b16 %v187
      %v322 = vunpack.c.l.b16 %v188
      %v323 = vunpack.c.l.b16 %v189
      %v324 = vunpack.c.l.b16 %v190
      %v325 = vunpack.c.l.b16 %v191
      %v326 = vunpack.c.l.b16 %v192
      %v327 = vunpack.c.l.b16 %v193
      %v328 = vunpack.c.l.b16 %v194
      %v329 = vunpack.c.l.b16 %v195
      %v330 = vunpack.c.l.b16 %v196
      %v331 = vunpack.c.l.b16 %v197
      %v332 = vunpack.c.l.b16 %v198
      %v333 = vunpack.c.l.b16 %v199
      %v334 = vunpack.c.l.b16 %v200
      %v335 = vunpack.c.l.b16 %v201
      %v336 = vunpack.c.l.b16 %v202
      %v337 = vunpack.c.l.b16 %v203
      %v338 = vunpack.c.l.b16 %v204
      %v339 = vunpack.c.l.b16 %v205
      %v340 = vunpack.c.l.b16 %v206
      %v341 = vunpack.c.l.b16 %v207
      %v342 = vunpack.c.l.b16 %v208
      %v343 = vunpack.c.l.b16 %v209
      %v344 = vunpack.c.l.b16 %v210
      %v345 = vunpack.c.l.b16 %v211
      %v346 = vpack.c.b16 %v283, %v282
      %v347 = vpack.c.b16 %v285, %v284
      %v348 = vpack.c.b16 %v287, %v286
      %v349 = vpack.c.b16 %v289, %v288
      %v350 = vpack.c.b16 %v291, %v290
      %v351 = vpack.c.b16 %v293, %v292
      %v352 = vpack.c.b16 %v295, %v294
      %v353 = vpack.c.b16 %v297, %v296
      %v354 = vpack.c.b16 %v299, %v298
      %v355 = vpack.c.b16 %v301, %v300
      %v356 = vpack.c.b16 %v303, %v302
      %v357 = vpack.c.b16 %v305, %v304
      %v358 = vpack.c.b16 %v307, %v306
      %v359 = vpack.c.b16 %v309, %v308
      %v360 = vpack.c.b16 %v311, %v310
      %v361 = vpack.c.b16 %v313, %v312
      %v362 = vpack.c.b16 %v315, %v314
      %v363 = vpack.c.b16 %v317, %v316
      %v364 = vpack.c.b16 %v319, %v318
      %v365 = vpack.c.b16 %v321, %v320
      %v366 = vpack.c.b16 %v323, %v322
      %v367 = vpack.c.b16 %v325, %v324
      %v368 = vpack.c.b16 %v327, %v326
      %v369 = vpack.c.b16 %v329, %v328
      %v370 = vpack.c.b16 %v331, %v330
      %v371 = vpack.c.b16 %v333, %v332
      %v372 = vpack.c.b16 %v335, %v334
      %v373 = vpack.c.b16 %v337, %v336
      %v374 = vpack.c.b16 %v339, %v338
      %v375 = vpack.c.b16 %v341, %v340
      %v376 = vpack.c.b16 %v343, %v342
      %v377 = vpack.c.b16 %v345, %v344
      %v384 = vunpack.c.l.b16 %v212
      %v385 = vunpack.c.l.b16 %v213
      %v386 = vunpack.c.l.b16 %v214
      %v387 = vunpack.c.l.b16 %v215
      %v388 = vunpack.c.l.b16 %v216
      %v389 = vunpack.c.l.b16 %v217
      %v390 = vpack.c.b16 %v385, %v384
      %v391 = vpack.c.b16 %v387, %v386
      %v392 = vpack.c.b16 %v389, %v388
      %vm396 = vcmask 392192
      %v398 = vsel %vm396, %v346, 0
      %v401 = vsel %vm396, %v347, 0
      %v404 = vsel %vm396, %v348, 0
      %v407 = vsel %vm396, %v349, 0
      %v410 = vsel %vm396, %v350, 0
      %v413 = vsel %vm396, %v351, 0
      %v416 = vsel %vm396, %v352, 0
      %v419 = vsel %vm396, %v353, 0
      %v422 = vsel %vm396, %v354, 0
      %v425 = vsel %vm396, %v355, 0
      %v428 = vsel %vm396, %v356, 0
      %v431 = vsel %vm396, %v357, 0
      %v434 = vsel %vm396, %v358, 0
      %v437 = vsel %vm396, %v359, 0
      %v440 = vsel %vm396, %v360, 0
      %v443 = vsel %vm396, %v361, 0
      %v446 = vsel %vm396, %v362, 0
      %v449 = vsel %vm396, %v363, 0
      %v452 = vsel %vm396, %v364, 0
      %v455 = vsel %vm396, %v365, 0
      %v458 = vsel %vm396, %v366, 0
      %v461 = vsel %vm396, %v367, 0
      %v464 = vsel %vm396, %v368, 0
      %v467 = vsel %vm396, %v369, 0
      %v470 = vsel %vm396, %v370, 0
      %v473 = vsel %vm396, %v371, 0
      %v476 = vsel %vm396, %v372, 0
      %v479 = vsel %vm396, %v373, 0
      %v482 = vsel %vm396, %v374, 0
      %v485 = vsel %vm396, %v375, 0
      %v488 = vsel %vm396, %v376, 0
      %v491 = vsel %vm396, %v377, 0
      %493 = vmatprep.subr.bf16.mxu0 0
      %494 = vmatpush1.bf16.msra.mxu0 0
      %495 = vmatprep.subr.bf16.mxu0 0
      %496 = vmatpush1.bf16.msra.mxu0 0
      %497 = vmatprep.subr.bf16.mxu0 0
      %498 = vmatpush1.bf16.msra.mxu0 0
      %499 = vmatprep.subr.bf16.mxu0 0
      %500 = vmatpush1.bf16.msra.mxu0 0
      %501 = vmatprep.subr.bf16.mxu0 0
      %502 = vmatpush1.bf16.msra.mxu0 0
      %503 = vmatprep.subr.bf16.mxu0 0
      %504 = vmatpush1.bf16.msra.mxu0 %v392
      %505 = vmatprep.subr.bf16.mxu0 0
      %506 = vmatpush1.bf16.msra.mxu0 %v391
      %507 = vmatprep.subr.bf16.mxu0 0
      %508 = vmatpush1.bf16.msra.mxu0 %v390
      %509 = vmatprep.subr.bf16.mxu0 0
      %510 = vmatpush2.bf16.msra.mxu0 0
      %511 = vmatprep.subr.bf16.mxu0 0
      %512 = vmatpush2.bf16.msra.mxu0 0
      %513 = vmatprep.subr.bf16.mxu0 0
      %514 = vmatpush2.bf16.msra.mxu0 0
      %515 = vmatprep.subr.bf16.mxu0 0
      %516 = vmatpush2.bf16.msra.mxu0 0
      %517 = vmatprep.subr.bf16.mxu0 0
      %518 = vmatpush2.bf16.msra.mxu0 0
      %519 = vmatprep.subr.bf16.mxu0 0
      %520 = vmatpush2.bf16.msra.mxu0 0
      %521 = vmatprep.subr.bf16.mxu0 0
      %522 = vmatpush2.bf16.msra.mxu0 0
      %523 = vmatprep.subr.bf16.mxu0 0
      %524 = vmatpush2.bf16.msra.mxu0 0
      %525 = vmatprep.mubr.bf16.mxu0 0
      %526 = vmatmul.mubr.bf16.gmra.mxu0 %v398
      %v527 = vpop.f32.mrf.mxu0
      %v528 = vadd.f32 0.0, %v527
      %v529 = vpop.f32.mrf.mxu0
      %v530 = vpop.f32.mrf.mxu0
      %v531 = vadd.f32 0.0, %v530
      %v532 = vpop.f32.mrf.mxu0
      %533 = vmatprep.mubr.bf16.mxu0 0
      %534 = vmatmul.mubr.bf16.gmra.mxu0 %v401
      %v535 = vpop.f32.mrf.mxu0
      %v536 = vadd.f32 0.0, %v535
      %v537 = vpop.f32.mrf.mxu0
      %v538 = vpop.f32.mrf.mxu0
      %v539 = vadd.f32 0.0, %v538
      %v540 = vpop.f32.mrf.mxu0
      %541 = vmatprep.mubr.bf16.mxu0 0
      %542 = vmatmul.mubr.bf16.gmra.mxu0 %v404
      %v543 = vpop.f32.mrf.mxu0
      %v544 = vadd.f32 0.0, %v543
      %v545 = vpop.f32.mrf.mxu0
      %v546 = vpop.f32.mrf.mxu0
      %v547 = vadd.f32 0.0, %v546
      %v548 = vpop.f32.mrf.mxu0
      %549 = vmatprep.mubr.bf16.mxu0 0
      %550 = vmatmul.mubr.bf16.gmra.mxu0 %v407
      %v551 = vpop.f32.mrf.mxu0
      %v552 = vadd.f32 0.0, %v551
      %v553 = vpop.f32.mrf.mxu0
      %v554 = vpop.f32.mrf.mxu0
      %v555 = vadd.f32 0.0, %v554
      %v556 = vpop.f32.mrf.mxu0
      %557 = vmatprep.mubr.bf16.mxu0 0
      %558 = vmatmul.mubr.bf16.gmra.mxu0 %v410
      %v559 = vpop.f32.mrf.mxu0
      %v560 = vadd.f32 0.0, %v559
      %v561 = vpop.f32.mrf.mxu0
      %v562 = vpop.f32.mrf.mxu0
      %v563 = vadd.f32 0.0, %v562
      %v564 = vpop.f32.mrf.mxu0
      %565 = vmatprep.mubr.bf16.mxu0 0
      %566 = vmatmul.mubr.bf16.gmra.mxu0 %v413
      %v567 = vpop.f32.mrf.mxu0
      %v568 = vadd.f32 0.0, %v567
      %v569 = vpop.f32.mrf.mxu0
      %v570 = vpop.f32.mrf.mxu0
      %v571 = vadd.f32 0.0, %v570
      %v572 = vpop.f32.mrf.mxu0
      %573 = vmatprep.mubr.bf16.mxu0 0
      %574 = vmatmul.mubr.bf16.gmra.mxu0 %v416
      %v575 = vpop.f32.mrf.mxu0
      %v576 = vadd.f32 0.0, %v575
      %v577 = vpop.f32.mrf.mxu0
      %v578 = vpop.f32.mrf.mxu0
      %v579 = vadd.f32 0.0, %v578
      %v580 = vpop.f32.mrf.mxu0
      %581 = vmatprep.mubr.bf16.mxu0 0
      %582 = vmatmul.mubr.bf16.gmra.mxu0 %v419
      %v583 = vpop.f32.mrf.mxu0
      %v584 = vadd.f32 0.0, %v583
      %v585 = vpop.f32.mrf.mxu0
      %v586 = vpop.f32.mrf.mxu0
      %v587 = vadd.f32 0.0, %v586
      %v588 = vpop.f32.mrf.mxu0
      %589 = vmatprep.mubr.bf16.mxu0 0
      %590 = vmatmul.mubr.bf16.gmra.mxu0 %v422
      %v591 = vpop.f32.mrf.mxu0
      %v592 = vadd.f32 0.0, %v591
      %v593 = vpop.f32.mrf.mxu0
      %v594 = vpop.f32.mrf.mxu0
      %v595 = vadd.f32 0.0, %v594
      %v596 = vpop.f32.mrf.mxu0
      %597 = vmatprep.mubr.bf16.mxu0 0
      %598 = vmatmul.mubr.bf16.gmra.mxu0 %v425
      %v599 = vpop.f32.mrf.mxu0
      %v600 = vadd.f32 0.0, %v599
      %v601 = vpop.f32.mrf.mxu0
      %v602 = vpop.f32.mrf.mxu0
      %v603 = vadd.f32 0.0, %v602
      %v604 = vpop.f32.mrf.mxu0
      %605 = vmatprep.mubr.bf16.mxu0 0
      %606 = vmatmul.mubr.bf16.gmra.mxu0 %v428
      %v607 = vpop.f32.mrf.mxu0
      %v608 = vadd.f32 0.0, %v607
      %v609 = vpop.f32.mrf.mxu0
      %v610 = vpop.f32.mrf.mxu0
      %v611 = vadd.f32 0.0, %v610
      %v612 = vpop.f32.mrf.mxu0
      %613 = vmatprep.mubr.bf16.mxu0 0
      %614 = vmatmul.mubr.bf16.gmra.mxu0 %v431
      %v615 = vpop.f32.mrf.mxu0
      %v616 = vadd.f32 0.0, %v615
      %v617 = vpop.f32.mrf.mxu0
      %v618 = vpop.f32.mrf.mxu0
      %v619 = vadd.f32 0.0, %v618
      %v620 = vpop.f32.mrf.mxu0
      %621 = vmatprep.mubr.bf16.mxu0 0
      %622 = vmatmul.mubr.bf16.gmra.mxu0 %v434
      %v623 = vpop.f32.mrf.mxu0
      %v624 = vadd.f32 0.0, %v623
      %v625 = vpop.f32.mrf.mxu0
      %v626 = vpop.f32.mrf.mxu0
      %v627 = vadd.f32 0.0, %v626
      %v628 = vpop.f32.mrf.mxu0
      %629 = vmatprep.mubr.bf16.mxu0 0
      %630 = vmatmul.mubr.bf16.gmra.mxu0 %v437
      %v631 = vpop.f32.mrf.mxu0
      %v632 = vadd.f32 0.0, %v631
      %v633 = vpop.f32.mrf.mxu0
      %v634 = vpop.f32.mrf.mxu0
      %v635 = vadd.f32 0.0, %v634
      %v636 = vpop.f32.mrf.mxu0
      %637 = vmatprep.mubr.bf16.mxu0 0
      %638 = vmatmul.mubr.bf16.gmra.mxu0 %v440
      %v639 = vpop.f32.mrf.mxu0
      %v640 = vadd.f32 0.0, %v639
      %v641 = vpop.f32.mrf.mxu0
      %v642 = vpop.f32.mrf.mxu0
      %v643 = vadd.f32 0.0, %v642
      %v644 = vpop.f32.mrf.mxu0
      %645 = vmatprep.mubr.bf16.mxu0 0
      %646 = vmatmul.mubr.bf16.gmra.mxu0 %v443
      %v647 = vpop.f32.mrf.mxu0
      %v648 = vadd.f32 0.0, %v647
      %v649 = vpop.f32.mrf.mxu0
      %v650 = vpop.f32.mrf.mxu0
      %v651 = vadd.f32 0.0, %v650
      %v652 = vpop.f32.mrf.mxu0
      %653 = vmatprep.mubr.bf16.mxu0 0
      %654 = vmatmul.mubr.bf16.gmra.mxu0 %v446
      %v655 = vpop.f32.mrf.mxu0
      %v656 = vadd.f32 0.0, %v655
      %v657 = vpop.f32.mrf.mxu0
      %v658 = vpop.f32.mrf.mxu0
      %v659 = vadd.f32 0.0, %v658
      %v660 = vpop.f32.mrf.mxu0
      %661 = vmatprep.mubr.bf16.mxu0 0
      %662 = vmatmul.mubr.bf16.gmra.mxu0 %v449
      %v663 = vpop.f32.mrf.mxu0
      %v664 = vadd.f32 0.0, %v663
      %v665 = vpop.f32.mrf.mxu0
      %v666 = vpop.f32.mrf.mxu0
      %v667 = vadd.f32 0.0, %v666
      %v668 = vpop.f32.mrf.mxu0
      %669 = vmatprep.mubr.bf16.mxu0 0
      %670 = vmatmul.mubr.bf16.gmra.mxu0 %v452
      %v671 = vpop.f32.mrf.mxu0
      %v672 = vadd.f32 0.0, %v671
      %v673 = vpop.f32.mrf.mxu0
      %v674 = vpop.f32.mrf.mxu0
      %v675 = vadd.f32 0.0, %v674
      %v676 = vpop.f32.mrf.mxu0
      %677 = vmatprep.mubr.bf16.mxu0 0
      %678 = vmatmul.mubr.bf16.gmra.mxu0 %v455
      %v679 = vpop.f32.mrf.mxu0
      %v680 = vadd.f32 0.0, %v679
      %v681 = vpop.f32.mrf.mxu0
      %v682 = vpop.f32.mrf.mxu0
      %v683 = vadd.f32 0.0, %v682
      %v684 = vpop.f32.mrf.mxu0
      %685 = vmatprep.mubr.bf16.mxu0 0
      %686 = vmatmul.mubr.bf16.gmra.mxu0 %v458
      %v687 = vpop.f32.mrf.mxu0
      %v688 = vadd.f32 0.0, %v687
      %v689 = vpop.f32.mrf.mxu0
      %v690 = vpop.f32.mrf.mxu0
      %v691 = vadd.f32 0.0, %v690
      %v692 = vpop.f32.mrf.mxu0
      %693 = vmatprep.mubr.bf16.mxu0 0
      %694 = vmatmul.mubr.bf16.gmra.mxu0 %v461
      %v695 = vpop.f32.mrf.mxu0
      %v696 = vadd.f32 0.0, %v695
      %v697 = vpop.f32.mrf.mxu0
      %v698 = vpop.f32.mrf.mxu0
      %v699 = vadd.f32 0.0, %v698
      %v700 = vpop.f32.mrf.mxu0
      %701 = vmatprep.mubr.bf16.mxu0 0
      %702 = vmatmul.mubr.bf16.gmra.mxu0 %v464
      %v703 = vpop.f32.mrf.mxu0
      %v704 = vadd.f32 0.0, %v703
      %v705 = vpop.f32.mrf.mxu0
      %v706 = vpop.f32.mrf.mxu0
      %v707 = vadd.f32 0.0, %v706
      %v708 = vpop.f32.mrf.mxu0
      %709 = vmatprep.mubr.bf16.mxu0 0
      %710 = vmatmul.mubr.bf16.gmra.mxu0 %v467
      %v711 = vpop.f32.mrf.mxu0
      %v712 = vadd.f32 0.0, %v711
      %v713 = vpop.f32.mrf.mxu0
      %v714 = vpop.f32.mrf.mxu0
      %v715 = vadd.f32 0.0, %v714
      %v716 = vpop.f32.mrf.mxu0
      %717 = vmatprep.mubr.bf16.mxu0 0
      %718 = vmatmul.mubr.bf16.gmra.mxu0 %v470
      %v719 = vpop.f32.mrf.mxu0
      %v720 = vadd.f32 0.0, %v719
      %v721 = vpop.f32.mrf.mxu0
      %v722 = vpop.f32.mrf.mxu0
      %v723 = vadd.f32 0.0, %v722
      %v724 = vpop.f32.mrf.mxu0
      %725 = vmatprep.mubr.bf16.mxu0 0
      %726 = vmatmul.mubr.bf16.gmra.mxu0 %v473
      %v727 = vpop.f32.mrf.mxu0
      %v728 = vadd.f32 0.0, %v727
      %v729 = vpop.f32.mrf.mxu0
      %v730 = vpop.f32.mrf.mxu0
      %v731 = vadd.f32 0.0, %v730
      %v732 = vpop.f32.mrf.mxu0
      %733 = vmatprep.mubr.bf16.mxu0 0
      %734 = vmatmul.mubr.bf16.gmra.mxu0 %v476
      %v735 = vpop.f32.mrf.mxu0
      %v736 = vadd.f32 0.0, %v735
      %v737 = vpop.f32.mrf.mxu0
      %v738 = vpop.f32.mrf.mxu0
      %v739 = vadd.f32 0.0, %v738
      %v740 = vpop.f32.mrf.mxu0
      %741 = vmatprep.mubr.bf16.mxu0 0
      %742 = vmatmul.mubr.bf16.gmra.mxu0 %v479
      %v743 = vpop.f32.mrf.mxu0
      %v744 = vadd.f32 0.0, %v743
      %v745 = vpop.f32.mrf.mxu0
      %v746 = vpop.f32.mrf.mxu0
      %v747 = vadd.f32 0.0, %v746
      %v748 = vpop.f32.mrf.mxu0
      %749 = vmatprep.mubr.bf16.mxu0 0
      %750 = vmatmul.mubr.bf16.gmra.mxu0 %v482
      %v751 = vpop.f32.mrf.mxu0
      %v752 = vadd.f32 0.0, %v751
      %v753 = vpop.f32.mrf.mxu0
      %v754 = vpop.f32.mrf.mxu0
      %v755 = vadd.f32 0.0, %v754
      %v756 = vpop.f32.mrf.mxu0
      %757 = vmatprep.mubr.bf16.mxu0 0
      %758 = vmatmul.mubr.bf16.gmra.mxu0 %v485
      %v759 = vpop.f32.mrf.mxu0
      %v760 = vadd.f32 0.0, %v759
      %v761 = vpop.f32.mrf.mxu0
      %v762 = vpop.f32.mrf.mxu0
      %v763 = vadd.f32 0.0, %v762
      %v764 = vpop.f32.mrf.mxu0
      %765 = vmatprep.mubr.bf16.mxu0 0
      %766 = vmatmul.mubr.bf16.gmra.mxu0 %v488
      %v767 = vpop.f32.mrf.mxu0
      %v768 = vadd.f32 0.0, %v767
      %v769 = vpop.f32.mrf.mxu0
      %v770 = vpop.f32.mrf.mxu0
      %v771 = vadd.f32 0.0, %v770
      %v772 = vpop.f32.mrf.mxu0
      %773 = vmatprep.mubr.bf16.mxu0 0
      %774 = vmatmul.mubr.bf16.gmra.mxu0 %v491
      %v775 = vpop.f32.mrf.mxu0
      %v776 = vadd.f32 0.0, %v775
      %v777 = vpop.f32.mrf.mxu0
      %v778 = vpop.f32.mrf.mxu0
      %v779 = vadd.f32 0.0, %v778
      %v780 = vpop.f32.mrf.mxu0
      %781 = vdwg.mxu0
      %vm782 = vcmp.ge.f32.partialorder %v528, 0.0
      %vm783 = vcmp.ge.f32.partialorder %v531, 0.0
      %vm784 = vcmp.ge.f32.partialorder %v536, 0.0
      %vm785 = vcmp.ge.f32.partialorder %v539, 0.0
      %vm786 = vcmp.ge.f32.partialorder %v544, 0.0
      %vm787 = vcmp.ge.f32.partialorder %v547, 0.0
      %vm788 = vcmp.ge.f32.partialorder %v552, 0.0
      %vm789 = vcmp.ge.f32.partialorder %v555, 0.0
      %vm790 = vcmp.ge.f32.partialorder %v560, 0.0
      %vm791 = vcmp.ge.f32.partialorder %v563, 0.0
      %vm792 = vcmp.ge.f32.partialorder %v568, 0.0
      %vm793 = vcmp.ge.f32.partialorder %v571, 0.0
      %vm794 = vcmp.ge.f32.partialorder %v576, 0.0
      %vm795 = vcmp.ge.f32.partialorder %v579, 0.0
      %vm796 = vcmp.ge.f32.partialorder %v584, 0.0
      %vm797 = vcmp.ge.f32.partialorder %v587, 0.0
      %vm798 = vcmp.ge.f32.partialorder %v592, 0.0
      %vm799 = vcmp.ge.f32.partialorder %v595, 0.0
      %vm800 = vcmp.ge.f32.partialorder %v600, 0.0
      %vm801 = vcmp.ge.f32.partialorder %v603, 0.0
      %vm802 = vcmp.ge.f32.partialorder %v608, 0.0
      %vm803 = vcmp.ge.f32.partialorder %v611, 0.0
      %vm804 = vcmp.ge.f32.partialorder %v616, 0.0
      %vm805 = vcmp.ge.f32.partialorder %v619, 0.0
      %vm806 = vcmp.ge.f32.partialorder %v624, 0.0
      %vm807 = vcmp.ge.f32.partialorder %v627, 0.0
      %vm808 = vcmp.ge.f32.partialorder %v632, 0.0
      %vm809 = vcmp.ge.f32.partialorder %v635, 0.0
      %vm810 = vcmp.ge.f32.partialorder %v640, 0.0
      %vm811 = vcmp.ge.f32.partialorder %v643, 0.0
      %vm812 = vcmp.ge.f32.partialorder %v648, 0.0
      %vm813 = vcmp.ge.f32.partialorder %v651, 0.0
      %vm814 = vcmp.ge.f32.partialorder %v656, 0.0
      %vm815 = vcmp.ge.f32.partialorder %v659, 0.0
      %vm816 = vcmp.ge.f32.partialorder %v664, 0.0
      %vm817 = vcmp.ge.f32.partialorder %v667, 0.0
      %vm818 = vcmp.ge.f32.partialorder %v672, 0.0
      %vm819 = vcmp.ge.f32.partialorder %v675, 0.0
      %vm820 = vcmp.ge.f32.partialorder %v680, 0.0
      %vm821 = vcmp.ge.f32.partialorder %v683, 0.0
      %vm822 = vcmp.ge.f32.partialorder %v688, 0.0
      %vm823 = vcmp.ge.f32.partialorder %v691, 0.0
      %vm824 = vcmp.ge.f32.partialorder %v696, 0.0
      %vm825 = vcmp.ge.f32.partialorder %v699, 0.0
      %vm826 = vcmp.ge.f32.partialorder %v704, 0.0
      %vm827 = vcmp.ge.f32.partialorder %v707, 0.0
      %vm828 = vcmp.ge.f32.partialorder %v712, 0.0
      %vm829 = vcmp.ge.f32.partialorder %v715, 0.0
      %vm830 = vcmp.ge.f32.partialorder %v720, 0.0
      %vm831 = vcmp.ge.f32.partialorder %v723, 0.0
      %vm832 = vcmp.ge.f32.partialorder %v728, 0.0
      %vm833 = vcmp.ge.f32.partialorder %v731, 0.0
      %vm834 = vcmp.ge.f32.partialorder %v736, 0.0
      %vm835 = vcmp.ge.f32.partialorder %v739, 0.0
      %vm836 = vcmp.ge.f32.partialorder %v744, 0.0
      %vm837 = vcmp.ge.f32.partialorder %v747, 0.0
      %vm838 = vcmp.ge.f32.partialorder %v752, 0.0
      %vm839 = vcmp.ge.f32.partialorder %v755, 0.0
      %vm840 = vcmp.ge.f32.partialorder %v760, 0.0
      %vm841 = vcmp.ge.f32.partialorder %v763, 0.0
      %vm842 = vcmp.ge.f32.partialorder %v768, 0.0
      %vm843 = vcmp.ge.f32.partialorder %v771, 0.0
      %vm844 = vcmp.ge.f32.partialorder %v776, 0.0
      %vm845 = vcmp.ge.f32.partialorder %v779, 0.0
      %v846 = vmul.f32 %v528, 0.2
      %v847 = vmul.f32 %v531, 0.2
      %v848 = vmul.f32 %v536, 0.2
      %v849 = vmul.f32 %v539, 0.2
      %v850 = vmul.f32 %v544, 0.2
      %v851 = vmul.f32 %v547, 0.2
      %v852 = vmul.f32 %v552, 0.2
      %v853 = vmul.f32 %v555, 0.2
      %v854 = vmul.f32 %v560, 0.2
      %v855 = vmul.f32 %v563, 0.2
      %v856 = vmul.f32 %v568, 0.2
      %v857 = vmul.f32 %v571, 0.2
      %v858 = vmul.f32 %v576, 0.2
      %v859 = vmul.f32 %v579, 0.2
      %v860 = vmul.f32 %v584, 0.2
      %v861 = vmul.f32 %v587, 0.2
      %v862 = vmul.f32 %v592, 0.2
      %v863 = vmul.f32 %v595, 0.2
      %v864 = vmul.f32 %v600, 0.2
      %v865 = vmul.f32 %v603, 0.2
      %v866 = vmul.f32 %v608, 0.2
      %v867 = vmul.f32 %v611, 0.2
      %v868 = vmul.f32 %v616, 0.2
      %v869 = vmul.f32 %v619, 0.2
      %v870 = vmul.f32 %v624, 0.2
      %v871 = vmul.f32 %v627, 0.2
      %v872 = vmul.f32 %v632, 0.2
      %v873 = vmul.f32 %v635, 0.2
      %v874 = vmul.f32 %v640, 0.2
      %v875 = vmul.f32 %v643, 0.2
      %v876 = vmul.f32 %v648, 0.2
      %v877 = vmul.f32 %v651, 0.2
      %v878 = vmul.f32 %v656, 0.2
      %v879 = vmul.f32 %v659, 0.2
      %v880 = vmul.f32 %v664, 0.2
      %v881 = vmul.f32 %v667, 0.2
      %v882 = vmul.f32 %v672, 0.2
      %v883 = vmul.f32 %v675, 0.2
      %v884 = vmul.f32 %v680, 0.2
      %v885 = vmul.f32 %v683, 0.2
      %v886 = vmul.f32 %v688, 0.2
      %v887 = vmul.f32 %v691, 0.2
      %v888 = vmul.f32 %v696, 0.2
      %v889 = vmul.f32 %v699, 0.2
      %v890 = vmul.f32 %v704, 0.2
      %v891 = vmul.f32 %v707, 0.2
      %v892 = vmul.f32 %v712, 0.2
      %v893 = vmul.f32 %v715, 0.2
      %v894 = vmul.f32 %v720, 0.2
      %v895 = vmul.f32 %v723, 0.2
      %v896 = vmul.f32 %v728, 0.2
      %v897 = vmul.f32 %v731, 0.2
      %v898 = vmul.f32 %v736, 0.2
      %v899 = vmul.f32 %v739, 0.2
      %v900 = vmul.f32 %v744, 0.2
      %v901 = vmul.f32 %v747, 0.2
      %v902 = vmul.f32 %v752, 0.2
      %v903 = vmul.f32 %v755, 0.2
      %v904 = vmul.f32 %v760, 0.2
      %v905 = vmul.f32 %v763, 0.2
      %v906 = vmul.f32 %v768, 0.2
      %v907 = vmul.f32 %v771, 0.2
      %v908 = vmul.f32 %v776, 0.2
      %v909 = vmul.f32 %v779, 0.2
      %v910 = vsel %vm782, %v528, %v846
      %v911 = vsel %vm783, %v531, %v847
      %v912 = vsel %vm784, %v536, %v848
      %v913 = vsel %vm785, %v539, %v849
      %v914 = vsel %vm786, %v544, %v850
      %v915 = vsel %vm787, %v547, %v851
      %v916 = vsel %vm788, %v552, %v852
      %v917 = vsel %vm789, %v555, %v853
      %v918 = vsel %vm790, %v560, %v854
      %v919 = vsel %vm791, %v563, %v855
      %v920 = vsel %vm792, %v568, %v856
      %v921 = vsel %vm793, %v571, %v857
      %v922 = vsel %vm794, %v576, %v858
      %v923 = vsel %vm795, %v579, %v859
      %v924 = vsel %vm796, %v584, %v860
      %v925 = vsel %vm797, %v587, %v861
      %v926 = vsel %vm798, %v592, %v862
      %v927 = vsel %vm799, %v595, %v863
      %v928 = vsel %vm800, %v600, %v864
      %v929 = vsel %vm801, %v603, %v865
      %v930 = vsel %vm802, %v608, %v866
      %v931 = vsel %vm803, %v611, %v867
      %v932 = vsel %vm804, %v616, %v868
      %v933 = vsel %vm805, %v619, %v869
      %v934 = vsel %vm806, %v624, %v870
      %v935 = vsel %vm807, %v627, %v871
      %v936 = vsel %vm808, %v632, %v872
      %v937 = vsel %vm809, %v635, %v873
      %v938 = vsel %vm810, %v640, %v874
      %v939 = vsel %vm811, %v643, %v875
      %v940 = vsel %vm812, %v648, %v876
      %v941 = vsel %vm813, %v651, %v877
      %v942 = vsel %vm814, %v656, %v878
      %v943 = vsel %vm815, %v659, %v879
      %v944 = vsel %vm816, %v664, %v880
      %v945 = vsel %vm817, %v667, %v881
      %v946 = vsel %vm818, %v672, %v882
      %v947 = vsel %vm819, %v675, %v883
      %v948 = vsel %vm820, %v680, %v884
      %v949 = vsel %vm821, %v683, %v885
      %v950 = vsel %vm822, %v688, %v886
      %v951 = vsel %vm823, %v691, %v887
      %v952 = vsel %vm824, %v696, %v888
      %v953 = vsel %vm825, %v699, %v889
      %v954 = vsel %vm826, %v704, %v890
      %v955 = vsel %vm827, %v707, %v891
      %v956 = vsel %vm828, %v712, %v892
      %v957 = vsel %vm829, %v715, %v893
      %v958 = vsel %vm830, %v720, %v894
      %v959 = vsel %vm831, %v723, %v895
      %v960 = vsel %vm832, %v728, %v896
      %v961 = vsel %vm833, %v731, %v897
      %v962 = vsel %vm834, %v736, %v898
      %v963 = vsel %vm835, %v739, %v899
      %v964 = vsel %vm836, %v744, %v900
      %v965 = vsel %vm837, %v747, %v901
      %v966 = vsel %vm838, %v752, %v902
      %v967 = vsel %vm839, %v755, %v903
      %v968 = vsel %vm840, %v760, %v904
      %v969 = vsel %vm841, %v763, %v905
      %v970 = vsel %vm842, %v768, %v906
      %v971 = vsel %vm843, %v771, %v907
      %v972 = vsel %vm844, %v776, %v908
      %v973 = vsel %vm845, %v779, %v909
      %v974 = vpack.c.bf16 %v911, %v910
      %v975 = vpack.c.bf16 %v913, %v912
      %v976 = vpack.c.bf16 %v915, %v914
      %v977 = vpack.c.bf16 %v917, %v916
      %v978 = vpack.c.bf16 %v919, %v918
      %v979 = vpack.c.bf16 %v921, %v920
      %v980 = vpack.c.bf16 %v923, %v922
      %v981 = vpack.c.bf16 %v925, %v924
      %v982 = vpack.c.bf16 %v927, %v926
      %v983 = vpack.c.bf16 %v929, %v928
      %v984 = vpack.c.bf16 %v931, %v930
      %v985 = vpack.c.bf16 %v933, %v932
      %v986 = vpack.c.bf16 %v935, %v934
      %v987 = vpack.c.bf16 %v937, %v936
      %v988 = vpack.c.bf16 %v939, %v938
      %v989 = vpack.c.bf16 %v941, %v940
      %v990 = vpack.c.bf16 %v943, %v942
      %v991 = vpack.c.bf16 %v945, %v944
      %v992 = vpack.c.bf16 %v947, %v946
      %v993 = vpack.c.bf16 %v949, %v948
      %v994 = vpack.c.bf16 %v951, %v950
      %v995 = vpack.c.bf16 %v953, %v952
      %v996 = vpack.c.bf16 %v955, %v954
      %v997 = vpack.c.bf16 %v957, %v956
      %v998 = vpack.c.bf16 %v959, %v958
      %v999 = vpack.c.bf16 %v961, %v960
      %v1000 = vpack.c.bf16 %v963, %v962
      %v1001 = vpack.c.bf16 %v965, %v964
      %v1002 = vpack.c.bf16 %v967, %v966
      %v1003 = vpack.c.bf16 %v969, %v968
      %v1004 = vpack.c.bf16 %v971, %v970
      %v1005 = vpack.c.bf16 %v973, %v972
      %v1038 = vunpack.c.l.b16 %v974
      %v1039 = vunpack.c.h.b16 %v974
      %v1040 = vunpack.c.l.b16 %v975
      %v1041 = vunpack.c.h.b16 %v975
      %v1042 = vunpack.c.l.b16 %v976
      %v1043 = vunpack.c.h.b16 %v976
      %v1044 = vunpack.c.l.b16 %v977
      %v1045 = vunpack.c.h.b16 %v977
      %v1046 = vunpack.c.l.b16 %v978
      %v1047 = vunpack.c.h.b16 %v978
      %v1048 = vunpack.c.l.b16 %v979
      %v1049 = vunpack.c.h.b16 %v979
      %v1050 = vunpack.c.l.b16 %v980
      %v1051 = vunpack.c.h.b16 %v980
      %v1052 = vunpack.c.l.b16 %v981
      %v1053 = vunpack.c.h.b16 %v981
      %v1054 = vunpack.c.l.b16 %v982
      %v1055 = vunpack.c.h.b16 %v982
      %v1056 = vunpack.c.l.b16 %v983
      %v1057 = vunpack.c.h.b16 %v983
      %v1058 = vunpack.c.l.b16 %v984
      %v1059 = vunpack.c.h.b16 %v984
      %v1060 = vunpack.c.l.b16 %v985
      %v1061 = vunpack.c.h.b16 %v985
      %v1062 = vunpack.c.l.b16 %v986
      %v1063 = vunpack.c.h.b16 %v986
      %v1064 = vunpack.c.l.b16 %v987
      %v1065 = vunpack.c.h.b16 %v987
      %v1066 = vunpack.c.l.b16 %v988
      %v1067 = vunpack.c.h.b16 %v988
      %v1068 = vunpack.c.l.b16 %v989
      %v1069 = vunpack.c.h.b16 %v989
      %v1070 = vunpack.c.l.b16 %v990
      %v1071 = vunpack.c.h.b16 %v990
      %v1072 = vunpack.c.l.b16 %v991
      %v1073 = vunpack.c.h.b16 %v991
      %v1074 = vunpack.c.l.b16 %v992
      %v1075 = vunpack.c.h.b16 %v992
      %v1076 = vunpack.c.l.b16 %v993
      %v1077 = vunpack.c.h.b16 %v993
      %v1078 = vunpack.c.l.b16 %v994
      %v1079 = vunpack.c.h.b16 %v994
      %v1080 = vunpack.c.l.b16 %v995
      %v1081 = vunpack.c.h.b16 %v995
      %v1082 = vunpack.c.l.b16 %v996
      %v1083 = vunpack.c.h.b16 %v996
      %v1084 = vunpack.c.l.b16 %v997
      %v1085 = vunpack.c.h.b16 %v997
      %v1086 = vunpack.c.l.b16 %v998
      %v1087 = vunpack.c.h.b16 %v998
      %v1088 = vunpack.c.l.b16 %v999
      %v1089 = vunpack.c.h.b16 %v999
      %v1090 = vunpack.c.l.b16 %v1000
      %v1091 = vunpack.c.h.b16 %v1000
      %v1092 = vunpack.c.l.b16 %v1001
      %v1093 = vunpack.c.h.b16 %v1001
      %v1094 = vunpack.c.l.b16 %v1002
      %v1095 = vunpack.c.h.b16 %v1002
      %v1096 = vunpack.c.l.b16 %v1003
      %v1097 = vunpack.c.h.b16 %v1003
      %v1098 = vunpack.c.l.b16 %v1004
      %v1099 = vunpack.c.h.b16 %v1004
      %v1100 = vunpack.c.l.b16 %v1005
      %v1101 = vunpack.c.h.b16 %v1005
      %v1102 = vpack.c.b16 %v1038, %v1038
      %v1103 = vpack.c.b16 %v1039, %v1039
      %v1104 = vpack.c.b16 %v1040, %v1040
      %v1105 = vpack.c.b16 %v1041, %v1041
      %v1106 = vpack.c.b16 %v1042, %v1042
      %v1107 = vpack.c.b16 %v1043, %v1043
      %v1108 = vpack.c.b16 %v1044, %v1044
      %v1109 = vpack.c.b16 %v1045, %v1045
      %v1110 = vpack.c.b16 %v1046, %v1046
      %v1111 = vpack.c.b16 %v1047, %v1047
      %v1112 = vpack.c.b16 %v1048, %v1048
      %v1113 = vpack.c.b16 %v1049, %v1049
      %v1114 = vpack.c.b16 %v1050, %v1050
      %v1115 = vpack.c.b16 %v1051, %v1051
      %v1116 = vpack.c.b16 %v1052, %v1052
      %v1117 = vpack.c.b16 %v1053, %v1053
      %v1118 = vpack.c.b16 %v1054, %v1054
      %v1119 = vpack.c.b16 %v1055, %v1055
      %v1120 = vpack.c.b16 %v1056, %v1056
      %v1121 = vpack.c.b16 %v1057, %v1057
      %v1122 = vpack.c.b16 %v1058, %v1058
      %v1123 = vpack.c.b16 %v1059, %v1059
      %v1124 = vpack.c.b16 %v1060, %v1060
      %v1125 = vpack.c.b16 %v1061, %v1061
      %v1126 = vpack.c.b16 %v1062, %v1062
      %v1127 = vpack.c.b16 %v1063, %v1063
      %v1128 = vpack.c.b16 %v1064, %v1064
      %v1129 = vpack.c.b16 %v1065, %v1065
      %v1130 = vpack.c.b16 %v1066, %v1066
      %v1131 = vpack.c.b16 %v1067, %v1067
      %v1132 = vpack.c.b16 %v1068, %v1068
      %v1133 = vpack.c.b16 %v1069, %v1069
      %v1134 = vpack.c.b16 %v1070, %v1070
      %v1135 = vpack.c.b16 %v1071, %v1071
      %v1136 = vpack.c.b16 %v1072, %v1072
      %v1137 = vpack.c.b16 %v1073, %v1073
      %v1138 = vpack.c.b16 %v1074, %v1074
      %v1139 = vpack.c.b16 %v1075, %v1075
      %v1140 = vpack.c.b16 %v1076, %v1076
      %v1141 = vpack.c.b16 %v1077, %v1077
      %v1142 = vpack.c.b16 %v1078, %v1078
      %v1143 = vpack.c.b16 %v1079, %v1079
      %v1144 = vpack.c.b16 %v1080, %v1080
      %v1145 = vpack.c.b16 %v1081, %v1081
      %v1146 = vpack.c.b16 %v1082, %v1082
      %v1147 = vpack.c.b16 %v1083, %v1083
      %v1148 = vpack.c.b16 %v1084, %v1084
      %v1149 = vpack.c.b16 %v1085, %v1085
      %v1150 = vpack.c.b16 %v1086, %v1086
      %v1151 = vpack.c.b16 %v1087, %v1087
      %v1152 = vpack.c.b16 %v1088, %v1088
      %v1153 = vpack.c.b16 %v1089, %v1089
      %v1154 = vpack.c.b16 %v1090, %v1090
      %v1155 = vpack.c.b16 %v1091, %v1091
      %v1156 = vpack.c.b16 %v1092, %v1092
      %v1157 = vpack.c.b16 %v1093, %v1093
      %v1158 = vpack.c.b16 %v1094, %v1094
      %v1159 = vpack.c.b16 %v1095, %v1095
      %v1160 = vpack.c.b16 %v1096, %v1096
      %v1161 = vpack.c.b16 %v1097, %v1097
      %v1162 = vpack.c.b16 %v1098, %v1098
      %v1163 = vpack.c.b16 %v1099, %v1099
      %v1164 = vpack.c.b16 %v1100, %v1100
      %v1165 = vpack.c.b16 %v1101, %v1101
      %1230 = vst [vmem:[%s145] sm:$0xf] %v1102
      %1231 = vst [vmem:[%s145 + $0x4] sm:$0xf] %v1103
      %1232 = vst [vmem:[%s145 + $0x8] sm:$0xf] %v1104
      %1233 = vst [vmem:[%s145 + $0xc] sm:$0xf] %v1105
      %1234 = vst [vmem:[%s145 + $0x10] sm:$0xf] %v1106
      %1235 = vst [vmem:[%s145 + $0x14] sm:$0xf] %v1107
      %1236 = vst [vmem:[%s145 + $0x18] sm:$0xf] %v1108
      %1237 = vst [vmem:[%s145 + $0x1c] sm:$0xf] %v1109
      %1238 = vst [vmem:[%s145 + $0x20] sm:$0xf] %v1110
      %1239 = vst [vmem:[%s145 + $0x24] sm:$0xf] %v1111
      %1240 = vst [vmem:[%s145 + $0x28] sm:$0xf] %v1112
      %1241 = vst [vmem:[%s145 + $0x2c] sm:$0xf] %v1113
      %1242 = vst [vmem:[%s145 + $0x30] sm:$0xf] %v1114
      %1243 = vst [vmem:[%s145 + $0x34] sm:$0xf] %v1115
      %1244 = vst [vmem:[%s145 + $0x38] sm:$0xf] %v1116
      %1245 = vst [vmem:[%s145 + $0x3c] sm:$0xf] %v1117
      %1246 = vst [vmem:[%s145 + $0x40] sm:$0xf] %v1118
      %1247 = vst [vmem:[%s145 + $0x44] sm:$0xf] %v1119
      %1248 = vst [vmem:[%s145 + $0x48] sm:$0xf] %v1120
      %1249 = vst [vmem:[%s145 + $0x4c] sm:$0xf] %v1121
      %1250 = vst [vmem:[%s145 + $0x50] sm:$0xf] %v1122
      %1251 = vst [vmem:[%s145 + $0x54] sm:$0xf] %v1123
      %1252 = vst [vmem:[%s145 + $0x58] sm:$0xf] %v1124
      %1253 = vst [vmem:[%s145 + $0x5c] sm:$0xf] %v1125
      %1254 = vst [vmem:[%s145 + $0x60] sm:$0xf] %v1126
      %1255 = vst [vmem:[%s145 + $0x64] sm:$0xf] %v1127
      %1256 = vst [vmem:[%s145 + $0x68] sm:$0xf] %v1128
      %1257 = vst [vmem:[%s145 + $0x6c] sm:$0xf] %v1129
      %1258 = vst [vmem:[%s145 + $0x70] sm:$0xf] %v1130
      %1259 = vst [vmem:[%s145 + $0x74] sm:$0xf] %v1131
      %1260 = vst [vmem:[%s145 + $0x78] sm:$0xf] %v1132
      %1261 = vst [vmem:[%s145 + $0x7c] sm:$0xf] %v1133
      %1262 = vst [vmem:[%s145 + $0x80] sm:$0xf] %v1134
      %1263 = vst [vmem:[%s145 + $0x84] sm:$0xf] %v1135
      %1264 = vst [vmem:[%s145 + $0x88] sm:$0xf] %v1136
      %1265 = vst [vmem:[%s145 + $0x8c] sm:$0xf] %v1137
      %1266 = vst [vmem:[%s145 + $0x90] sm:$0xf] %v1138
      %1267 = vst [vmem:[%s145 + $0x94] sm:$0xf] %v1139
      %1268 = vst [vmem:[%s145 + $0x98] sm:$0xf] %v1140
      %1269 = vst [vmem:[%s145 + $0x9c] sm:$0xf] %v1141
      %1270 = vst [vmem:[%s145 + $0xa0] sm:$0xf] %v1142
      %1271 = vst [vmem:[%s145 + $0xa4] sm:$0xf] %v1143
      %1272 = vst [vmem:[%s145 + $0xa8] sm:$0xf] %v1144
      %1273 = vst [vmem:[%s145 + $0xac] sm:$0xf] %v1145
      %1274 = vst [vmem:[%s145 + $0xb0] sm:$0xf] %v1146
      %1275 = vst [vmem:[%s145 + $0xb4] sm:$0xf] %v1147
      %1276 = vst [vmem:[%s145 + $0xb8] sm:$0xf] %v1148
      %1277 = vst [vmem:[%s145 + $0xbc] sm:$0xf] %v1149
      %1278 = vst [vmem:[%s145 + $0xc0] sm:$0xf] %v1150
      %1279 = vst [vmem:[%s145 + $0xc4] sm:$0xf] %v1151
      %1280 = vst [vmem:[%s145 + $0xc8] sm:$0xf] %v1152
      %1281 = vst [vmem:[%s145 + $0xcc] sm:$0xf] %v1153
      %1282 = vst [vmem:[%s145 + $0xd0] sm:$0xf] %v1154
      %1283 = vst [vmem:[%s145 + $0xd4] sm:$0xf] %v1155
      %1284 = vst [vmem:[%s145 + $0xd8] sm:$0xf] %v1156
      %1285 = vst [vmem:[%s145 + $0xdc] sm:$0xf] %v1157
      %1286 = vst [vmem:[%s145 + $0xe0] sm:$0xf] %v1158
      %1287 = vst [vmem:[%s145 + $0xe4] sm:$0xf] %v1159
      %1288 = vst [vmem:[%s145 + $0xe8] sm:$0xf] %v1160
      %1289 = vst [vmem:[%s145 + $0xec] sm:$0xf] %v1161
      %1290 = vst [vmem:[%s145 + $0xf0] sm:$0xf] %v1162
      %1291 = vst [vmem:[%s145 + $0xf4] sm:$0xf] %v1163
      %1292 = vst [vmem:[%s145 + $0xf8] sm:$0xf] %v1164
      %1293 = vst [vmem:[%s145 + $0xfc] sm:$0xf] %v1165
      %s1294 = smul.u32 64, %s13
      %p1295 = scmp.lt.s32.totalorder %s1294, 255
      %s1296 = scalar_select %p1295, %s1294, 255
      %s1297 = smul.addr %s1296, 4
      %s1298 = scalar_lea.vmem %s2, %s1297
      // Predicated region
      $region29: #{discriminator_forward.8} parent=27 // pred_check
        %p1299 = pneg %p78
      $region30: #{discriminator_forward.8} parent=27 // pred_check_branch
        %1301 = sbr.rel (%p1299) target = $region32
      $region31: #{discriminator_forward.8} parent=27 // pred_region
        %s1302 = smul.u32 64, %s13
      $region32: #{discriminator_forward.8} parent=27 // pred_fallthru
        _
    $region28: #{discriminator_forward.8} parent=5 // pred_fallthru
      _
    %p1303 = scmp.le.s32.totalorder 2, %s8
    // Predicated region
    $region33: #{discriminator_forward.8} parent=5 // pred_check
      %p1304 = pneg %p1303
    $region34: #{discriminator_forward.8} parent=5 // pred_check_branch
      %1306 = sbr.rel (%p1304) target = $region36
    $region35: #{discriminator_forward.8} parent=5 // pred_region
      %s1307 = ssub.s32 %s8, 2
      // Predicated region
      $region37: #{discriminator_forward.8} parent=35 // pred_check
        %p1308 = pneg %p84
      $region38: #{discriminator_forward.8} parent=35 // pred_check_branch
        %1310 = sbr.rel (%p1308) target = $region40
      $region39: #{discriminator_forward.8} parent=35 // pred_region
        %s1311 = smul.u32 64, %s14
        %p1312 = scmp.lt.s32.totalorder %s1311, 255
        %s1313 = scalar_select %p1312, %s1311, 255
        %s1314 = smul.addr %s1313, 4
        %s1315 = scalar_lea.vmem %s2, %s1314
      $region40: #{discriminator_forward.8} parent=35 // pred_fallthru
        _
    $region36: #{discriminator_forward.8} parent=5 // pred_fallthru
      _
  $region6: #{discriminator_forward.8} parent=0 // loop_footer
    %s12 = sadd.s32 1, %s8
  $region7: #{discriminator_forward.8} parent=0 // loop_footer_branch
    %7 = sbr.rel target = $region3
  $region8: #{discriminator_forward.8} parent=0 // loop_exit
    _

// kernel: discriminator_forward.9
$region0: #{discriminator_forward.9}
  #allocation0 [shape = 'u32[]', space=smem, size = 0x4, offset = 0x4, fixed_abs, tag = 'smem constant byte address 0x4 - core index']
  #allocation1 [shape = 'u32[144,128]{1,0:T(1,128)}', space=vmem, size = 0x12000, scoped, tag = 'internal scratch']
  %s0 = inlined_call_operand.vmem [shape: bf16[512,128], index: 0, kind: input, shape index: {}]
  %s1 = inlined_call_operand.vmem [shape: bf16[128,128], index: 1, kind: input, shape index: {}]
  %s2 = inlined_call_operand.vmem [shape: f32[512,128], index: 2, kind: output, shape index: {0}]
  %s3 = inlined_call_operand.vmem [shape: f32[2,128], index: 3, kind: output, shape index: {1}]
  %4 = xla_tuple %s2, %s3
  %s5 = sld [smem:[#allocation0]]
  $region30: #{discriminator_forward.9} parent=0
    _
  %s7 = ssub.s32 1, %s5
  %s8 = scalar_select 0, %s7, %s5
  // Predicated region
  $region2: #{discriminator_forward.9} parent=0 // pred_check
    _
  $region3: #{discriminator_forward.9} parent=0 // pred_check_branch
    %10 = sbr.rel (0) target = $region5
  $region4: #{discriminator_forward.9} parent=0 // pred_region
    _
  $region5: #{discriminator_forward.9} parent=0 // pred_fallthru
    _
  // Predicated region
  $region6: #{discriminator_forward.9} parent=0 // pred_check
    _
  $region7: #{discriminator_forward.9} parent=0 // pred_check_branch
    %12 = sbr.rel (0) target = $region9
  $region8: #{discriminator_forward.9} parent=0 // pred_region
    _
  $region9: #{discriminator_forward.9} parent=0 // pred_fallthru
    _
  %v14 = vld [vmem:[%s0] sm:$0xf]
  %v15 = vld [vmem:[%s0 + $0x4] sm:$0xf]
  %v16 = vld [vmem:[%s0 + $0x8] sm:$0xf]
  %v17 = vld [vmem:[%s0 + $0xc] sm:$0xf]
  %v18 = vld [vmem:[%s0 + $0x10] sm:$0xf]
  %v19 = vld [vmem:[%s0 + $0x14] sm:$0xf]
  %v20 = vld [vmem:[%s0 + $0x18] sm:$0xf]
  %v21 = vld [vmem:[%s0 + $0x1c] sm:$0xf]
  %v22 = vld [vmem:[%s0 + $0x20] sm:$0xf]
  %v23 = vld [vmem:[%s0 + $0x24] sm:$0xf]
  %v24 = vld [vmem:[%s0 + $0x28] sm:$0xf]
  %v25 = vld [vmem:[%s0 + $0x2c] sm:$0xf]
  %v26 = vld [vmem:[%s0 + $0x30] sm:$0xf]
  %v27 = vld [vmem:[%s0 + $0x34] sm:$0xf]
  %v28 = vld [vmem:[%s0 + $0x38] sm:$0xf]
  %v29 = vld [vmem:[%s0 + $0x3c] sm:$0xf]
  %v30 = vld [vmem:[%s0 + $0x40] sm:$0xf]
  %v31 = vld [vmem:[%s0 + $0x44] sm:$0xf]
  %v32 = vld [vmem:[%s0 + $0x48] sm:$0xf]
  %v33 = vld [vmem:[%s0 + $0x4c] sm:$0xf]
  %v34 = vld [vmem:[%s0 + $0x50] sm:$0xf]
  %v35 = vld [vmem:[%s0 + $0x54] sm:$0xf]
  %v36 = vld [vmem:[%s0 + $0x58] sm:$0xf]
  %v37 = vld [vmem:[%s0 + $0x5c] sm:$0xf]
  %v38 = vld [vmem:[%s0 + $0x60] sm:$0xf]
  %v39 = vld [vmem:[%s0 + $0x64] sm:$0xf]
  %v40 = vld [vmem:[%s0 + $0x68] sm:$0xf]
  %v41 = vld [vmem:[%s0 + $0x6c] sm:$0xf]
  %v42 = vld [vmem:[%s0 + $0x70] sm:$0xf]
  %v43 = vld [vmem:[%s0 + $0x74] sm:$0xf]
  %v44 = vld [vmem:[%s0 + $0x78] sm:$0xf]
  %v45 = vld [vmem:[%s0 + $0x7c] sm:$0xf]
  %v46 = vld [vmem:[%s0 + $0x80] sm:$0xf]
  %v47 = vld [vmem:[%s0 + $0x84] sm:$0xf]
  %v48 = vld [vmem:[%s0 + $0x88] sm:$0xf]
  %v49 = vld [vmem:[%s0 + $0x8c] sm:$0xf]
  %v50 = vld [vmem:[%s0 + $0x90] sm:$0xf]
  %v51 = vld [vmem:[%s0 + $0x94] sm:$0xf]
  %v52 = vld [vmem:[%s0 + $0x98] sm:$0xf]
  %v53 = vld [vmem:[%s0 + $0x9c] sm:$0xf]
  %v54 = vld [vmem:[%s0 + $0xa0] sm:$0xf]
  %v55 = vld [vmem:[%s0 + $0xa4] sm:$0xf]
  %v56 = vld [vmem:[%s0 + $0xa8] sm:$0xf]
  %v57 = vld [vmem:[%s0 + $0xac] sm:$0xf]
  %v58 = vld [vmem:[%s0 + $0xb0] sm:$0xf]
  %v59 = vld [vmem:[%s0 + $0xb4] sm:$0xf]
  %v60 = vld [vmem:[%s0 + $0xb8] sm:$0xf]
  %v61 = vld [vmem:[%s0 + $0xbc] sm:$0xf]
  %v62 = vld [vmem:[%s0 + $0xc0] sm:$0xf]
  %v63 = vld [vmem:[%s0 + $0xc4] sm:$0xf]
  %v64 = vld [vmem:[%s0 + $0xc8] sm:$0xf]
  %v65 = vld [vmem:[%s0 + $0xcc] sm:$0xf]
  %v66 = vld [vmem:[%s0 + $0xd0] sm:$0xf]
  %v67 = vld [vmem:[%s0 + $0xd4] sm:$0xf]
  %v68 = vld [vmem:[%s0 + $0xd8] sm:$0xf]
  %v69 = vld [vmem:[%s0 + $0xdc] sm:$0xf]
  %v70 = vld [vmem:[%s0 + $0xe0] sm:$0xf]
  %v71 = vld [vmem:[%s0 + $0xe4] sm:$0xf]
  %v72 = vld [vmem:[%s0 + $0xe8] sm:$0xf]
  %v73 = vld [vmem:[%s0 + $0xec] sm:$0xf]
  %v74 = vld [vmem:[%s0 + $0xf0] sm:$0xf]
  %v75 = vld [vmem:[%s0 + $0xf4] sm:$0xf]
  %v76 = vld [vmem:[%s0 + $0xf8] sm:$0xf]
  %v77 = vld [vmem:[%s0 + $0xfc] sm:$0xf]
  %v78 = vld [vmem:[%s1] sm:$0xf]
  %v79 = vld [vmem:[%s1 + $0x4] sm:$0xf]
  %v80 = vld [vmem:[%s1 + $0x8] sm:$0xf]
  %v81 = vld [vmem:[%s1 + $0xc] sm:$0xf]
  %v82 = vld [vmem:[%s1 + $0x10] sm:$0xf]
  %v83 = vld [vmem:[%s1 + $0x14] sm:$0xf]
  %v84 = vld [vmem:[%s1 + $0x18] sm:$0xf]
  %v85 = vld [vmem:[%s1 + $0x1c] sm:$0xf]
  %v86 = vld [vmem:[%s1 + $0x20] sm:$0xf]
  %v87 = vld [vmem:[%s1 + $0x24] sm:$0xf]
  %v88 = vld [vmem:[%s1 + $0x28] sm:$0xf]
  %v89 = vld [vmem:[%s1 + $0x2c] sm:$0xf]
  %v90 = vld [vmem:[%s1 + $0x30] sm:$0xf]
  %v91 = vld [vmem:[%s1 + $0x34] sm:$0xf]
  %v92 = vld [vmem:[%s1 + $0x38] sm:$0xf]
  %v93 = vld [vmem:[%s1 + $0x3c] sm:$0xf]
  %v158 = vunpack.c.l.b16 %v14
  %v159 = vunpack.c.l.b16 %v15
  %v160 = vunpack.c.l.b16 %v16
  %v161 = vunpack.c.l.b16 %v17
  %v162 = vunpack.c.l.b16 %v18
  %v163 = vunpack.c.l.b16 %v19
  %v164 = vunpack.c.l.b16 %v20
  %v165 = vunpack.c.l.b16 %v21
  %v166 = vunpack.c.l.b16 %v22
  %v167 = vunpack.c.l.b16 %v23
  %v168 = vunpack.c.l.b16 %v24
  %v169 = vunpack.c.l.b16 %v25
  %v170 = vunpack.c.l.b16 %v26
  %v171 = vunpack.c.l.b16 %v27
  %v172 = vunpack.c.l.b16 %v28
  %v173 = vunpack.c.l.b16 %v29
  %v174 = vunpack.c.l.b16 %v30
  %v175 = vunpack.c.l.b16 %v31
  %v176 = vunpack.c.l.b16 %v32
  %v177 = vunpack.c.l.b16 %v33
  %v178 = vunpack.c.l.b16 %v34
  %v179 = vunpack.c.l.b16 %v35
  %v180 = vunpack.c.l.b16 %v36
  %v181 = vunpack.c.l.b16 %v37
  %v182 = vunpack.c.l.b16 %v38
  %v183 = vunpack.c.l.b16 %v39
  %v184 = vunpack.c.l.b16 %v40
  %v185 = vunpack.c.l.b16 %v41
  %v186 = vunpack.c.l.b16 %v42
  %v187 = vunpack.c.l.b16 %v43
  %v188 = vunpack.c.l.b16 %v44
  %v189 = vunpack.c.l.b16 %v45
  %v190 = vunpack.c.l.b16 %v46
  %v191 = vunpack.c.l.b16 %v47
  %v192 = vunpack.c.l.b16 %v48
  %v193 = vunpack.c.l.b16 %v49
  %v194 = vunpack.c.l.b16 %v50
  %v195 = vunpack.c.l.b16 %v51
  %v196 = vunpack.c.l.b16 %v52
  %v197 = vunpack.c.l.b16 %v53
  %v198 = vunpack.c.l.b16 %v54
  %v199 = vunpack.c.l.b16 %v55
  %v200 = vunpack.c.l.b16 %v56
  %v201 = vunpack.c.l.b16 %v57
  %v202 = vunpack.c.l.b16 %v58
  %v203 = vunpack.c.l.b16 %v59
  %v204 = vunpack.c.l.b16 %v60
  %v205 = vunpack.c.l.b16 %v61
  %v206 = vunpack.c.l.b16 %v62
  %v207 = vunpack.c.l.b16 %v63
  %v208 = vunpack.c.l.b16 %v64
  %v209 = vunpack.c.l.b16 %v65
  %v210 = vunpack.c.l.b16 %v66
  %v211 = vunpack.c.l.b16 %v67
  %v212 = vunpack.c.l.b16 %v68
  %v213 = vunpack.c.l.b16 %v69
  %v214 = vunpack.c.l.b16 %v70
  %v215 = vunpack.c.l.b16 %v71
  %v216 = vunpack.c.l.b16 %v72
  %v217 = vunpack.c.l.b16 %v73
  %v218 = vunpack.c.l.b16 %v74
  %v219 = vunpack.c.l.b16 %v75
  %v220 = vunpack.c.l.b16 %v76
  %v221 = vunpack.c.l.b16 %v77
  %v222 = vpack.c.b16 %v159, %v158
  %v223 = vpack.c.b16 %v161, %v160
  %v224 = vpack.c.b16 %v163, %v162
  %v225 = vpack.c.b16 %v165, %v164
  %v226 = vpack.c.b16 %v167, %v166
  %v227 = vpack.c.b16 %v169, %v168
  %v228 = vpack.c.b16 %v171, %v170
  %v229 = vpack.c.b16 %v173, %v172
  %v230 = vpack.c.b16 %v175, %v174
  %v231 = vpack.c.b16 %v177, %v176
  %v232 = vpack.c.b16 %v179, %v178
  %v233 = vpack.c.b16 %v181, %v180
  %v234 = vpack.c.b16 %v183, %v182
  %v235 = vpack.c.b16 %v185, %v184
  %v236 = vpack.c.b16 %v187, %v186
  %v237 = vpack.c.b16 %v189, %v188
  %v238 = vpack.c.b16 %v191, %v190
  %v239 = vpack.c.b16 %v193, %v192
  %v240 = vpack.c.b16 %v195, %v194
  %v241 = vpack.c.b16 %v197, %v196
  %v242 = vpack.c.b16 %v199, %v198
  %v243 = vpack.c.b16 %v201, %v200
  %v244 = vpack.c.b16 %v203, %v202
  %v245 = vpack.c.b16 %v205, %v204
  %v246 = vpack.c.b16 %v207, %v206
  %v247 = vpack.c.b16 %v209, %v208
  %v248 = vpack.c.b16 %v211, %v210
  %v249 = vpack.c.b16 %v213, %v212
  %v250 = vpack.c.b16 %v215, %v214
  %v251 = vpack.c.b16 %v217, %v216
  %v252 = vpack.c.b16 %v219, %v218
  %v253 = vpack.c.b16 %v221, %v220
  %v302 = vunpack.c.l.b16 %v78
  %v303 = vunpack.c.l.b16 %v79
  %v304 = vunpack.c.l.b16 %v80
  %v305 = vunpack.c.l.b16 %v81
  %v306 = vunpack.c.l.b16 %v82
  %v307 = vunpack.c.l.b16 %v83
  %v308 = vunpack.c.l.b16 %v84
  %v309 = vunpack.c.l.b16 %v85
  %v310 = vunpack.c.l.b16 %v86
  %v311 = vunpack.c.l.b16 %v87
  %v312 = vunpack.c.l.b16 %v88
  %v313 = vunpack.c.l.b16 %v89
  %v314 = vunpack.c.l.b16 %v90
  %v315 = vunpack.c.l.b16 %v91
  %v316 = vunpack.c.l.b16 %v92
  %v317 = vunpack.c.l.b16 %v93
  %v318 = vpack.c.b16 %v303, %v302
  %v319 = vpack.c.b16 %v305, %v304
  %v320 = vpack.c.b16 %v307, %v306
  %v321 = vpack.c.b16 %v309, %v308
  %v322 = vpack.c.b16 %v311, %v310
  %v323 = vpack.c.b16 %v313, %v312
  %v324 = vpack.c.b16 %v315, %v314
  %v325 = vpack.c.b16 %v317, %v316
  %334 = vmatprep.subr.bf16.mxu0 0
  %335 = vmatpush1.bf16.msra.mxu0 %v325
  %336 = vmatprep.subr.bf16.mxu0 0
  %337 = vmatpush1.bf16.msra.mxu0 %v324
  %338 = vmatprep.subr.bf16.mxu0 0
  %339 = vmatpush1.bf16.msra.mxu0 %v323
  %340 = vmatprep.subr.bf16.mxu0 0
  %341 = vmatpush1.bf16.msra.mxu0 %v322
  %342 = vmatprep.subr.bf16.mxu0 0
  %343 = vmatpush1.bf16.msra.mxu0 %v321
  %344 = vmatprep.subr.bf16.mxu0 0
  %345 = vmatpush1.bf16.msra.mxu0 %v320
  %346 = vmatprep.subr.bf16.mxu0 0
  %347 = vmatpush1.bf16.msra.mxu0 %v319
  %348 = vmatprep.subr.bf16.mxu0 0
  %349 = vmatpush1.bf16.msra.mxu0 %v318
  %350 = vmatprep.subr.bf16.mxu0 0
  %351 = vmatpush2.bf16.msra.mxu0 0
  %352 = vmatprep.subr.bf16.mxu0 0
  %353 = vmatpush2.bf16.msra.mxu0 0
  %354 = vmatprep.subr.bf16.mxu0 0
  %355 = vmatpush2.bf16.msra.mxu0 0
  %356 = vmatprep.subr.bf16.mxu0 0
  %357 = vmatpush2.bf16.msra.mxu0 0
  %358 = vmatprep.subr.bf16.mxu0 0
  %359 = vmatpush2.bf16.msra.mxu0 0
  %360 = vmatprep.subr.bf16.mxu0 0
  %361 = vmatpush2.bf16.msra.mxu0 0
  %362 = vmatprep.subr.bf16.mxu0 0
  %363 = vmatpush2.bf16.msra.mxu0 0
  %364 = vmatprep.subr.bf16.mxu0 0
  %365 = vmatpush2.bf16.msra.mxu0 0
  %366 = vmatprep.mubr.bf16.mxu0 0
  %367 = vmatmul.mubr.bf16.gmra.mxu0 %v222
  %v368 = vpop.f32.mrf.mxu0
  %v369 = vadd.f32 0.0, %v368
  %v370 = vpop.f32.mrf.mxu0
  %v371 = vpop.f32.mrf.mxu0
  %v372 = vadd.f32 0.0, %v371
  %v373 = vpop.f32.mrf.mxu0
  %374 = vmatprep.mubr.bf16.mxu0 0
  %375 = vmatmul.mubr.bf16.gmra.mxu0 %v223
  %v376 = vpop.f32.mrf.mxu0
  %v377 = vadd.f32 0.0, %v376
  %v378 = vpop.f32.mrf.mxu0
  %v379 = vpop.f32.mrf.mxu0
  %v380 = vadd.f32 0.0, %v379
  %v381 = vpop.f32.mrf.mxu0
  %382 = vmatprep.mubr.bf16.mxu0 0
  %383 = vmatmul.mubr.bf16.gmra.mxu0 %v224
  %v384 = vpop.f32.mrf.mxu0
  %v385 = vadd.f32 0.0, %v384
  %v386 = vpop.f32.mrf.mxu0
  %v387 = vpop.f32.mrf.mxu0
  %v388 = vadd.f32 0.0, %v387
  %v389 = vpop.f32.mrf.mxu0
  %390 = vmatprep.mubr.bf16.mxu0 0
  %391 = vmatmul.mubr.bf16.gmra.mxu0 %v225
  %v392 = vpop.f32.mrf.mxu0
  %v393 = vadd.f32 0.0, %v392
  %v394 = vpop.f32.mrf.mxu0
  %v395 = vpop.f32.mrf.mxu0
  %v396 = vadd.f32 0.0, %v395
  %v397 = vpop.f32.mrf.mxu0
  %398 = vmatprep.mubr.bf16.mxu0 0
  %399 = vmatmul.mubr.bf16.gmra.mxu0 %v226
  %v400 = vpop.f32.mrf.mxu0
  %v401 = vadd.f32 0.0, %v400
  %v402 = vpop.f32.mrf.mxu0
  %v403 = vpop.f32.mrf.mxu0
  %v404 = vadd.f32 0.0, %v403
  %v405 = vpop.f32.mrf.mxu0
  %406 = vmatprep.mubr.bf16.mxu0 0
  %407 = vmatmul.mubr.bf16.gmra.mxu0 %v227
  %v408 = vpop.f32.mrf.mxu0
  %v409 = vadd.f32 0.0, %v408
  %v410 = vpop.f32.mrf.mxu0
  %v411 = vpop.f32.mrf.mxu0
  %v412 = vadd.f32 0.0, %v411
  %v413 = vpop.f32.mrf.mxu0
  %414 = vmatprep.mubr.bf16.mxu0 0
  %415 = vmatmul.mubr.bf16.gmra.mxu0 %v228
  %v416 = vpop.f32.mrf.mxu0
  %v417 = vadd.f32 0.0, %v416
  %v418 = vpop.f32.mrf.mxu0
  %v419 = vpop.f32.mrf.mxu0
  %v420 = vadd.f32 0.0, %v419
  %v421 = vpop.f32.mrf.mxu0
  %422 = vmatprep.mubr.bf16.mxu0 0
  %423 = vmatmul.mubr.bf16.gmra.mxu0 %v229
  %v424 = vpop.f32.mrf.mxu0
  %v425 = vadd.f32 0.0, %v424
  %v426 = vpop.f32.mrf.mxu0
  %v427 = vpop.f32.mrf.mxu0
  %v428 = vadd.f32 0.0, %v427
  %v429 = vpop.f32.mrf.mxu0
  %430 = vmatprep.mubr.bf16.mxu0 0
  %431 = vmatmul.mubr.bf16.gmra.mxu0 %v230
  %v432 = vpop.f32.mrf.mxu0
  %v433 = vadd.f32 0.0, %v432
  %v434 = vpop.f32.mrf.mxu0
  %v435 = vpop.f32.mrf.mxu0
  %v436 = vadd.f32 0.0, %v435
  %v437 = vpop.f32.mrf.mxu0
  %438 = vmatprep.mubr.bf16.mxu0 0
  %439 = vmatmul.mubr.bf16.gmra.mxu0 %v231
  %v440 = vpop.f32.mrf.mxu0
  %v441 = vadd.f32 0.0, %v440
  %v442 = vpop.f32.mrf.mxu0
  %v443 = vpop.f32.mrf.mxu0
  %v444 = vadd.f32 0.0, %v443
  %v445 = vpop.f32.mrf.mxu0
  %446 = vmatprep.mubr.bf16.mxu0 0
  %447 = vmatmul.mubr.bf16.gmra.mxu0 %v232
  %v448 = vpop.f32.mrf.mxu0
  %v449 = vadd.f32 0.0, %v448
  %v450 = vpop.f32.mrf.mxu0
  %v451 = vpop.f32.mrf.mxu0
  %v452 = vadd.f32 0.0, %v451
  %v453 = vpop.f32.mrf.mxu0
  %454 = vmatprep.mubr.bf16.mxu0 0
  %455 = vmatmul.mubr.bf16.gmra.mxu0 %v233
  %v456 = vpop.f32.mrf.mxu0
  %v457 = vadd.f32 0.0, %v456
  %v458 = vpop.f32.mrf.mxu0
  %v459 = vpop.f32.mrf.mxu0
  %v460 = vadd.f32 0.0, %v459
  %v461 = vpop.f32.mrf.mxu0
  %462 = vmatprep.mubr.bf16.mxu0 0
  %463 = vmatmul.mubr.bf16.gmra.mxu0 %v234
  %v464 = vpop.f32.mrf.mxu0
  %v465 = vadd.f32 0.0, %v464
  %v466 = vpop.f32.mrf.mxu0
  %v467 = vpop.f32.mrf.mxu0
  %v468 = vadd.f32 0.0, %v467
  %v469 = vpop.f32.mrf.mxu0
  %470 = vmatprep.mubr.bf16.mxu0 0
  %471 = vmatmul.mubr.bf16.gmra.mxu0 %v235
  %v472 = vpop.f32.mrf.mxu0
  %v473 = vadd.f32 0.0, %v472
  %v474 = vpop.f32.mrf.mxu0
  %v475 = vpop.f32.mrf.mxu0
  %v476 = vadd.f32 0.0, %v475
  %v477 = vpop.f32.mrf.mxu0
  %478 = vmatprep.mubr.bf16.mxu0 0
  %479 = vmatmul.mubr.bf16.gmra.mxu0 %v236
  %v480 = vpop.f32.mrf.mxu0
  %v481 = vadd.f32 0.0, %v480
  %v482 = vpop.f32.mrf.mxu0
  %v483 = vpop.f32.mrf.mxu0
  %v484 = vadd.f32 0.0, %v483
  %v485 = vpop.f32.mrf.mxu0
  %486 = vmatprep.mubr.bf16.mxu0 0
  %487 = vmatmul.mubr.bf16.gmra.mxu0 %v237
  %v488 = vpop.f32.mrf.mxu0
  %v489 = vadd.f32 0.0, %v488
  %v490 = vpop.f32.mrf.mxu0
  %v491 = vpop.f32.mrf.mxu0
  %v492 = vadd.f32 0.0, %v491
  %v493 = vpop.f32.mrf.mxu0
  %494 = vmatprep.mubr.bf16.mxu0 0
  %495 = vmatmul.mubr.bf16.gmra.mxu0 %v238
  %v496 = vpop.f32.mrf.mxu0
  %v497 = vadd.f32 0.0, %v496
  %v498 = vpop.f32.mrf.mxu0
  %v499 = vpop.f32.mrf.mxu0
  %v500 = vadd.f32 0.0, %v499
  %v501 = vpop.f32.mrf.mxu0
  %502 = vmatprep.mubr.bf16.mxu0 0
  %503 = vmatmul.mubr.bf16.gmra.mxu0 %v239
  %v504 = vpop.f32.mrf.mxu0
  %v505 = vadd.f32 0.0, %v504
  %v506 = vpop.f32.mrf.mxu0
  %v507 = vpop.f32.mrf.mxu0
  %v508 = vadd.f32 0.0, %v507
  %v509 = vpop.f32.mrf.mxu0
  %510 = vmatprep.mubr.bf16.mxu0 0
  %511 = vmatmul.mubr.bf16.gmra.mxu0 %v240
  %v512 = vpop.f32.mrf.mxu0
  %v513 = vadd.f32 0.0, %v512
  %v514 = vpop.f32.mrf.mxu0
  %v515 = vpop.f32.mrf.mxu0
  %v516 = vadd.f32 0.0, %v515
  %v517 = vpop.f32.mrf.mxu0
  %518 = vmatprep.mubr.bf16.mxu0 0
  %519 = vmatmul.mubr.bf16.gmra.mxu0 %v241
  %v520 = vpop.f32.mrf.mxu0
  %v521 = vadd.f32 0.0, %v520
  %v522 = vpop.f32.mrf.mxu0
  %v523 = vpop.f32.mrf.mxu0
  %v524 = vadd.f32 0.0, %v523
  %v525 = vpop.f32.mrf.mxu0
  %526 = vmatprep.mubr.bf16.mxu0 0
  %527 = vmatmul.mubr.bf16.gmra.mxu0 %v242
  %v528 = vpop.f32.mrf.mxu0
  %v529 = vadd.f32 0.0, %v528
  %v530 = vpop.f32.mrf.mxu0
  %v531 = vpop.f32.mrf.mxu0
  %v532 = vadd.f32 0.0, %v531
  %v533 = vpop.f32.mrf.mxu0
  %534 = vmatprep.mubr.bf16.mxu0 0
  %535 = vmatmul.mubr.bf16.gmra.mxu0 %v243
  %v536 = vpop.f32.mrf.mxu0
  %v537 = vadd.f32 0.0, %v536
  %v538 = vpop.f32.mrf.mxu0
  %v539 = vpop.f32.mrf.mxu0
  %v540 = vadd.f32 0.0, %v539
  %v541 = vpop.f32.mrf.mxu0
  %542 = vmatprep.mubr.bf16.mxu0 0
  %543 = vmatmul.mubr.bf16.gmra.mxu0 %v244
  %v544 = vpop.f32.mrf.mxu0
  %v545 = vadd.f32 0.0, %v544
  %v546 = vpop.f32.mrf.mxu0
  %v547 = vpop.f32.mrf.mxu0
  %v548 = vadd.f32 0.0, %v547
  %v549 = vpop.f32.mrf.mxu0
  %550 = vmatprep.mubr.bf16.mxu0 0
  %551 = vmatmul.mubr.bf16.gmra.mxu0 %v245
  %v552 = vpop.f32.mrf.mxu0
  %v553 = vadd.f32 0.0, %v552
  %v554 = vpop.f32.mrf.mxu0
  %v555 = vpop.f32.mrf.mxu0
  %v556 = vadd.f32 0.0, %v555
  %v557 = vpop.f32.mrf.mxu0
  %558 = vmatprep.mubr.bf16.mxu0 0
  %559 = vmatmul.mubr.bf16.gmra.mxu0 %v246
  %v560 = vpop.f32.mrf.mxu0
  %v561 = vadd.f32 0.0, %v560
  %v562 = vpop.f32.mrf.mxu0
  %v563 = vpop.f32.mrf.mxu0
  %v564 = vadd.f32 0.0, %v563
  %v565 = vpop.f32.mrf.mxu0
  %566 = vmatprep.mubr.bf16.mxu0 0
  %567 = vmatmul.mubr.bf16.gmra.mxu0 %v247
  %v568 = vpop.f32.mrf.mxu0
  %v569 = vadd.f32 0.0, %v568
  %v570 = vpop.f32.mrf.mxu0
  %v571 = vpop.f32.mrf.mxu0
  %v572 = vadd.f32 0.0, %v571
  %v573 = vpop.f32.mrf.mxu0
  %574 = vmatprep.mubr.bf16.mxu0 0
  %575 = vmatmul.mubr.bf16.gmra.mxu0 %v248
  %v576 = vpop.f32.mrf.mxu0
  %v577 = vadd.f32 0.0, %v576
  %v578 = vpop.f32.mrf.mxu0
  %v579 = vpop.f32.mrf.mxu0
  %v580 = vadd.f32 0.0, %v579
  %v581 = vpop.f32.mrf.mxu0
  %582 = vmatprep.mubr.bf16.mxu0 0
  %583 = vmatmul.mubr.bf16.gmra.mxu0 %v249
  %v584 = vpop.f32.mrf.mxu0
  %v585 = vadd.f32 0.0, %v584
  %v586 = vpop.f32.mrf.mxu0
  %v587 = vpop.f32.mrf.mxu0
  %v588 = vadd.f32 0.0, %v587
  %v589 = vpop.f32.mrf.mxu0
  %590 = vmatprep.mubr.bf16.mxu0 0
  %591 = vmatmul.mubr.bf16.gmra.mxu0 %v250
  %v592 = vpop.f32.mrf.mxu0
  %v593 = vadd.f32 0.0, %v592
  %v594 = vpop.f32.mrf.mxu0
  %v595 = vpop.f32.mrf.mxu0
  %v596 = vadd.f32 0.0, %v595
  %v597 = vpop.f32.mrf.mxu0
  %598 = vmatprep.mubr.bf16.mxu0 0
  %599 = vmatmul.mubr.bf16.gmra.mxu0 %v251
  %v600 = vpop.f32.mrf.mxu0
  %v601 = vadd.f32 0.0, %v600
  %v602 = vpop.f32.mrf.mxu0
  %v603 = vpop.f32.mrf.mxu0
  %v604 = vadd.f32 0.0, %v603
  %v605 = vpop.f32.mrf.mxu0
  %606 = vmatprep.mubr.bf16.mxu0 0
  %607 = vmatmul.mubr.bf16.gmra.mxu0 %v252
  %v608 = vpop.f32.mrf.mxu0
  %v609 = vadd.f32 0.0, %v608
  %v610 = vpop.f32.mrf.mxu0
  %v611 = vpop.f32.mrf.mxu0
  %v612 = vadd.f32 0.0, %v611
  %v613 = vpop.f32.mrf.mxu0
  %614 = vmatprep.mubr.bf16.mxu0 0
  %615 = vmatmul.mubr.bf16.gmra.mxu0 %v253
  %v616 = vpop.f32.mrf.mxu0
  %v617 = vadd.f32 0.0, %v616
  %v618 = vpop.f32.mrf.mxu0
  %v619 = vpop.f32.mrf.mxu0
  %v620 = vadd.f32 0.0, %v619
  %v621 = vpop.f32.mrf.mxu0
  %622 = vdwg.mxu0
  %623 = vst [vmem:[%s2] sm:$0xff] %v369
  %624 = vst [vmem:[%s2 + $0x8] sm:$0xff] %v372
  %625 = vst [vmem:[%s2 + $0x10] sm:$0xff] %v377
  %626 = vst [vmem:[%s2 + $0x18] sm:$0xff] %v380
  %627 = vst [vmem:[%s2 + $0x20] sm:$0xff] %v385
  %628 = vst [vmem:[%s2 + $0x28] sm:$0xff] %v388
  %629 = vst [vmem:[%s2 + $0x30] sm:$0xff] %v393
  %630 = vst [vmem:[%s2 + $0x38] sm:$0xff] %v396
  %631 = vst [vmem:[%s2 + $0x40] sm:$0xff] %v401
  %632 = vst [vmem:[%s2 + $0x48] sm:$0xff] %v404
  %633 = vst [vmem:[%s2 + $0x50] sm:$0xff] %v409
  %634 = vst [vmem:[%s2 + $0x58] sm:$0xff] %v412
  %635 = vst [vmem:[%s2 + $0x60] sm:$0xff] %v417
  %636 = vst [vmem:[%s2 + $0x68] sm:$0xff] %v420
  %637 = vst [vmem:[%s2 + $0x70] sm:$0xff] %v425
  %638 = vst [vmem:[%s2 + $0x78] sm:$0xff] %v428
  %639 = vst [vmem:[%s2 + $0x80] sm:$0xff] %v433
  %640 = vst [vmem:[%s2 + $0x88] sm:$0xff] %v436
  %641 = vst [vmem:[%s2 + $0x90] sm:$0xff] %v441
  %642 = vst [vmem:[%s2 + $0x98] sm:$0xff] %v444
  %643 = vst [vmem:[%s2 + $0xa0] sm:$0xff] %v449
  %644 = vst [vmem:[%s2 + $0xa8] sm:$0xff] %v452
  %645 = vst [vmem:[%s2 + $0xb0] sm:$0xff] %v457
  %646 = vst [vmem:[%s2 + $0xb8] sm:$0xff] %v460
  %647 = vst [vmem:[%s2 + $0xc0] sm:$0xff] %v465
  %648 = vst [vmem:[%s2 + $0xc8] sm:$0xff] %v468
  %649 = vst [vmem:[%s2 + $0xd0] sm:$0xff] %v473
  %650 = vst [vmem:[%s2 + $0xd8] sm:$0xff] %v476
  %651 = vst [vmem:[%s2 + $0xe0] sm:$0xff] %v481
  %652 = vst [vmem:[%s2 + $0xe8] sm:$0xff] %v484
  %653 = vst [vmem:[%s2 + $0xf0] sm:$0xff] %v489
  %654 = vst [vmem:[%s2 + $0xf8] sm:$0xff] %v492
  %655 = vst [vmem:[%s2 + $0x100] sm:$0xff] %v497
  %656 = vst [vmem:[%s2 + $0x108] sm:$0xff] %v500
  %657 = vst [vmem:[%s2 + $0x110] sm:$0xff] %v505
  %658 = vst [vmem:[%s2 + $0x118] sm:$0xff] %v508
  %659 = vst [vmem:[%s2 + $0x120] sm:$0xff] %v513
  %660 = vst [vmem:[%s2 + $0x128] sm:$0xff] %v516
  %661 = vst [vmem:[%s2 + $0x130] sm:$0xff] %v521
  %662 = vst [vmem:[%s2 + $0x138] sm:$0xff] %v524
  %663 = vst [vmem:[%s2 + $0x140] sm:$0xff] %v529
  %664 = vst [vmem:[%s2 + $0x148] sm:$0xff] %v532
  %665 = vst [vmem:[%s2 + $0x150] sm:$0xff] %v537
  %666 = vst [vmem:[%s2 + $0x158] sm:$0xff] %v540
  %667 = vst [vmem:[%s2 + $0x160] sm:$0xff] %v545
  %668 = vst [vmem:[%s2 + $0x168] sm:$0xff] %v548
  %669 = vst [vmem:[%s2 + $0x170] sm:$0xff] %v553
  %670 = vst [vmem:[%s2 + $0x178] sm:$0xff] %v556
  %671 = vst [vmem:[%s2 + $0x180] sm:$0xff] %v561
  %672 = vst [vmem:[%s2 + $0x188] sm:$0xff] %v564
  %673 = vst [vmem:[%s2 + $0x190] sm:$0xff] %v569
  %674 = vst [vmem:[%s2 + $0x198] sm:$0xff] %v572
  %675 = vst [vmem:[%s2 + $0x1a0] sm:$0xff] %v577
  %676 = vst [vmem:[%s2 + $0x1a8] sm:$0xff] %v580
  %677 = vst [vmem:[%s2 + $0x1b0] sm:$0xff] %v585
  %678 = vst [vmem:[%s2 + $0x1b8] sm:$0xff] %v588
  %679 = vst [vmem:[%s2 + $0x1c0] sm:$0xff] %v593
  %680 = vst [vmem:[%s2 + $0x1c8] sm:$0xff] %v596
  %681 = vst [vmem:[%s2 + $0x1d0] sm:$0xff] %v601
  %682 = vst [vmem:[%s2 + $0x1d8] sm:$0xff] %v604
  %683 = vst [vmem:[%s2 + $0x1e0] sm:$0xff] %v609
  %684 = vst [vmem:[%s2 + $0x1e8] sm:$0xff] %v612
  %685 = vst [vmem:[%s2 + $0x1f0] sm:$0xff] %v617
  %686 = vst [vmem:[%s2 + $0x1f8] sm:$0xff] %v620
  %p687 = scmp.eq.s32.totalorder 0, 0
  // Predicated region
  $region10: #{discriminator_forward.9} parent=0 // pred_check
    %p688 = pneg %p687
  $region11: #{discriminator_forward.9} parent=0 // pred_check_branch
    %690 = sbr.rel (%p688) target = $region13
  $region12: #{discriminator_forward.9} parent=0 // pred_region
    %691 = vst [vmem:[%s3] sm:$0x3] 0.0
  $region13: #{discriminator_forward.9} parent=0 // pred_fallthru
    _
  %v692 = vadd.f32 %v369, %v372
  %v693 = vadd.f32 %v692, %v377
  %v694 = vadd.f32 %v693, %v380
  %v695 = vadd.f32 %v694, %v385
  %v696 = vadd.f32 %v695, %v388
  %v697 = vadd.f32 %v696, %v393
  %v698 = vadd.f32 %v697, %v396
  %v699 = vadd.f32 %v698, %v401
  %v700 = vadd.f32 %v699, %v404
  %v701 = vadd.f32 %v700, %v409
  %v702 = vadd.f32 %v701, %v412
  %v703 = vadd.f32 %v702, %v417
  %v704 = vadd.f32 %v703, %v420
  %v705 = vadd.f32 %v704, %v425
  %v706 = vadd.f32 %v705, %v428
  %v707 = vadd.f32 %v706, %v433
  %v708 = vadd.f32 %v707, %v436
  %v709 = vadd.f32 %v708, %v441
  %v710 = vadd.f32 %v709, %v444
  %v711 = vadd.f32 %v710, %v449
  %v712 = vadd.f32 %v711, %v452
  %v713 = vadd.f32 %v712, %v457
  %v714 = vadd.f32 %v713, %v460
  %v715 = vadd.f32 %v714, %v465
  %v716 = vadd.f32 %v715, %v468
  %v717 = vadd.f32 %v716, %v473
  %v718 = vadd.f32 %v717, %v476
  %v719 = vadd.f32 %v718, %v481
  %v720 = vadd.f32 %v719, %v484
  %v721 = vadd.f32 %v720, %v489
  %v722 = vadd.f32 %v721, %v492
  %v723 = vadd.f32 %v722, %v497
  %v724 = vadd.f32 %v723, %v500
  %v725 = vadd.f32 %v724, %v505
  %v726 = vadd.f32 %v725, %v508
  %v727 = vadd.f32 %v726, %v513
  %v728 = vadd.f32 %v727, %v516
  %v729 = vadd.f32 %v728, %v521
  %v730 = vadd.f32 %v729, %v524
  %v731 = vadd.f32 %v730, %v529
  %v732 = vadd.f32 %v731, %v532
  %v733 = vadd.f32 %v732, %v537
  %v734 = vadd.f32 %v733, %v540
  %v735 = vadd.f32 %v734, %v545
  %v736 = vadd.f32 %v735, %v548
  %v737 = vadd.f32 %v736, %v553
  %v738 = vadd.f32 %v737, %v556
  %v739 = vadd.f32 %v738, %v561
  %v740 = vadd.f32 %v739, %v564
  %v741 = vadd.f32 %v740, %v569
  %v742 = vadd.f32 %v741, %v572
  %v743 = vadd.f32 %v742, %v577
  %v744 = vadd.f32 %v743, %v580
  %v745 = vadd.f32 %v744, %v585
  %v746 = vadd.f32 %v745, %v588
  %v747 = vadd.f32 %v746, %v593
  %v748 = vadd.f32 %v747, %v596
  %v749 = vadd.f32 %v748, %v601
  %v750 = vadd.f32 %v749, %v604
  %v751 = vadd.f32 %v750, %v609
  %v752 = vadd.f32 %v751, %v612
  %v753 = vadd.f32 %v752, %v617
  %v754 = vadd.f32 %v753, %v620
  %v755 = vrot.slane %v754, 4
  %v756 = vadd.f32 %v754, %v755
  %v757 = vrot.slane %v756, 2
  %v758 = vadd.f32 %v756, %v757
  %v759 = vrot.slane %v758, 1
  %v760 = vadd.f32 %v758, %v759
  %v761 = vmul.f32 %v369, %v369
  %v762 = vmul.f32 %v372, %v372
  %v763 = vmul.f32 %v377, %v377
  %v764 = vmul.f32 %v380, %v380
  %v765 = vmul.f32 %v385, %v385
  %v766 = vmul.f32 %v388, %v388
  %v767 = vmul.f32 %v393, %v393
  %v768 = vmul.f32 %v396, %v396
  %v769 = vmul.f32 %v401, %v401
  %v770 = vmul.f32 %v404, %v404
  %v771 = vmul.f32 %v409, %v409
  %v772 = vmul.f32 %v412, %v412
  %v773 = vmul.f32 %v417, %v417
  %v774 = vmul.f32 %v420, %v420
  %v775 = vmul.f32 %v425, %v425
  %v776 = vmul.f32 %v428, %v428
  %v777 = vmul.f32 %v433, %v433
  %v778 = vmul.f32 %v436, %v436
  %v779 = vmul.f32 %v441, %v441
  %v780 = vmul.f32 %v444, %v444
  %v781 = vmul.f32 %v449, %v449
  %v782 = vmul.f32 %v452, %v452
  %v783 = vmul.f32 %v457, %v457
  %v784 = vmul.f32 %v460, %v460
  %v785 = vmul.f32 %v465, %v465
  %v786 = vmul.f32 %v468, %v468
  %v787 = vmul.f32 %v473, %v473
  %v788 = vmul.f32 %v476, %v476
  %v789 = vmul.f32 %v481, %v481
  %v790 = vmul.f32 %v484, %v484
  %v791 = vmul.f32 %v489, %v489
  %v792 = vmul.f32 %v492, %v492
  %v793 = vmul.f32 %v497, %v497
  %v794 = vmul.f32 %v500, %v500
  %v795 = vmul.f32 %v505, %v505
  %v796 = vmul.f32 %v508, %v508
  %v797 = vmul.f32 %v513, %v513
  %v798 = vmul.f32 %v516, %v516
  %v799 = vmul.f32 %v521, %v521
  %v800 = vmul.f32 %v524, %v524
  %v801 = vmul.f32 %v529, %v529
  %v802 = vmul.f32 %v532, %v532
  %v803 = vmul.f32 %v537, %v537
  %v804 = vmul.f32 %v540, %v540
  %v805 = vmul.f32 %v545, %v545
  %v806 = vmul.f32 %v548, %v548
  %v807 = vmul.f32 %v553, %v553
  %v808 = vmul.f32 %v556, %v556
  %v809 = vmul.f32 %v561, %v561
  %v810 = vmul.f32 %v564, %v564
  %v811 = vmul.f32 %v569, %v569
  %v812 = vmul.f32 %v572, %v572
  %v813 = vmul.f32 %v577, %v577
  %v814 = vmul.f32 %v580, %v580
  %v815 = vmul.f32 %v585, %v585
  %v816 = vmul.f32 %v588, %v588
  %v817 = vmul.f32 %v593, %v593
  %v818 = vmul.f32 %v596, %v596
  %v819 = vmul.f32 %v601, %v601
  %v820 = vmul.f32 %v604, %v604
  %v821 = vmul.f32 %v609, %v609
  %v822 = vmul.f32 %v612, %v612
  %v823 = vmul.f32 %v617, %v617
  %v824 = vmul.f32 %v620, %v620
  %v825 = vadd.f32 %v761, %v762
  %v826 = vadd.f32 %v825, %v763
  %v827 = vadd.f32 %v826, %v764
  %v828 = vadd.f32 %v827, %v765
  %v829 = vadd.f32 %v828, %v766
  %v830 = vadd.f32 %v829, %v767
  %v831 = vadd.f32 %v830, %v768
  %v832 = vadd.f32 %v831, %v769
  %v833 = vadd.f32 %v832, %v770
  %v834 = vadd.f32 %v833, %v771
  %v835 = vadd.f32 %v834, %v772
  %v836 = vadd.f32 %v835, %v773
  %v837 = vadd.f32 %v836, %v774
  %v838 = vadd.f32 %v837, %v775
  %v839 = vadd.f32 %v838, %v776
  %v840 = vadd.f32 %v839, %v777
  %v841 = vadd.f32 %v840, %v778
  %v842 = vadd.f32 %v841, %v779
  %v843 = vadd.f32 %v842, %v780
  %v844 = vadd.f32 %v843, %v781
  %v845 = vadd.f32 %v844, %v782
  %v846 = vadd.f32 %v845, %v783
  %v847 = vadd.f32 %v846, %v784
  %v848 = vadd.f32 %v847, %v785
  %v849 = vadd.f32 %v848, %v786
  %v850 = vadd.f32 %v849, %v787
  %v851 = vadd.f32 %v850, %v788
  %v852 = vadd.f32 %v851, %v789
  %v853 = vadd.f32 %v852, %v790
  %v854 = vadd.f32 %v853, %v791
  %v855 = vadd.f32 %v854, %v792
  %v856 = vadd.f32 %v855, %v793
  %v857 = vadd.f32 %v856, %v794
  %v858 = vadd.f32 %v857, %v795
  %v859 = vadd.f32 %v858, %v796
  %v860 = vadd.f32 %v859, %v797
  %v861 = vadd.f32 %v860, %v798
  %v862 = vadd.f32 %v861, %v799
  %v863 = vadd.f32 %v862, %v800
  %v864 = vadd.f32 %v863, %v801
  %v865 = vadd.f32 %v864, %v802
  %v866 = vadd.f32 %v865, %v803
  %v867 = vadd.f32 %v866, %v804
  %v868 = vadd.f32 %v867, %v805
  %v869 = vadd.f32 %v868, %v806
  %v870 = vadd.f32 %v869, %v807
  %v871 = vadd.f32 %v870, %v808
  %v872 = vadd.f32 %v871, %v809
  %v873 = vadd.f32 %v872, %v810
  %v874 = vadd.f32 %v873, %v811
  %v875 = vadd.f32 %v874, %v812
  %v876 = vadd.f32 %v875, %v813
  %v877 = vadd.f32 %v876, %v814
  %v878 = vadd.f32 %v877, %v815
  %v879 = vadd.f32 %v878, %v816
  %v880 = vadd.f32 %v879, %v817
  %v881 = vadd.f32 %v880, %v818
  %v882 = vadd.f32 %v881, %v819
  %v883 = vadd.f32 %v882, %v820
  %v884 = vadd.f32 %v883, %v821
  %v885 = vadd.f32 %v884, %v822
  %v886 = vadd.f32 %v885, %v823
  %v887 = vadd.f32 %v886, %v824
  %v888 = vrot.slane %v887, 4
  %v889 = vadd.f32 %v887, %v888
  %v890 = vrot.slane %v889, 2
  %v891 = vadd.f32 %v889, %v890
  %v892 = vrot.slane %v891, 1
  %v893 = vadd.f32 %v891, %v892
  %v894 = vld [vmem:[%s3] sm:$0x3]
  %vm895 = vcmask 1040384
  %v896 = vsel %vm895, %v760, %v893
  %v897 = vadd.f32 %v894, %v896
  %898 = vst [vmem:[%s3] sm:$0x3] %v897
  // Predicated region
  $region14: #{discriminator_forward.9} parent=0 // pred_check
    _
  $region15: #{discriminator_forward.9} parent=0 // pred_check_branch
    %900 = sbr.rel (0) target = $region17
  $region16: #{discriminator_forward.9} parent=0 // pred_region
    _
  $region17: #{discriminator_forward.9} parent=0 // pred_fallthru
    _
  // Predicated region
  $region18: #{discriminator_forward.9} parent=0 // pred_check
    _
  $region19: #{discriminator_forward.9} parent=0 // pred_check_branch
    %902 = sbr.rel (0) target = $region21
  $region20: #{discriminator_forward.9} parent=0 // pred_region
    _
  $region21: #{discriminator_forward.9} parent=0 // pred_fallthru
    _
  // Predicated region
  $region22: #{discriminator_forward.9} parent=0 // pred_check
    _
  $region23: #{discriminator_forward.9} parent=0 // pred_check_branch
    %904 = sbr.rel (0) target = $region25
  $region24: #{discriminator_forward.9} parent=0 // pred_region
    _
  $region25: #{discriminator_forward.9} parent=0 // pred_fallthru
    _
  // Predicated region
  $region26: #{discriminator_forward.9} parent=0 // pred_check
    _
  $region27: #{discriminator_forward.9} parent=0 // pred_check_branch
    %906 = sbr.rel (0) target = $region29
  $region28: #{discriminator_forward.9} parent=0 // pred_region
    _
  $region29: #{discriminator_forward.9} parent=0 // pred_fallthru
    _

// kernel: discriminator_forward.10
$region0: #{discriminator_forward.10}
  #allocation0 [shape = 'u32[]', space=smem, size = 0x4, offset = 0x4, fixed_abs, tag = 'smem constant byte address 0x4 - core index']
  #allocation1 [shape = 'u32[144,128]{1,0:T(1,128)}', space=vmem, size = 0x12000, scoped, tag = 'internal scratch']
  %s0 = inlined_call_operand.vmem [shape: f32[512,128], index: 0, kind: input, shape index: {}]
  %s1 = inlined_call_operand.vmem [shape: f32[1,128], index: 1, kind: input, shape index: {}]
  %s2 = inlined_call_operand.vmem [shape: f32[1,128], index: 2, kind: input, shape index: {}]
  %s3 = inlined_call_operand.vmem [shape: bf16[512,128], index: 3, kind: output, shape index: {}]
  %s4 = sld [smem:[#allocation0]]
  $region22: #{discriminator_forward.10} parent=0
    _
  %s6 = ssub.s32 1, %s4
  %s7 = scalar_select 0, %s6, %s4
  // Predicated region
  $region2: #{discriminator_forward.10} parent=0 // pred_check
    _
  $region3: #{discriminator_forward.10} parent=0 // pred_check_branch
    %9 = sbr.rel (0) target = $region5
  $region4: #{discriminator_forward.10} parent=0 // pred_region
    _
  $region5: #{discriminator_forward.10} parent=0 // pred_fallthru
    _
  // Predicated region
  $region6: #{discriminator_forward.10} parent=0 // pred_check
    _
  $region7: #{discriminator_forward.10} parent=0 // pred_check_branch
    %11 = sbr.rel (0) target = $region9
  $region8: #{discriminator_forward.10} parent=0 // pred_region
    _
  $region9: #{discriminator_forward.10} parent=0 // pred_fallthru
    _
  // Predicated region
  $region10: #{discriminator_forward.10} parent=0 // pred_check
    _
  $region11: #{discriminator_forward.10} parent=0 // pred_check_branch
    %13 = sbr.rel (0) target = $region13
  $region12: #{discriminator_forward.10} parent=0 // pred_region
    _
  $region13: #{discriminator_forward.10} parent=0 // pred_fallthru
    _
  %v14 = vld [vmem:[%s0] sm:$0xff]
  %v15 = vld [vmem:[%s0 + $0x8] sm:$0xff]
  %v16 = vld [vmem:[%s0 + $0x10] sm:$0xff]
  %v17 = vld [vmem:[%s0 + $0x18] sm:$0xff]
  %v18 = vld [vmem:[%s0 + $0x20] sm:$0xff]
  %v19 = vld [vmem:[%s0 + $0x28] sm:$0xff]
  %v20 = vld [vmem:[%s0 + $0x30] sm:$0xff]
  %v21 = vld [vmem:[%s0 + $0x38] sm:$0xff]
  %v22 = vld [vmem:[%s0 + $0x40] sm:$0xff]
  %v23 = vld [vmem:[%s0 + $0x48] sm:$0xff]
  %v24 = vld [vmem:[%s0 + $0x50] sm:$0xff]
  %v25 = vld [vmem:[%s0 + $0x58] sm:$0xff]
  %v26 = vld [vmem:[%s0 + $0x60] sm:$0xff]
  %v27 = vld [vmem:[%s0 + $0x68] sm:$0xff]
  %v28 = vld [vmem:[%s0 + $0x70] sm:$0xff]
  %v29 = vld [vmem:[%s0 + $0x78] sm:$0xff]
  %v30 = vld [vmem:[%s0 + $0x80] sm:$0xff]
  %v31 = vld [vmem:[%s0 + $0x88] sm:$0xff]
  %v32 = vld [vmem:[%s0 + $0x90] sm:$0xff]
  %v33 = vld [vmem:[%s0 + $0x98] sm:$0xff]
  %v34 = vld [vmem:[%s0 + $0xa0] sm:$0xff]
  %v35 = vld [vmem:[%s0 + $0xa8] sm:$0xff]
  %v36 = vld [vmem:[%s0 + $0xb0] sm:$0xff]
  %v37 = vld [vmem:[%s0 + $0xb8] sm:$0xff]
  %v38 = vld [vmem:[%s0 + $0xc0] sm:$0xff]
  %v39 = vld [vmem:[%s0 + $0xc8] sm:$0xff]
  %v40 = vld [vmem:[%s0 + $0xd0] sm:$0xff]
  %v41 = vld [vmem:[%s0 + $0xd8] sm:$0xff]
  %v42 = vld [vmem:[%s0 + $0xe0] sm:$0xff]
  %v43 = vld [vmem:[%s0 + $0xe8] sm:$0xff]
  %v44 = vld [vmem:[%s0 + $0xf0] sm:$0xff]
  %v45 = vld [vmem:[%s0 + $0xf8] sm:$0xff]
  %v46 = vld [vmem:[%s0 + $0x100] sm:$0xff]
  %v47 = vld [vmem:[%s0 + $0x108] sm:$0xff]
  %v48 = vld [vmem:[%s0 + $0x110] sm:$0xff]
  %v49 = vld [vmem:[%s0 + $0x118] sm:$0xff]
  %v50 = vld [vmem:[%s0 + $0x120] sm:$0xff]
  %v51 = vld [vmem:[%s0 + $0x128] sm:$0xff]
  %v52 = vld [vmem:[%s0 + $0x130] sm:$0xff]
  %v53 = vld [vmem:[%s0 + $0x138] sm:$0xff]
  %v54 = vld [vmem:[%s0 + $0x140] sm:$0xff]
  %v55 = vld [vmem:[%s0 + $0x148] sm:$0xff]
  %v56 = vld [vmem:[%s0 + $0x150] sm:$0xff]
  %v57 = vld [vmem:[%s0 + $0x158] sm:$0xff]
  %v58 = vld [vmem:[%s0 + $0x160] sm:$0xff]
  %v59 = vld [vmem:[%s0 + $0x168] sm:$0xff]
  %v60 = vld [vmem:[%s0 + $0x170] sm:$0xff]
  %v61 = vld [vmem:[%s0 + $0x178] sm:$0xff]
  %v62 = vld [vmem:[%s0 + $0x180] sm:$0xff]
  %v63 = vld [vmem:[%s0 + $0x188] sm:$0xff]
  %v64 = vld [vmem:[%s0 + $0x190] sm:$0xff]
  %v65 = vld [vmem:[%s0 + $0x198] sm:$0xff]
  %v66 = vld [vmem:[%s0 + $0x1a0] sm:$0xff]
  %v67 = vld [vmem:[%s0 + $0x1a8] sm:$0xff]
  %v68 = vld [vmem:[%s0 + $0x1b0] sm:$0xff]
  %v69 = vld [vmem:[%s0 + $0x1b8] sm:$0xff]
  %v70 = vld [vmem:[%s0 + $0x1c0] sm:$0xff]
  %v71 = vld [vmem:[%s0 + $0x1c8] sm:$0xff]
  %v72 = vld [vmem:[%s0 + $0x1d0] sm:$0xff]
  %v73 = vld [vmem:[%s0 + $0x1d8] sm:$0xff]
  %v74 = vld [vmem:[%s0 + $0x1e0] sm:$0xff]
  %v75 = vld [vmem:[%s0 + $0x1e8] sm:$0xff]
  %v76 = vld [vmem:[%s0 + $0x1f0] sm:$0xff]
  %v77 = vld [vmem:[%s0 + $0x1f8] sm:$0xff]
  %v78 = vld [vmem:[%s1] sm:$0x1]
  %v80 = vlaneseq
  %v81 = vshrl.u32 %v80, 7
  %v82 = vsub.s32 0, %v81
  %v83 = vrot.slane %v78, %v82
  %v85 = vmul.f32 %v14, %v83
  %v86 = vmul.f32 %v15, %v83
  %v87 = vmul.f32 %v16, %v83
  %v88 = vmul.f32 %v17, %v83
  %v89 = vmul.f32 %v18, %v83
  %v90 = vmul.f32 %v19, %v83
  %v91 = vmul.f32 %v20, %v83
  %v92 = vmul.f32 %v21, %v83
  %v93 = vmul.f32 %v22, %v83
  %v94 = vmul.f32 %v23, %v83
  %v95 = vmul.f32 %v24, %v83
  %v96 = vmul.f32 %v25, %v83
  %v97 = vmul.f32 %v26, %v83
  %v98 = vmul.f32 %v27, %v83
  %v99 = vmul.f32 %v28, %v83
  %v100 = vmul.f32 %v29, %v83
  %v101 = vmul.f32 %v30, %v83
  %v102 = vmul.f32 %v31, %v83
  %v103 = vmul.f32 %v32, %v83
  %v104 = vmul.f32 %v33, %v83
  %v105 = vmul.f32 %v34, %v83
  %v106 = vmul.f32 %v35, %v83
  %v107 = vmul.f32 %v36, %v83
  %v108 = vmul.f32 %v37, %v83
  %v109 = vmul.f32 %v38, %v83
  %v110 = vmul.f32 %v39, %v83
  %v111 = vmul.f32 %v40, %v83
  %v112 = vmul.f32 %v41, %v83
  %v113 = vmul.f32 %v42, %v83
  %v114 = vmul.f32 %v43, %v83
  %v115 = vmul.f32 %v44, %v83
  %v116 = vmul.f32 %v45, %v83
  %v117 = vmul.f32 %v46, %v83
  %v118 = vmul.f32 %v47, %v83
  %v119 = vmul.f32 %v48, %v83
  %v120 = vmul.f32 %v49, %v83
  %v121 = vmul.f32 %v50, %v83
  %v122 = vmul.f32 %v51, %v83
  %v123 = vmul.f32 %v52, %v83
  %v124 = vmul.f32 %v53, %v83
  %v125 = vmul.f32 %v54, %v83
  %v126 = vmul.f32 %v55, %v83
  %v127 = vmul.f32 %v56, %v83
  %v128 = vmul.f32 %v57, %v83
  %v129 = vmul.f32 %v58, %v83
  %v130 = vmul.f32 %v59, %v83
  %v131 = vmul.f32 %v60, %v83
  %v132 = vmul.f32 %v61, %v83
  %v133 = vmul.f32 %v62, %v83
  %v134 = vmul.f32 %v63, %v83
  %v135 = vmul.f32 %v64, %v83
  %v136 = vmul.f32 %v65, %v83
  %v137 = vmul.f32 %v66, %v83
  %v138 = vmul.f32 %v67, %v83
  %v139 = vmul.f32 %v68, %v83
  %v140 = vmul.f32 %v69, %v83
  %v141 = vmul.f32 %v70, %v83
  %v142 = vmul.f32 %v71, %v83
  %v143 = vmul.f32 %v72, %v83
  %v144 = vmul.f32 %v73, %v83
  %v145 = vmul.f32 %v74, %v83
  %v146 = vmul.f32 %v75, %v83
  %v147 = vmul.f32 %v76, %v83
  %v148 = vmul.f32 %v77, %v83
  %v149 = vld [vmem:[%s2] sm:$0x1]
  %v151 = vlaneseq
  %v152 = vshrl.u32 %v151, 7
  %v153 = vsub.s32 0, %v152
  %v154 = vrot.slane %v149, %v153
  %v156 = vadd.f32 %v85, %v154
  %v157 = vadd.f32 %v86, %v154
  %v158 = vadd.f32 %v87, %v154
  %v159 = vadd.f32 %v88, %v154
  %v160 = vadd.f32 %v89, %v154
  %v161 = vadd.f32 %v90, %v154
  %v162 = vadd.f32 %v91, %v154
  %v163 = vadd.f32 %v92, %v154
  %v164 = vadd.f32 %v93, %v154
  %v165 = vadd.f32 %v94, %v154
  %v166 = vadd.f32 %v95, %v154
  %v167 = vadd.f32 %v96, %v154
  %v168 = vadd.f32 %v97, %v154
  %v169 = vadd.f32 %v98, %v154
  %v170 = vadd.f32 %v99, %v154
  %v171 = vadd.f32 %v100, %v154
  %v172 = vadd.f32 %v101, %v154
  %v173 = vadd.f32 %v102, %v154
  %v174 = vadd.f32 %v103, %v154
  %v175 = vadd.f32 %v104, %v154
  %v176 = vadd.f32 %v105, %v154
  %v177 = vadd.f32 %v106, %v154
  %v178 = vadd.f32 %v107, %v154
  %v179 = vadd.f32 %v108, %v154
  %v180 = vadd.f32 %v109, %v154
  %v181 = vadd.f32 %v110, %v154
  %v182 = vadd.f32 %v111, %v154
  %v183 = vadd.f32 %v112, %v154
  %v184 = vadd.f32 %v113, %v154
  %v185 = vadd.f32 %v114, %v154
  %v186 = vadd.f32 %v115, %v154
  %v187 = vadd.f32 %v116, %v154
  %v188 = vadd.f32 %v117, %v154
  %v189 = vadd.f32 %v118, %v154
  %v190 = vadd.f32 %v119, %v154
  %v191 = vadd.f32 %v120, %v154
  %v192 = vadd.f32 %v121, %v154
  %v193 = vadd.f32 %v122, %v154
  %v194 = vadd.f32 %v123, %v154
  %v195 = vadd.f32 %v124, %v154
  %v196 = vadd.f32 %v125, %v154
  %v197 = vadd.f32 %v126, %v154
  %v198 = vadd.f32 %v127, %v154
  %v199 = vadd.f32 %v128, %v154
  %v200 = vadd.f32 %v129, %v154
  %v201 = vadd.f32 %v130, %v154
  %v202 = vadd.f32 %v131, %v154
  %v203 = vadd.f32 %v132, %v154
  %v204 = vadd.f32 %v133, %v154
  %v205 = vadd.f32 %v134, %v154
  %v206 = vadd.f32 %v135, %v154
  %v207 = vadd.f32 %v136, %v154
  %v208 = vadd.f32 %v137, %v154
  %v209 = vadd.f32 %v138, %v154
  %v210 = vadd.f32 %v139, %v154
  %v211 = vadd.f32 %v140, %v154
  %v212 = vadd.f32 %v141, %v154
  %v213 = vadd.f32 %v142, %v154
  %v214 = vadd.f32 %v143, %v154
  %v215 = vadd.f32 %v144, %v154
  %v216 = vadd.f32 %v145, %v154
  %v217 = vadd.f32 %v146, %v154
  %v218 = vadd.f32 %v147, %v154
  %v219 = vadd.f32 %v148, %v154
  %vm220 = vcmp.ge.f32.partialorder %v156, 0.0
  %vm221 = vcmp.ge.f32.partialorder %v157, 0.0
  %vm222 = vcmp.ge.f32.partialorder %v158, 0.0
  %vm223 = vcmp.ge.f32.partialorder %v159, 0.0
  %vm224 = vcmp.ge.f32.partialorder %v160, 0.0
  %vm225 = vcmp.ge.f32.partialorder %v161, 0.0
  %vm226 = vcmp.ge.f32.partialorder %v162, 0.0
  %vm227 = vcmp.ge.f32.partialorder %v163, 0.0
  %vm228 = vcmp.ge.f32.partialorder %v164, 0.0
  %vm229 = vcmp.ge.f32.partialorder %v165, 0.0
  %vm230 = vcmp.ge.f32.partialorder %v166, 0.0
  %vm231 = vcmp.ge.f32.partialorder %v167, 0.0
  %vm232 = vcmp.ge.f32.partialorder %v168, 0.0
  %vm233 = vcmp.ge.f32.partialorder %v169, 0.0
  %vm234 = vcmp.ge.f32.partialorder %v170, 0.0
  %vm235 = vcmp.ge.f32.partialorder %v171, 0.0
  %vm236 = vcmp.ge.f32.partialorder %v172, 0.0
  %vm237 = vcmp.ge.f32.partialorder %v173, 0.0
  %vm238 = vcmp.ge.f32.partialorder %v174, 0.0
  %vm239 = vcmp.ge.f32.partialorder %v175, 0.0
  %vm240 = vcmp.ge.f32.partialorder %v176, 0.0
  %vm241 = vcmp.ge.f32.partialorder %v177, 0.0
  %vm242 = vcmp.ge.f32.partialorder %v178, 0.0
  %vm243 = vcmp.ge.f32.partialorder %v179, 0.0
  %vm244 = vcmp.ge.f32.partialorder %v180, 0.0
  %vm245 = vcmp.ge.f32.partialorder %v181, 0.0
  %vm246 = vcmp.ge.f32.partialorder %v182, 0.0
  %vm247 = vcmp.ge.f32.partialorder %v183, 0.0
  %vm248 = vcmp.ge.f32.partialorder %v184, 0.0
  %vm249 = vcmp.ge.f32.partialorder %v185, 0.0
  %vm250 = vcmp.ge.f32.partialorder %v186, 0.0
  %vm251 = vcmp.ge.f32.partialorder %v187, 0.0
  %vm252 = vcmp.ge.f32.partialorder %v188, 0.0
  %vm253 = vcmp.ge.f32.partialorder %v189, 0.0
  %vm254 = vcmp.ge.f32.partialorder %v190, 0.0
  %vm255 = vcmp.ge.f32.partialorder %v191, 0.0
  %vm256 = vcmp.ge.f32.partialorder %v192, 0.0
  %vm257 = vcmp.ge.f32.partialorder %v193, 0.0
  %vm258 = vcmp.ge.f32.partialorder %v194, 0.0
  %vm259 = vcmp.ge.f32.partialorder %v195, 0.0
  %vm260 = vcmp.ge.f32.partialorder %v196, 0.0
  %vm261 = vcmp.ge.f32.partialorder %v197, 0.0
  %vm262 = vcmp.ge.f32.partialorder %v198, 0.0
  %vm263 = vcmp.ge.f32.partialorder %v199, 0.0
  %vm264 = vcmp.ge.f32.partialorder %v200, 0.0
  %vm265 = vcmp.ge.f32.partialorder %v201, 0.0
  %vm266 = vcmp.ge.f32.partialorder %v202, 0.0
  %vm267 = vcmp.ge.f32.partialorder %v203, 0.0
  %vm268 = vcmp.ge.f32.partialorder %v204, 0.0
  %vm269 = vcmp.ge.f32.partialorder %v205, 0.0
  %vm270 = vcmp.ge.f32.partialorder %v206, 0.0
  %vm271 = vcmp.ge.f32.partialorder %v207, 0.0
  %vm272 = vcmp.ge.f32.partialorder %v208, 0.0
  %vm273 = vcmp.ge.f32.partialorder %v209, 0.0
  %vm274 = vcmp.ge.f32.partialorder %v210, 0.0
  %vm275 = vcmp.ge.f32.partialorder %v211, 0.0
  %vm276 = vcmp.ge.f32.partialorder %v212, 0.0
  %vm277 = vcmp.ge.f32.partialorder %v213, 0.0
  %vm278 = vcmp.ge.f32.partialorder %v214, 0.0
  %vm279 = vcmp.ge.f32.partialorder %v215, 0.0
  %vm280 = vcmp.ge.f32.partialorder %v216, 0.0
  %vm281 = vcmp.ge.f32.partialorder %v217, 0.0
  %vm282 = vcmp.ge.f32.partialorder %v218, 0.0
  %vm283 = vcmp.ge.f32.partialorder %v219, 0.0
  %v284 = vmul.f32 %v156, 0.2
  %v285 = vmul.f32 %v157, 0.2
  %v286 = vmul.f32 %v158, 0.2
  %v287 = vmul.f32 %v159, 0.2
  %v288 = vmul.f32 %v160, 0.2
  %v289 = vmul.f32 %v161, 0.2
  %v290 = vmul.f32 %v162, 0.2
  %v291 = vmul.f32 %v163, 0.2
  %v292 = vmul.f32 %v164, 0.2
  %v293 = vmul.f32 %v165, 0.2
  %v294 = vmul.f32 %v166, 0.2
  %v295 = vmul.f32 %v167, 0.2
  %v296 = vmul.f32 %v168, 0.2
  %v297 = vmul.f32 %v169, 0.2
  %v298 = vmul.f32 %v170, 0.2
  %v299 = vmul.f32 %v171, 0.2
  %v300 = vmul.f32 %v172, 0.2
  %v301 = vmul.f32 %v173, 0.2
  %v302 = vmul.f32 %v174, 0.2
  %v303 = vmul.f32 %v175, 0.2
  %v304 = vmul.f32 %v176, 0.2
  %v305 = vmul.f32 %v177, 0.2
  %v306 = vmul.f32 %v178, 0.2
  %v307 = vmul.f32 %v179, 0.2
  %v308 = vmul.f32 %v180, 0.2
  %v309 = vmul.f32 %v181, 0.2
  %v310 = vmul.f32 %v182, 0.2
  %v311 = vmul.f32 %v183, 0.2
  %v312 = vmul.f32 %v184, 0.2
  %v313 = vmul.f32 %v185, 0.2
  %v314 = vmul.f32 %v186, 0.2
  %v315 = vmul.f32 %v187, 0.2
  %v316 = vmul.f32 %v188, 0.2
  %v317 = vmul.f32 %v189, 0.2
  %v318 = vmul.f32 %v190, 0.2
  %v319 = vmul.f32 %v191, 0.2
  %v320 = vmul.f32 %v192, 0.2
  %v321 = vmul.f32 %v193, 0.2
  %v322 = vmul.f32 %v194, 0.2
  %v323 = vmul.f32 %v195, 0.2
  %v324 = vmul.f32 %v196, 0.2
  %v325 = vmul.f32 %v197, 0.2
  %v326 = vmul.f32 %v198, 0.2
  %v327 = vmul.f32 %v199, 0.2
  %v328 = vmul.f32 %v200, 0.2
  %v329 = vmul.f32 %v201, 0.2
  %v330 = vmul.f32 %v202, 0.2
  %v331 = vmul.f32 %v203, 0.2
  %v332 = vmul.f32 %v204, 0.2
  %v333 = vmul.f32 %v205, 0.2
  %v334 = vmul.f32 %v206, 0.2
  %v335 = vmul.f32 %v207, 0.2
  %v336 = vmul.f32 %v208, 0.2
  %v337 = vmul.f32 %v209, 0.2
  %v338 = vmul.f32 %v210, 0.2
  %v339 = vmul.f32 %v211, 0.2
  %v340 = vmul.f32 %v212, 0.2
  %v341 = vmul.f32 %v213, 0.2
  %v342 = vmul.f32 %v214, 0.2
  %v343 = vmul.f32 %v215, 0.2
  %v344 = vmul.f32 %v216, 0.2
  %v345 = vmul.f32 %v217, 0.2
  %v346 = vmul.f32 %v218, 0.2
  %v347 = vmul.f32 %v219, 0.2
  %v348 = vsel %vm220, %v156, %v284
  %v349 = vsel %vm221, %v157, %v285
  %v350 = vsel %vm222, %v158, %v286
  %v351 = vsel %vm223, %v159, %v287
  %v352 = vsel %vm224, %v160, %v288
  %v353 = vsel %vm225, %v161, %v289
  %v354 = vsel %vm226, %v162, %v290
  %v355 = vsel %vm227, %v163, %v291
  %v356 = vsel %vm228, %v164, %v292
  %v357 = vsel %vm229, %v165, %v293
  %v358 = vsel %vm230, %v166, %v294
  %v359 = vsel %vm231, %v167, %v295
  %v360 = vsel %vm232, %v168, %v296
  %v361 = vsel %vm233, %v169, %v297
  %v362 = vsel %vm234, %v170, %v298
  %v363 = vsel %vm235, %v171, %v299
  %v364 = vsel %vm236, %v172, %v300
  %v365 = vsel %vm237, %v173, %v301
  %v366 = vsel %vm238, %v174, %v302
  %v367 = vsel %vm239, %v175, %v303
  %v368 = vsel %vm240, %v176, %v304
  %v369 = vsel %vm241, %v177, %v305
  %v370 = vsel %vm242, %v178, %v306
  %v371 = vsel %vm243, %v179, %v307
  %v372 = vsel %vm244, %v180, %v308
  %v373 = vsel %vm245, %v181, %v309
  %v374 = vsel %vm246, %v182, %v310
  %v375 = vsel %vm247, %v183, %v311
  %v376 = vsel %vm248, %v184, %v312
  %v377 = vsel %vm249, %v185, %v313
  %v378 = vsel %vm250, %v186, %v314
  %v379 = vsel %vm251, %v187, %v315
  %v380 = vsel %vm252, %v188, %v316
  %v381 = vsel %vm253, %v189, %v317
  %v382 = vsel %vm254, %v190, %v318
  %v383 = vsel %vm255, %v191, %v319
  %v384 = vsel %vm256, %v192, %v320
  %v385 = vsel %vm257, %v193, %v321
  %v386 = vsel %vm258, %v194, %v322
  %v387 = vsel %vm259, %v195, %v323
  %v388 = vsel %vm260, %v196, %v324
  %v389 = vsel %vm261, %v197, %v325
  %v390 = vsel %vm262, %v198, %v326
  %v391 = vsel %vm263, %v199, %v327
  %v392 = vsel %vm264, %v200, %v328
  %v393 = vsel %vm265, %v201, %v329
  %v394 = vsel %vm266, %v202, %v330
  %v395 = vsel %vm267, %v203, %v331
  %v396 = vsel %vm268, %v204, %v332
  %v397 = vsel %vm269, %v205, %v333
  %v398 = vsel %vm270, %v206, %v334
  %v399 = vsel %vm271, %v207, %v335
  %v400 = vsel %vm272, %v208, %v336
  %v401 = vsel %vm273, %v209, %v337
  %v402 = vsel %vm274, %v210, %v338
  %v403 = vsel %vm275, %v211, %v339
  %v404 = vsel %vm276, %v212, %v340
  %v405 = vsel %vm277, %v213, %v341
  %v406 = vsel %vm278, %v214, %v342
  %v407 = vsel %vm279, %v215, %v343
  %v408 = vsel %vm280, %v216, %v344
  %v409 = vsel %vm281, %v217, %v345
  %v410 = vsel %vm282, %v218, %v346
  %v411 = vsel %vm283, %v219, %v347
  %v412 = vpack.c.bf16 %v349, %v348
  %v413 = vpack.c.bf16 %v351, %v350
  %v414 = vpack.c.bf16 %v353, %v352
  %v415 = vpack.c.bf16 %v355, %v354
  %v416 = vpack.c.bf16 %v357, %v356
  %v417 = vpack.c.bf16 %v359, %v358
  %v418 = vpack.c.bf16 %v361, %v360
  %v419 = vpack.c.bf16 %v363, %v362
  %v420 = vpack.c.bf16 %v365, %v364
  %v421 = vpack.c.bf16 %v367, %v366
  %v422 = vpack.c.bf16 %v369, %v368
  %v423 = vpack.c.bf16 %v371, %v370
  %v424 = vpack.c.bf16 %v373, %v372
  %v425 = vpack.c.bf16 %v375, %v374
  %v426 = vpack.c.bf16 %v377, %v376
  %v427 = vpack.c.bf16 %v379, %v378
  %v428 = vpack.c.bf16 %v381, %v380
  %v429 = vpack.c.bf16 %v383, %v382
  %v430 = vpack.c.bf16 %v385, %v384
  %v431 = vpack.c.bf16 %v387, %v386
  %v432 = vpack.c.bf16 %v389, %v388
  %v433 = vpack.c.bf16 %v391, %v390
  %v434 = vpack.c.bf16 %v393, %v392
  %v435 = vpack.c.bf16 %v395, %v394
  %v436 = vpack.c.bf16 %v397, %v396
  %v437 = vpack.c.bf16 %v399, %v398
  %v438 = vpack.c.bf16 %v401, %v400
  %v439 = vpack.c.bf16 %v403, %v402
  %v440 = vpack.c.bf16 %v405, %v404
  %v441 = vpack.c.bf16 %v407, %v406
  %v442 = vpack.c.bf16 %v409, %v408
  %v443 = vpack.c.bf16 %v411, %v410
  %v476 = vunpack.c.l.b16 %v412
  %v477 = vunpack.c.h.b16 %v412
  %v478 = vunpack.c.l.b16 %v413
  %v479 = vunpack.c.h.b16 %v413
  %v480 = vunpack.c.l.b16 %v414
  %v481 = vunpack.c.h.b16 %v414
  %v482 = vunpack.c.l.b16 %v415
  %v483 = vunpack.c.h.b16 %v415
  %v484 = vunpack.c.l.b16 %v416
  %v485 = vunpack.c.h.b16 %v416
  %v486 = vunpack.c.l.b16 %v417
  %v487 = vunpack.c.h.b16 %v417
  %v488 = vunpack.c.l.b16 %v418
  %v489 = vunpack.c.h.b16 %v418
  %v490 = vunpack.c.l.b16 %v419
  %v491 = vunpack.c.h.b16 %v419
  %v492 = vunpack.c.l.b16 %v420
  %v493 = vunpack.c.h.b16 %v420
  %v494 = vunpack.c.l.b16 %v421
  %v495 = vunpack.c.h.b16 %v421
  %v496 = vunpack.c.l.b16 %v422
  %v497 = vunpack.c.h.b16 %v422
  %v498 = vunpack.c.l.b16 %v423
  %v499 = vunpack.c.h.b16 %v423
  %v500 = vunpack.c.l.b16 %v424
  %v501 = vunpack.c.h.b16 %v424
  %v502 = vunpack.c.l.b16 %v425
  %v503 = vunpack.c.h.b16 %v425
  %v504 = vunpack.c.l.b16 %v426
  %v505 = vunpack.c.h.b16 %v426
  %v506 = vunpack.c.l.b16 %v427
  %v507 = vunpack.c.h.b16 %v427
  %v508 = vunpack.c.l.b16 %v428
  %v509 = vunpack.c.h.b16 %v428
  %v510 = vunpack.c.l.b16 %v429
  %v511 = vunpack.c.h.b16 %v429
  %v512 = vunpack.c.l.b16 %v430
  %v513 = vunpack.c.h.b16 %v430
  %v514 = vunpack.c.l.b16 %v431
  %v515 = vunpack.c.h.b16 %v431
  %v516 = vunpack.c.l.b16 %v432
  %v517 = vunpack.c.h.b16 %v432
  %v518 = vunpack.c.l.b16 %v433
  %v519 = vunpack.c.h.b16 %v433
  %v520 = vunpack.c.l.b16 %v434
  %v521 = vunpack.c.h.b16 %v434
  %v522 = vunpack.c.l.b16 %v435
  %v523 = vunpack.c.h.b16 %v435
  %v524 = vunpack.c.l.b16 %v436
  %v525 = vunpack.c.h.b16 %v436
  %v526 = vunpack.c.l.b16 %v437
  %v527 = vunpack.c.h.b16 %v437
  %v528 = vunpack.c.l.b16 %v438
  %v529 = vunpack.c.h.b16 %v438
  %v530 = vunpack.c.l.b16 %v439
  %v531 = vunpack.c.h.b16 %v439
  %v532 = vunpack.c.l.b16 %v440
  %v533 = vunpack.c.h.b16 %v440
  %v534 = vunpack.c.l.b16 %v441
  %v535 = vunpack.c.h.b16 %v441
  %v536 = vunpack.c.l.b16 %v442
  %v537 = vunpack.c.h.b16 %v442
  %v538 = vunpack.c.l.b16 %v443
  %v539 = vunpack.c.h.b16 %v443
  %v540 = vpack.c.b16 %v476, %v476
  %v541 = vpack.c.b16 %v477, %v477
  %v542 = vpack.c.b16 %v478, %v478
  %v543 = vpack.c.b16 %v479, %v479
  %v544 = vpack.c.b16 %v480, %v480
  %v545 = vpack.c.b16 %v481, %v481
  %v546 = vpack.c.b16 %v482, %v482
  %v547 = vpack.c.b16 %v483, %v483
  %v548 = vpack.c.b16 %v484, %v484
  %v549 = vpack.c.b16 %v485, %v485
  %v550 = vpack.c.b16 %v486, %v486
  %v551 = vpack.c.b16 %v487, %v487
  %v552 = vpack.c.b16 %v488, %v488
  %v553 = vpack.c.b16 %v489, %v489
  %v554 = vpack.c.b16 %v490, %v490
  %v555 = vpack.c.b16 %v491, %v491
  %v556 = vpack.c.b16 %v492, %v492
  %v557 = vpack.c.b16 %v493, %v493
  %v558 = vpack.c.b16 %v494, %v494
  %v559 = vpack.c.b16 %v495, %v495
  %v560 = vpack.c.b16 %v496, %v496
  %v561 = vpack.c.b16 %v497, %v497
  %v562 = vpack.c.b16 %v498, %v498
  %v563 = vpack.c.b16 %v499, %v499
  %v564 = vpack.c.b16 %v500, %v500
  %v565 = vpack.c.b16 %v501, %v501
  %v566 = vpack.c.b16 %v502, %v502
  %v567 = vpack.c.b16 %v503, %v503
  %v568 = vpack.c.b16 %v504, %v504
  %v569 = vpack.c.b16 %v505, %v505
  %v570 = vpack.c.b16 %v506, %v506
  %v571 = vpack.c.b16 %v507, %v507
  %v572 = vpack.c.b16 %v508, %v508
  %v573 = vpack.c.b16 %v509, %v509
  %v574 = vpack.c.b16 %v510, %v510
  %v575 = vpack.c.b16 %v511, %v511
  %v576 = vpack.c.b16 %v512, %v512
  %v577 = vpack.c.b16 %v513, %v513
  %v578 = vpack.c.b16 %v514, %v514
  %v579 = vpack.c.b16 %v515, %v515
  %v580 = vpack.c.b16 %v516, %v516
  %v581 = vpack.c.b16 %v517, %v517
  %v582 = vpack.c.b16 %v518, %v518
  %v583 = vpack.c.b16 %v519, %v519
  %v584 = vpack.c.b16 %v520, %v520
  %v585 = vpack.c.b16 %v521, %v521
  %v586 = vpack.c.b16 %v522, %v522
  %v587 = vpack.c.b16 %v523, %v523
  %v588 = vpack.c.b16 %v524, %v524
  %v589 = vpack.c.b16 %v525, %v525
  %v590 = vpack.c.b16 %v526, %v526
  %v591 = vpack.c.b16 %v527, %v527
  %v592 = vpack.c.b16 %v528, %v528
  %v593 = vpack.c.b16 %v529, %v529
  %v594 = vpack.c.b16 %v530, %v530
  %v595 = vpack.c.b16 %v531, %v531
  %v596 = vpack.c.b16 %v532, %v532
  %v597 = vpack.c.b16 %v533, %v533
  %v598 = vpack.c.b16 %v534, %v534
  %v599 = vpack.c.b16 %v535, %v535
  %v600 = vpack.c.b16 %v536, %v536
  %v601 = vpack.c.b16 %v537, %v537
  %v602 = vpack.c.b16 %v538, %v538
  %v603 = vpack.c.b16 %v539, %v539
  %668 = vst [vmem:[%s3] sm:$0xf] %v540
  %669 = vst [vmem:[%s3 + $0x4] sm:$0xf] %v541
  %670 = vst [vmem:[%s3 + $0x8] sm:$0xf] %v542
  %671 = vst [vmem:[%s3 + $0xc] sm:$0xf] %v543
  %672 = vst [vmem:[%s3 + $0x10] sm:$0xf] %v544
  %673 = vst [vmem:[%s3 + $0x14] sm:$0xf] %v545
  %674 = vst [vmem:[%s3 + $0x18] sm:$0xf] %v546
  %675 = vst [vmem:[%s3 + $0x1c] sm:$0xf] %v547
  %676 = vst [vmem:[%s3 + $0x20] sm:$0xf] %v548
  %677 = vst [vmem:[%s3 + $0x24] sm:$0xf] %v549
  %678 = vst [vmem:[%s3 + $0x28] sm:$0xf] %v550
  %679 = vst [vmem:[%s3 + $0x2c] sm:$0xf] %v551
  %680 = vst [vmem:[%s3 + $0x30] sm:$0xf] %v552
  %681 = vst [vmem:[%s3 + $0x34] sm:$0xf] %v553
  %682 = vst [vmem:[%s3 + $0x38] sm:$0xf] %v554
  %683 = vst [vmem:[%s3 + $0x3c] sm:$0xf] %v555
  %684 = vst [vmem:[%s3 + $0x40] sm:$0xf] %v556
  %685 = vst [vmem:[%s3 + $0x44] sm:$0xf] %v557
  %686 = vst [vmem:[%s3 + $0x48] sm:$0xf] %v558
  %687 = vst [vmem:[%s3 + $0x4c] sm:$0xf] %v559
  %688 = vst [vmem:[%s3 + $0x50] sm:$0xf] %v560
  %689 = vst [vmem:[%s3 + $0x54] sm:$0xf] %v561
  %690 = vst [vmem:[%s3 + $0x58] sm:$0xf] %v562
  %691 = vst [vmem:[%s3 + $0x5c] sm:$0xf] %v563
  %692 = vst [vmem:[%s3 + $0x60] sm:$0xf] %v564
  %693 = vst [vmem:[%s3 + $0x64] sm:$0xf] %v565
  %694 = vst [vmem:[%s3 + $0x68] sm:$0xf] %v566
  %695 = vst [vmem:[%s3 + $0x6c] sm:$0xf] %v567
  %696 = vst [vmem:[%s3 + $0x70] sm:$0xf] %v568
  %697 = vst [vmem:[%s3 + $0x74] sm:$0xf] %v569
  %698 = vst [vmem:[%s3 + $0x78] sm:$0xf] %v570
  %699 = vst [vmem:[%s3 + $0x7c] sm:$0xf] %v571
  %700 = vst [vmem:[%s3 + $0x80] sm:$0xf] %v572
  %701 = vst [vmem:[%s3 + $0x84] sm:$0xf] %v573
  %702 = vst [vmem:[%s3 + $0x88] sm:$0xf] %v574
  %703 = vst [vmem:[%s3 + $0x8c] sm:$0xf] %v575
  %704 = vst [vmem:[%s3 + $0x90] sm:$0xf] %v576
  %705 = vst [vmem:[%s3 + $0x94] sm:$0xf] %v577
  %706 = vst [vmem:[%s3 + $0x98] sm:$0xf] %v578
  %707 = vst [vmem:[%s3 + $0x9c] sm:$0xf] %v579
  %708 = vst [vmem:[%s3 + $0xa0] sm:$0xf] %v580
  %709 = vst [vmem:[%s3 + $0xa4] sm:$0xf] %v581
  %710 = vst [vmem:[%s3 + $0xa8] sm:$0xf] %v582
  %711 = vst [vmem:[%s3 + $0xac] sm:$0xf] %v583
  %712 = vst [vmem:[%s3 + $0xb0] sm:$0xf] %v584
  %713 = vst [vmem:[%s3 + $0xb4] sm:$0xf] %v585
  %714 = vst [vmem:[%s3 + $0xb8] sm:$0xf] %v586
  %715 = vst [vmem:[%s3 + $0xbc] sm:$0xf] %v587
  %716 = vst [vmem:[%s3 + $0xc0] sm:$0xf] %v588
  %717 = vst [vmem:[%s3 + $0xc4] sm:$0xf] %v589
  %718 = vst [vmem:[%s3 + $0xc8] sm:$0xf] %v590
  %719 = vst [vmem:[%s3 + $0xcc] sm:$0xf] %v591
  %720 = vst [vmem:[%s3 + $0xd0] sm:$0xf] %v592
  %721 = vst [vmem:[%s3 + $0xd4] sm:$0xf] %v593
  %722 = vst [vmem:[%s3 + $0xd8] sm:$0xf] %v594
  %723 = vst [vmem:[%s3 + $0xdc] sm:$0xf] %v595
  %724 = vst [vmem:[%s3 + $0xe0] sm:$0xf] %v596
  %725 = vst [vmem:[%s3 + $0xe4] sm:$0xf] %v597
  %726 = vst [vmem:[%s3 + $0xe8] sm:$0xf] %v598
  %727 = vst [vmem:[%s3 + $0xec] sm:$0xf] %v599
  %728 = vst [vmem:[%s3 + $0xf0] sm:$0xf] %v600
  %729 = vst [vmem:[%s3 + $0xf4] sm:$0xf] %v601
  %730 = vst [vmem:[%s3 + $0xf8] sm:$0xf] %v602
  %731 = vst [vmem:[%s3 + $0xfc] sm:$0xf] %v603
  // Predicated region
  $region14: #{discriminator_forward.10} parent=0 // pred_check
    _
  $region15: #{discriminator_forward.10} parent=0 // pred_check_branch
    %733 = sbr.rel (0) target = $region17
  $region16: #{discriminator_forward.10} parent=0 // pred_region
    _
  $region17: #{discriminator_forward.10} parent=0 // pred_fallthru
    _
  // Predicated region
  $region18: #{discriminator_forward.10} parent=0 // pred_check
    _
  $region19: #{discriminator_forward.10} parent=0 // pred_check_branch
    %735 = sbr.rel (0) target = $region21
  $region20: #{discriminator_forward.10} parent=0 // pred_region
    _
  $region21: #{discriminator_forward.10} parent=0 // pred_fallthru
    _

// kernel: discriminator_forward.11
$region0: #{discriminator_forward.11}
  #allocation0 [shape = 'u32[]', space=smem, size = 0x4, offset = 0x4, fixed_abs, tag = 'smem constant byte address 0x4 - core index']
  #allocation1 [shape = 'u32[144,128]{1,0:T(1,128)}', space=vmem, size = 0x12000, scoped, tag = 'internal scratch']
  %s0 = inlined_call_operand.vmem [shape: bf16[128,256], index: 0, kind: input, shape index: {}]
  %s1 = inlined_call_operand.vmem [shape: bf16[256,128], index: 1, kind: input, shape index: {}]
  %s2 = inlined_call_operand.vmem [shape: f32[128,128], index: 2, kind: output, shape index: {0}]
  %s3 = inlined_call_operand.vmem [shape: f32[2,128], index: 3, kind: output, shape index: {1}]
  %4 = xla_tuple %s2, %s3
  %s5 = sld [smem:[#allocation0]]
  $region30: #{discriminator_forward.11} parent=0
    _
  %s7 = ssub.s32 1, %s5
  %s8 = scalar_select 0, %s7, %s5
  // Predicated region
  $region2: #{discriminator_forward.11} parent=0 // pred_check
    _
  $region3: #{discriminator_forward.11} parent=0 // pred_check_branch
    %10 = sbr.rel (0) target = $region5
  $region4: #{discriminator_forward.11} parent=0 // pred_region
    _
  $region5: #{discriminator_forward.11} parent=0 // pred_fallthru
    _
  // Predicated region
  $region6: #{discriminator_forward.11} parent=0 // pred_check
    _
  $region7: #{discriminator_forward.11} parent=0 // pred_check_branch
    %12 = sbr.rel (0) target = $region9
  $region8: #{discriminator_forward.11} parent=0 // pred_region
    _
  $region9: #{discriminator_forward.11} parent=0 // pred_fallthru
    _
  %v14 = vld [vmem:[%s0] sm:$0xff]
  %v15 = vld [vmem:[%s0 + $0x8] sm:$0xff]
  %v16 = vld [vmem:[%s0 + $0x10] sm:$0xff]
  %v17 = vld [vmem:[%s0 + $0x18] sm:$0xff]
  %v18 = vld [vmem:[%s0 + $0x20] sm:$0xff]
  %v19 = vld [vmem:[%s0 + $0x28] sm:$0xff]
  %v20 = vld [vmem:[%s0 + $0x30] sm:$0xff]
  %v21 = vld [vmem:[%s0 + $0x38] sm:$0xff]
  %v22 = vld [vmem:[%s0 + $0x40] sm:$0xff]
  %v23 = vld [vmem:[%s0 + $0x48] sm:$0xff]
  %v24 = vld [vmem:[%s0 + $0x50] sm:$0xff]
  %v25 = vld [vmem:[%s0 + $0x58] sm:$0xff]
  %v26 = vld [vmem:[%s0 + $0x60] sm:$0xff]
  %v27 = vld [vmem:[%s0 + $0x68] sm:$0xff]
  %v28 = vld [vmem:[%s0 + $0x70] sm:$0xff]
  %v29 = vld [vmem:[%s0 + $0x78] sm:$0xff]
  %v30 = vld [vmem:[%s1] sm:$0xf]
  %v31 = vld [vmem:[%s1 + $0x4] sm:$0xf]
  %v32 = vld [vmem:[%s1 + $0x8] sm:$0xf]
  %v33 = vld [vmem:[%s1 + $0xc] sm:$0xf]
  %v34 = vld [vmem:[%s1 + $0x10] sm:$0xf]
  %v35 = vld [vmem:[%s1 + $0x14] sm:$0xf]
  %v36 = vld [vmem:[%s1 + $0x18] sm:$0xf]
  %v37 = vld [vmem:[%s1 + $0x1c] sm:$0xf]
  %v38 = vld [vmem:[%s1 + $0x20] sm:$0xf]
  %v39 = vld [vmem:[%s1 + $0x24] sm:$0xf]
  %v40 = vld [vmem:[%s1 + $0x28] sm:$0xf]
  %v41 = vld [vmem:[%s1 + $0x2c] sm:$0xf]
  %v42 = vld [vmem:[%s1 + $0x30] sm:$0xf]
  %v43 = vld [vmem:[%s1 + $0x34] sm:$0xf]
  %v44 = vld [vmem:[%s1 + $0x38] sm:$0xf]
  %v45 = vld [vmem:[%s1 + $0x3c] sm:$0xf]
  %v46 = vld [vmem:[%s1 + $0x40] sm:$0xf]
  %v47 = vld [vmem:[%s1 + $0x44] sm:$0xf]
  %v48 = vld [vmem:[%s1 + $0x48] sm:$0xf]
  %v49 = vld [vmem:[%s1 + $0x4c] sm:$0xf]
  %v50 = vld [vmem:[%s1 + $0x50] sm:$0xf]
  %v51 = vld [vmem:[%s1 + $0x54] sm:$0xf]
  %v52 = vld [vmem:[%s1 + $0x58] sm:$0xf]
  %v53 = vld [vmem:[%s1 + $0x5c] sm:$0xf]
  %v54 = vld [vmem:[%s1 + $0x60] sm:$0xf]
  %v55 = vld [vmem:[%s1 + $0x64] sm:$0xf]
  %v56 = vld [vmem:[%s1 + $0x68] sm:$0xf]
  %v57 = vld [vmem:[%s1 + $0x6c] sm:$0xf]
  %v58 = vld [vmem:[%s1 + $0x70] sm:$0xf]
  %v59 = vld [vmem:[%s1 + $0x74] sm:$0xf]
  %v60 = vld [vmem:[%s1 + $0x78] sm:$0xf]
  %v61 = vld [vmem:[%s1 + $0x7c] sm:$0xf]
  %v78 = vunpack.c.l.b16 %v14
  %v79 = vunpack.c.h.b16 %v14
  %v80 = vunpack.c.l.b16 %v15
  %v81 = vunpack.c.h.b16 %v15
  %v82 = vunpack.c.l.b16 %v16
  %v83 = vunpack.c.h.b16 %v16
  %v84 = vunpack.c.l.b16 %v17
  %v85 = vunpack.c.h.b16 %v17
  %v86 = vunpack.c.l.b16 %v18
  %v87 = vunpack.c.h.b16 %v18
  %v88 = vunpack.c.l.b16 %v19
  %v89 = vunpack.c.h.b16 %v19
  %v90 = vunpack.c.l.b16 %v20
  %v91 = vunpack.c.h.b16 %v20
  %v92 = vunpack.c.l.b16 %v21
  %v93 = vunpack.c.h.b16 %v21
  %v94 = vunpack.c.l.b16 %v22
  %v95 = vunpack.c.h.b16 %v22
  %v96 = vunpack.c.l.b16 %v23
  %v97 = vunpack.c.h.b16 %v23
  %v98 = vunpack.c.l.b16 %v24
  %v99 = vunpack.c.h.b16 %v24
  %v100 = vunpack.c.l.b16 %v25
  %v101 = vunpack.c.h.b16 %v25
  %v102 = vunpack.c.l.b16 %v26
  %v103 = vunpack.c.h.b16 %v26
  %v104 = vunpack.c.l.b16 %v27
  %v105 = vunpack.c.h.b16 %v27
  %v106 = vunpack.c.l.b16 %v28
  %v107 = vunpack.c.h.b16 %v28
  %v108 = vunpack.c.l.b16 %v29
  %v109 = vunpack.c.h.b16 %v29
  %v110 = vpack.c.b16 %v80, %v78
  %v111 = vpack.c.b16 %v81, %v79
  %v112 = vpack.c.b16 %v84, %v82
  %v113 = vpack.c.b16 %v85, %v83
  %v114 = vpack.c.b16 %v88, %v86
  %v115 = vpack.c.b16 %v89, %v87
  %v116 = vpack.c.b16 %v92, %v90
  %v117 = vpack.c.b16 %v93, %v91
  %v118 = vpack.c.b16 %v96, %v94
  %v119 = vpack.c.b16 %v97, %v95
  %v120 = vpack.c.b16 %v100, %v98
  %v121 = vpack.c.b16 %v101, %v99
  %v122 = vpack.c.b16 %v104, %v102
  %v123 = vpack.c.b16 %v105, %v103
  %v124 = vpack.c.b16 %v108, %v106
  %v125 = vpack.c.b16 %v109, %v107
  %v174 = vunpack.c.l.b16 %v30
  %v175 = vunpack.c.l.b16 %v31
  %v176 = vunpack.c.l.b16 %v32
  %v177 = vunpack.c.l.b16 %v33
  %v178 = vunpack.c.l.b16 %v34
  %v179 = vunpack.c.l.b16 %v35
  %v180 = vunpack.c.l.b16 %v36
  %v181 = vunpack.c.l.b16 %v37
  %v182 = vunpack.c.l.b16 %v38
  %v183 = vunpack.c.l.b16 %v39
  %v184 = vunpack.c.l.b16 %v40
  %v185 = vunpack.c.l.b16 %v41
  %v186 = vunpack.c.l.b16 %v42
  %v187 = vunpack.c.l.b16 %v43
  %v188 = vunpack.c.l.b16 %v44
  %v189 = vunpack.c.l.b16 %v45
  %v190 = vunpack.c.l.b16 %v46
  %v191 = vunpack.c.l.b16 %v47
  %v192 = vunpack.c.l.b16 %v48
  %v193 = vunpack.c.l.b16 %v49
  %v194 = vunpack.c.l.b16 %v50
  %v195 = vunpack.c.l.b16 %v51
  %v196 = vunpack.c.l.b16 %v52
  %v197 = vunpack.c.l.b16 %v53
  %v198 = vunpack.c.l.b16 %v54
  %v199 = vunpack.c.l.b16 %v55
  %v200 = vunpack.c.l.b16 %v56
  %v201 = vunpack.c.l.b16 %v57
  %v202 = vunpack.c.l.b16 %v58
  %v203 = vunpack.c.l.b16 %v59
  %v204 = vunpack.c.l.b16 %v60
  %v205 = vunpack.c.l.b16 %v61
  %v206 = vpack.c.b16 %v175, %v174
  %v207 = vpack.c.b16 %v177, %v176
  %v208 = vpack.c.b16 %v179, %v178
  %v209 = vpack.c.b16 %v181, %v180
  %v210 = vpack.c.b16 %v183, %v182
  %v211 = vpack.c.b16 %v185, %v184
  %v212 = vpack.c.b16 %v187, %v186
  %v213 = vpack.c.b16 %v189, %v188
  %v214 = vpack.c.b16 %v191, %v190
  %v215 = vpack.c.b16 %v193, %v192
  %v216 = vpack.c.b16 %v195, %v194
  %v217 = vpack.c.b16 %v197, %v196
  %v218 = vpack.c.b16 %v199, %v198
  %v219 = vpack.c.b16 %v201, %v200
  %v220 = vpack.c.b16 %v203, %v202
  %v221 = vpack.c.b16 %v205, %v204
  %238 = vmatprep.subr.bf16.mxu0 0
  %239 = vmatpush1.bf16.msra.mxu0 %v213
  %240 = vmatprep.subr.bf16.mxu0 0
  %241 = vmatpush1.bf16.msra.mxu0 %v212
  %242 = vmatprep.subr.bf16.mxu0 0
  %243 = vmatpush1.bf16.msra.mxu0 %v211
  %244 = vmatprep.subr.bf16.mxu0 0
  %245 = vmatpush1.bf16.msra.mxu0 %v210
  %246 = vmatprep.subr.bf16.mxu0 0
  %247 = vmatpush1.bf16.msra.mxu0 %v209
  %248 = vmatprep.subr.bf16.mxu0 0
  %249 = vmatpush1.bf16.msra.mxu0 %v208
  %250 = vmatprep.subr.bf16.mxu0 0
  %251 = vmatpush1.bf16.msra.mxu0 %v207
  %252 = vmatprep.subr.bf16.mxu0 0
  %253 = vmatpush1.bf16.msra.mxu0 %v206
  %254 = vmatprep.subr.bf16.mxu0 0
  %255 = vmatpush2.bf16.msra.mxu0 %v221
  %256 = vmatprep.subr.bf16.mxu0 0
  %257 = vmatpush2.bf16.msra.mxu0 %v220
  %258 = vmatprep.subr.bf16.mxu0 0
  %259 = vmatpush2.bf16.msra.mxu0 %v219
  %260 = vmatprep.subr.bf16.mxu0 0
  %261 = vmatpush2.bf16.msra.mxu0 %v218
  %262 = vmatprep.subr.bf16.mxu0 0
  %263 = vmatpush2.bf16.msra.mxu0 %v217
  %264 = vmatprep.subr.bf16.mxu0 0
  %265 = vmatpush2.bf16.msra.mxu0 %v216
  %266 = vmatprep.subr.bf16.mxu0 0
  %267 = vmatpush2.bf16.msra.mxu0 %v215
  %268 = vmatprep.subr.bf16.mxu0 0
  %269 = vmatpush2.bf16.msra.mxu0 %v214
  %270 = vmatprep.mubr.bf16.mxu0 %v111
  %271 = vmatmul.mubr.bf16.gmra.mxu0 %v110
  %v272 = vpop.f32.mrf.mxu0
  %v273 = vadd.f32 0.0, %v272
  %v274 = vpop.f32.mrf.mxu0
  %v275 = vpop.f32.mrf.mxu0
  %v276 = vadd.f32 0.0, %v275
  %v277 = vpop.f32.mrf.mxu0
  %278 = vmatprep.mubr.bf16.mxu0 %v113
  %279 = vmatmul.mubr.bf16.gmra.mxu0 %v112
  %v280 = vpop.f32.mrf.mxu0
  %v281 = vadd.f32 0.0, %v280
  %v282 = vpop.f32.mrf.mxu0
  %v283 = vpop.f32.mrf.mxu0
  %v284 = vadd.f32 0.0, %v283
  %v285 = vpop.f32.mrf.mxu0
  %286 = vmatprep.mubr.bf16.mxu0 %v115
  %287 = vmatmul.mubr.bf16.gmra.mxu0 %v114
  %v288 = vpop.f32.mrf.mxu0
  %v289 = vadd.f32 0.0, %v288
  %v290 = vpop.f32.mrf.mxu0
  %v291 = vpop.f32.mrf.mxu0
  %v292 = vadd.f32 0.0, %v291
  %v293 = vpop.f32.mrf.mxu0
  %294 = vmatprep.mubr.bf16.mxu0 %v117
  %295 = vmatmul.mubr.bf16.gmra.mxu0 %v116
  %v296 = vpop.f32.mrf.mxu0
  %v297 = vadd.f32 0.0, %v296
  %v298 = vpop.f32.mrf.mxu0
  %v299 = vpop.f32.mrf.mxu0
  %v300 = vadd.f32 0.0, %v299
  %v301 = vpop.f32.mrf.mxu0
  %302 = vmatprep.mubr.bf16.mxu0 %v119
  %303 = vmatmul.mubr.bf16.gmra.mxu0 %v118
  %v304 = vpop.f32.mrf.mxu0
  %v305 = vadd.f32 0.0, %v304
  %v306 = vpop.f32.mrf.mxu0
  %v307 = vpop.f32.mrf.mxu0
  %v308 = vadd.f32 0.0, %v307
  %v309 = vpop.f32.mrf.mxu0
  %310 = vmatprep.mubr.bf16.mxu0 %v121
  %311 = vmatmul.mubr.bf16.gmra.mxu0 %v120
  %v312 = vpop.f32.mrf.mxu0
  %v313 = vadd.f32 0.0, %v312
  %v314 = vpop.f32.mrf.mxu0
  %v315 = vpop.f32.mrf.mxu0
  %v316 = vadd.f32 0.0, %v315
  %v317 = vpop.f32.mrf.mxu0
  %318 = vmatprep.mubr.bf16.mxu0 %v123
  %319 = vmatmul.mubr.bf16.gmra.mxu0 %v122
  %v320 = vpop.f32.mrf.mxu0
  %v321 = vadd.f32 0.0, %v320
  %v322 = vpop.f32.mrf.mxu0
  %v323 = vpop.f32.mrf.mxu0
  %v324 = vadd.f32 0.0, %v323
  %v325 = vpop.f32.mrf.mxu0
  %326 = vmatprep.mubr.bf16.mxu0 %v125
  %327 = vmatmul.mubr.bf16.gmra.mxu0 %v124
  %v328 = vpop.f32.mrf.mxu0
  %v329 = vadd.f32 0.0, %v328
  %v330 = vpop.f32.mrf.mxu0
  %v331 = vpop.f32.mrf.mxu0
  %v332 = vadd.f32 0.0, %v331
  %v333 = vpop.f32.mrf.mxu0
  %334 = vdwg.mxu0
  %335 = vst [vmem:[%s2] sm:$0xff] %v273
  %336 = vst [vmem:[%s2 + $0x8] sm:$0xff] %v276
  %337 = vst [vmem:[%s2 + $0x10] sm:$0xff] %v281
  %338 = vst [vmem:[%s2 + $0x18] sm:$0xff] %v284
  %339 = vst [vmem:[%s2 + $0x20] sm:$0xff] %v289
  %340 = vst [vmem:[%s2 + $0x28] sm:$0xff] %v292
  %341 = vst [vmem:[%s2 + $0x30] sm:$0xff] %v297
  %342 = vst [vmem:[%s2 + $0x38] sm:$0xff] %v300
  %343 = vst [vmem:[%s2 + $0x40] sm:$0xff] %v305
  %344 = vst [vmem:[%s2 + $0x48] sm:$0xff] %v308
  %345 = vst [vmem:[%s2 + $0x50] sm:$0xff] %v313
  %346 = vst [vmem:[%s2 + $0x58] sm:$0xff] %v316
  %347 = vst [vmem:[%s2 + $0x60] sm:$0xff] %v321
  %348 = vst [vmem:[%s2 + $0x68] sm:$0xff] %v324
  %349 = vst [vmem:[%s2 + $0x70] sm:$0xff] %v329
  %350 = vst [vmem:[%s2 + $0x78] sm:$0xff] %v332
  %p351 = scmp.eq.s32.totalorder 0, 0
  // Predicated region
  $region10: #{discriminator_forward.11} parent=0 // pred_check
    %p352 = pneg %p351
  $region11: #{discriminator_forward.11} parent=0 // pred_check_branch
    %354 = sbr.rel (%p352) target = $region13
  $region12: #{discriminator_forward.11} parent=0 // pred_region
    %355 = vst [vmem:[%s3] sm:$0x3] 0.0
  $region13: #{discriminator_forward.11} parent=0 // pred_fallthru
    _
  %v356 = vadd.f32 %v273, %v276
  %v357 = vadd.f32 %v356, %v281
  %v358 = vadd.f32 %v357, %v284
  %v359 = vadd.f32 %v358, %v289
  %v360 = vadd.f32 %v359, %v292
  %v361 = vadd.f32 %v360, %v297
  %v362 = vadd.f32 %v361, %v300
  %v363 = vadd.f32 %v362, %v305
  %v364 = vadd.f32 %v363, %v308
  %v365 = vadd.f32 %v364, %v313
  %v366 = vadd.f32 %v365, %v316
  %v367 = vadd.f32 %v366, %v321
  %v368 = vadd.f32 %v367, %v324
  %v369 = vadd.f32 %v368, %v329
  %v370 = vadd.f32 %v369, %v332
  %v371 = vrot.slane %v370, 4
  %v372 = vadd.f32 %v370, %v371
  %v373 = vrot.slane %v372, 2
  %v374 = vadd.f32 %v372, %v373
  %v375 = vrot.slane %v374, 1
  %v376 = vadd.f32 %v374, %v375
  %v377 = vmul.f32 %v273, %v273
  %v378 = vmul.f32 %v276, %v276
  %v379 = vmul.f32 %v281, %v281
  %v380 = vmul.f32 %v284, %v284
  %v381 = vmul.f32 %v289, %v289
  %v382 = vmul.f32 %v292, %v292
  %v383 = vmul.f32 %v297, %v297
  %v384 = vmul.f32 %v300, %v300
  %v385 = vmul.f32 %v305, %v305
  %v386 = vmul.f32 %v308, %v308
  %v387 = vmul.f32 %v313, %v313
  %v388 = vmul.f32 %v316, %v316
  %v389 = vmul.f32 %v321, %v321
  %v390 = vmul.f32 %v324, %v324
  %v391 = vmul.f32 %v329, %v329
  %v392 = vmul.f32 %v332, %v332
  %v393 = vadd.f32 %v377, %v378
  %v394 = vadd.f32 %v393, %v379
  %v395 = vadd.f32 %v394, %v380
  %v396 = vadd.f32 %v395, %v381
  %v397 = vadd.f32 %v396, %v382
  %v398 = vadd.f32 %v397, %v383
  %v399 = vadd.f32 %v398, %v384
  %v400 = vadd.f32 %v399, %v385
  %v401 = vadd.f32 %v400, %v386
  %v402 = vadd.f32 %v401, %v387
  %v403 = vadd.f32 %v402, %v388
  %v404 = vadd.f32 %v403, %v389
  %v405 = vadd.f32 %v404, %v390
  %v406 = vadd.f32 %v405, %v391
  %v407 = vadd.f32 %v406, %v392
  %v408 = vrot.slane %v407, 4
  %v409 = vadd.f32 %v407, %v408
  %v410 = vrot.slane %v409, 2
  %v411 = vadd.f32 %v409, %v410
  %v412 = vrot.slane %v411, 1
  %v413 = vadd.f32 %v411, %v412
  %v414 = vld [vmem:[%s3] sm:$0x3]
  %vm415 = vcmask 1040384
  %v416 = vsel %vm415, %v376, %v413
  %v417 = vadd.f32 %v414, %v416
  %418 = vst [vmem:[%s3] sm:$0x3] %v417
  // Predicated region
  $region14: #{discriminator_forward.11} parent=0 // pred_check
    _
  $region15: #{discriminator_forward.11} parent=0 // pred_check_branch
    %420 = sbr.rel (0) target = $region17
  $region16: #{discriminator_forward.11} parent=0 // pred_region
    _
  $region17: #{discriminator_forward.11} parent=0 // pred_fallthru
    _
  // Predicated region
  $region18: #{discriminator_forward.11} parent=0 // pred_check
    _
  $region19: #{discriminator_forward.11} parent=0 // pred_check_branch
    %422 = sbr.rel (0) target = $region21
  $region20: #{discriminator_forward.11} parent=0 // pred_region
    _
  $region21: #{discriminator_forward.11} parent=0 // pred_fallthru
    _
  // Predicated region
  $region22: #{discriminator_forward.11} parent=0 // pred_check
    _
  $region23: #{discriminator_forward.11} parent=0 // pred_check_branch
    %424 = sbr.rel (0) target = $region25
  $region24: #{discriminator_forward.11} parent=0 // pred_region
    _
  $region25: #{discriminator_forward.11} parent=0 // pred_fallthru
    _
  // Predicated region
  $region26: #{discriminator_forward.11} parent=0 // pred_check
    _
  $region27: #{discriminator_forward.11} parent=0 // pred_check_branch
    %426 = sbr.rel (0) target = $region29
  $region28: #{discriminator_forward.11} parent=0 // pred_region
    _
  $region29: #{discriminator_forward.11} parent=0 // pred_fallthru
    _

// kernel: discriminator_forward.12
$region0: #{discriminator_forward.12}
  #allocation0 [shape = 'u32[]', space=smem, size = 0x4, offset = 0x4, fixed_abs, tag = 'smem constant byte address 0x4 - core index']
  #allocation1 [shape = 'u32[144,128]{1,0:T(1,128)}', space=vmem, size = 0x12000, scoped, tag = 'internal scratch']
  %s0 = inlined_call_operand.vmem [shape: f32[128,128], index: 0, kind: input, shape index: {}]
  %s1 = inlined_call_operand.vmem [shape: f32[1,128], index: 1, kind: input, shape index: {}]
  %s2 = inlined_call_operand.vmem [shape: f32[1,128], index: 2, kind: input, shape index: {}]
  %s3 = inlined_call_operand.vmem [shape: bf16[128,128], index: 3, kind: output, shape index: {}]
  %s4 = sld [smem:[#allocation0]]
  $region22: #{discriminator_forward.12} parent=0
    _
  %s6 = ssub.s32 1, %s4
  %s7 = scalar_select 0, %s6, %s4
  // Predicated region
  $region2: #{discriminator_forward.12} parent=0 // pred_check
    _
  $region3: #{discriminator_forward.12} parent=0 // pred_check_branch
    %9 = sbr.rel (0) target = $region5
  $region4: #{discriminator_forward.12} parent=0 // pred_region
    _
  $region5: #{discriminator_forward.12} parent=0 // pred_fallthru
    _
  // Predicated region
  $region6: #{discriminator_forward.12} parent=0 // pred_check
    _
  $region7: #{discriminator_forward.12} parent=0 // pred_check_branch
    %11 = sbr.rel (0) target = $region9
  $region8: #{discriminator_forward.12} parent=0 // pred_region
    _
  $region9: #{discriminator_forward.12} parent=0 // pred_fallthru
    _
  // Predicated region
  $region10: #{discriminator_forward.12} parent=0 // pred_check
    _
  $region11: #{discriminator_forward.12} parent=0 // pred_check_branch
    %13 = sbr.rel (0) target = $region13
  $region12: #{discriminator_forward.12} parent=0 // pred_region
    _
  $region13: #{discriminator_forward.12} parent=0 // pred_fallthru
    _
  %v14 = vld [vmem:[%s0] sm:$0xff]
  %v15 = vld [vmem:[%s0 + $0x8] sm:$0xff]
  %v16 = vld [vmem:[%s0 + $0x10] sm:$0xff]
  %v17 = vld [vmem:[%s0 + $0x18] sm:$0xff]
  %v18 = vld [vmem:[%s0 + $0x20] sm:$0xff]
  %v19 = vld [vmem:[%s0 + $0x28] sm:$0xff]
  %v20 = vld [vmem:[%s0 + $0x30] sm:$0xff]
  %v21 = vld [vmem:[%s0 + $0x38] sm:$0xff]
  %v22 = vld [vmem:[%s0 + $0x40] sm:$0xff]
  %v23 = vld [vmem:[%s0 + $0x48] sm:$0xff]
  %v24 = vld [vmem:[%s0 + $0x50] sm:$0xff]
  %v25 = vld [vmem:[%s0 + $0x58] sm:$0xff]
  %v26 = vld [vmem:[%s0 + $0x60] sm:$0xff]
  %v27 = vld [vmem:[%s0 + $0x68] sm:$0xff]
  %v28 = vld [vmem:[%s0 + $0x70] sm:$0xff]
  %v29 = vld [vmem:[%s0 + $0x78] sm:$0xff]
  %v30 = vld [vmem:[%s1] sm:$0x1]
  %v32 = vlaneseq
  %v33 = vshrl.u32 %v32, 7
  %v34 = vsub.s32 0, %v33
  %v35 = vrot.slane %v30, %v34
  %v37 = vmul.f32 %v14, %v35
  %v38 = vmul.f32 %v15, %v35
  %v39 = vmul.f32 %v16, %v35
  %v40 = vmul.f32 %v17, %v35
  %v41 = vmul.f32 %v18, %v35
  %v42 = vmul.f32 %v19, %v35
  %v43 = vmul.f32 %v20, %v35
  %v44 = vmul.f32 %v21, %v35
  %v45 = vmul.f32 %v22, %v35
  %v46 = vmul.f32 %v23, %v35
  %v47 = vmul.f32 %v24, %v35
  %v48 = vmul.f32 %v25, %v35
  %v49 = vmul.f32 %v26, %v35
  %v50 = vmul.f32 %v27, %v35
  %v51 = vmul.f32 %v28, %v35
  %v52 = vmul.f32 %v29, %v35
  %v53 = vld [vmem:[%s2] sm:$0x1]
  %v55 = vlaneseq
  %v56 = vshrl.u32 %v55, 7
  %v57 = vsub.s32 0, %v56
  %v58 = vrot.slane %v53, %v57
  %v60 = vadd.f32 %v37, %v58
  %v61 = vadd.f32 %v38, %v58
  %v62 = vadd.f32 %v39, %v58
  %v63 = vadd.f32 %v40, %v58
  %v64 = vadd.f32 %v41, %v58
  %v65 = vadd.f32 %v42, %v58
  %v66 = vadd.f32 %v43, %v58
  %v67 = vadd.f32 %v44, %v58
  %v68 = vadd.f32 %v45, %v58
  %v69 = vadd.f32 %v46, %v58
  %v70 = vadd.f32 %v47, %v58
  %v71 = vadd.f32 %v48, %v58
  %v72 = vadd.f32 %v49, %v58
  %v73 = vadd.f32 %v50, %v58
  %v74 = vadd.f32 %v51, %v58
  %v75 = vadd.f32 %v52, %v58
  %vm76 = vcmp.ge.f32.partialorder %v60, 0.0
  %vm77 = vcmp.ge.f32.partialorder %v61, 0.0
  %vm78 = vcmp.ge.f32.partialorder %v62, 0.0
  %vm79 = vcmp.ge.f32.partialorder %v63, 0.0
  %vm80 = vcmp.ge.f32.partialorder %v64, 0.0
  %vm81 = vcmp.ge.f32.partialorder %v65, 0.0
  %vm82 = vcmp.ge.f32.partialorder %v66, 0.0
  %vm83 = vcmp.ge.f32.partialorder %v67, 0.0
  %vm84 = vcmp.ge.f32.partialorder %v68, 0.0
  %vm85 = vcmp.ge.f32.partialorder %v69, 0.0
  %vm86 = vcmp.ge.f32.partialorder %v70, 0.0
  %vm87 = vcmp.ge.f32.partialorder %v71, 0.0
  %vm88 = vcmp.ge.f32.partialorder %v72, 0.0
  %vm89 = vcmp.ge.f32.partialorder %v73, 0.0
  %vm90 = vcmp.ge.f32.partialorder %v74, 0.0
  %vm91 = vcmp.ge.f32.partialorder %v75, 0.0
  %v92 = vmul.f32 %v60, 0.2
  %v93 = vmul.f32 %v61, 0.2
  %v94 = vmul.f32 %v62, 0.2
  %v95 = vmul.f32 %v63, 0.2
  %v96 = vmul.f32 %v64, 0.2
  %v97 = vmul.f32 %v65, 0.2
  %v98 = vmul.f32 %v66, 0.2
  %v99 = vmul.f32 %v67, 0.2
  %v100 = vmul.f32 %v68, 0.2
  %v101 = vmul.f32 %v69, 0.2
  %v102 = vmul.f32 %v70, 0.2
  %v103 = vmul.f32 %v71, 0.2
  %v104 = vmul.f32 %v72, 0.2
  %v105 = vmul.f32 %v73, 0.2
  %v106 = vmul.f32 %v74, 0.2
  %v107 = vmul.f32 %v75, 0.2
  %v108 = vsel %vm76, %v60, %v92
  %v109 = vsel %vm77, %v61, %v93
  %v110 = vsel %vm78, %v62, %v94
  %v111 = vsel %vm79, %v63, %v95
  %v112 = vsel %vm80, %v64, %v96
  %v113 = vsel %vm81, %v65, %v97
  %v114 = vsel %vm82, %v66, %v98
  %v115 = vsel %vm83, %v67, %v99
  %v116 = vsel %vm84, %v68, %v100
  %v117 = vsel %vm85, %v69, %v101
  %v118 = vsel %vm86, %v70, %v102
  %v119 = vsel %vm87, %v71, %v103
  %v120 = vsel %vm88, %v72, %v104
  %v121 = vsel %vm89, %v73, %v105
  %v122 = vsel %vm90, %v74, %v106
  %v123 = vsel %vm91, %v75, %v107
  %v124 = vpack.c.bf16 %v109, %v108
  %v125 = vpack.c.bf16 %v111, %v110
  %v126 = vpack.c.bf16 %v113, %v112
  %v127 = vpack.c.bf16 %v115, %v114
  %v128 = vpack.c.bf16 %v117, %v116
  %v129 = vpack.c.bf16 %v119, %v118
  %v130 = vpack.c.bf16 %v121, %v120
  %v131 = vpack.c.bf16 %v123, %v122
  %v140 = vunpack.c.l.b16 %v124
  %v141 = vunpack.c.h.b16 %v124
  %v142 = vunpack.c.l.b16 %v125
  %v143 = vunpack.c.h.b16 %v125
  %v144 = vunpack.c.l.b16 %v126
  %v145 = vunpack.c.h.b16 %v126
  %v146 = vunpack.c.l.b16 %v127
  %v147 = vunpack.c.h.b16 %v127
  %v148 = vunpack.c.l.b16 %v128
  %v149 = vunpack.c.h.b16 %v128
  %v150 = vunpack.c.l.b16 %v129
  %v151 = vunpack.c.h.b16 %v129
  %v152 = vunpack.c.l.b16 %v130
  %v153 = vunpack.c.h.b16 %v130
  %v154 = vunpack.c.l.b16 %v131
  %v155 = vunpack.c.h.b16 %v131
  %v156 = vpack.c.b16 %v140, %v140
  %v157 = vpack.c.b16 %v141, %v141
  %v158 = vpack.c.b16 %v142, %v142
  %v159 = vpack.c.b16 %v143, %v143
  %v160 = vpack.c.b16 %v144, %v144
  %v161 = vpack.c.b16 %v145, %v145
  %v162 = vpack.c.b16 %v146, %v146
  %v163 = vpack.c.b16 %v147, %v147
  %v164 = vpack.c.b16 %v148, %v148
  %v165 = vpack.c.b16 %v149, %v149
  %v166 = vpack.c.b16 %v150, %v150
  %v167 = vpack.c.b16 %v151, %v151
  %v168 = vpack.c.b16 %v152, %v152
  %v169 = vpack.c.b16 %v153, %v153
  %v170 = vpack.c.b16 %v154, %v154
  %v171 = vpack.c.b16 %v155, %v155
  %188 = vst [vmem:[%s3] sm:$0xf] %v156
  %189 = vst [vmem:[%s3 + $0x4] sm:$0xf] %v157
  %190 = vst [vmem:[%s3 + $0x8] sm:$0xf] %v158
  %191 = vst [vmem:[%s3 + $0xc] sm:$0xf] %v159
  %192 = vst [vmem:[%s3 + $0x10] sm:$0xf] %v160
  %193 = vst [vmem:[%s3 + $0x14] sm:$0xf] %v161
  %194 = vst [vmem:[%s3 + $0x18] sm:$0xf] %v162
  %195 = vst [vmem:[%s3 + $0x1c] sm:$0xf] %v163
  %196 = vst [vmem:[%s3 + $0x20] sm:$0xf] %v164
  %197 = vst [vmem:[%s3 + $0x24] sm:$0xf] %v165
  %198 = vst [vmem:[%s3 + $0x28] sm:$0xf] %v166
  %199 = vst [vmem:[%s3 + $0x2c] sm:$0xf] %v167
  %200 = vst [vmem:[%s3 + $0x30] sm:$0xf] %v168
  %201 = vst [vmem:[%s3 + $0x34] sm:$0xf] %v169
  %202 = vst [vmem:[%s3 + $0x38] sm:$0xf] %v170
  %203 = vst [vmem:[%s3 + $0x3c] sm:$0xf] %v171
  // Predicated region
  $region14: #{discriminator_forward.12} parent=0 // pred_check
    _
  $region15: #{discriminator_forward.12} parent=0 // pred_check_branch
    %205 = sbr.rel (0) target = $region17
  $region16: #{discriminator_forward.12} parent=0 // pred_region
    _
  $region17: #{discriminator_forward.12} parent=0 // pred_fallthru
    _
  // Predicated region
  $region18: #{discriminator_forward.12} parent=0 // pred_check
    _
  $region19: #{discriminator_forward.12} parent=0 // pred_check_branch
    %207 = sbr.rel (0) target = $region21
  $region20: #{discriminator_forward.12} parent=0 // pred_region
    _
  $region21: #{discriminator_forward.12} parent=0 // pred_fallthru
    _

// kernel: discriminator_forward.14
$region0: #{discriminator_forward.14}
  #allocation0 [shape = 'u32[]', space=smem, size = 0x4, offset = 0x4, fixed_abs, tag = 'smem constant byte address 0x4 - core index']
  #allocation1 [shape = 'u32[144,128]{1,0:T(1,128)}', space=vmem, size = 0x12000, scoped, tag = 'internal scratch']
  %s0 = inlined_call_operand.vmem [shape: f32[32,128], index: 0, kind: input, shape index: {}]
  %s1 = inlined_call_operand.vmem [shape: f32[1,128], index: 1, kind: input, shape index: {}]
  %s2 = inlined_call_operand.vmem [shape: f32[1,128], index: 2, kind: input, shape index: {}]
  %s3 = inlined_call_operand.vmem [shape: bf16[32,128], index: 3, kind: output, shape index: {}]
  %s4 = sld [smem:[#allocation0]]
  $region22: #{discriminator_forward.14} parent=0
    _
  %s6 = ssub.s32 1, %s4
  %s7 = scalar_select 0, %s6, %s4
  // Predicated region
  $region2: #{discriminator_forward.14} parent=0 // pred_check
    _
  $region3: #{discriminator_forward.14} parent=0 // pred_check_branch
    %9 = sbr.rel (0) target = $region5
  $region4: #{discriminator_forward.14} parent=0 // pred_region
    _
  $region5: #{discriminator_forward.14} parent=0 // pred_fallthru
    _
  // Predicated region
  $region6: #{discriminator_forward.14} parent=0 // pred_check
    _
  $region7: #{discriminator_forward.14} parent=0 // pred_check_branch
    %11 = sbr.rel (0) target = $region9
  $region8: #{discriminator_forward.14} parent=0 // pred_region
    _
  $region9: #{discriminator_forward.14} parent=0 // pred_fallthru
    _
  // Predicated region
  $region10: #{discriminator_forward.14} parent=0 // pred_check
    _
  $region11: #{discriminator_forward.14} parent=0 // pred_check_branch
    %13 = sbr.rel (0) target = $region13
  $region12: #{discriminator_forward.14} parent=0 // pred_region
    _
  $region13: #{discriminator_forward.14} parent=0 // pred_fallthru
    _
  %v14 = vld [vmem:[%s0] sm:$0xff]
  %v15 = vld [vmem:[%s0 + $0x8] sm:$0xff]
  %v16 = vld [vmem:[%s0 + $0x10] sm:$0xff]
  %v17 = vld [vmem:[%s0 + $0x18] sm:$0xff]
  %v18 = vld [vmem:[%s1] sm:$0x1]
  %v20 = vlaneseq
  %v21 = vshrl.u32 %v20, 7
  %v22 = vsub.s32 0, %v21
  %v23 = vrot.slane %v18, %v22
  %v25 = vmul.f32 %v14, %v23
  %v26 = vmul.f32 %v15, %v23
  %v27 = vmul.f32 %v16, %v23
  %v28 = vmul.f32 %v17, %v23
  %v29 = vld [vmem:[%s2] sm:$0x1]
  %v31 = vlaneseq
  %v32 = vshrl.u32 %v31, 7
  %v33 = vsub.s32 0, %v32
  %v34 = vrot.slane %v29, %v33
  %v36 = vadd.f32 %v25, %v34
  %v37 = vadd.f32 %v26, %v34
  %v38 = vadd.f32 %v27, %v34
  %v39 = vadd.f32 %v28, %v34
  %vm40 = vcmp.ge.f32.partialorder %v36, 0.0
  %vm41 = vcmp.ge.f32.partialorder %v37, 0.0
  %vm42 = vcmp.ge.f32.partialorder %v38, 0.0
  %vm43 = vcmp.ge.f32.partialorder %v39, 0.0
  %v44 = vmul.f32 %v36, 0.2
  %v45 = vmul.f32 %v37, 0.2
  %v46 = vmul.f32 %v38, 0.2
  %v47 = vmul.f32 %v39, 0.2
  %v48 = vsel %vm40, %v36, %v44
  %v49 = vsel %vm41, %v37, %v45
  %v50 = vsel %vm42, %v38, %v46
  %v51 = vsel %vm43, %v39, %v47
  %v52 = vpack.c.bf16 %v49, %v48
  %v53 = vpack.c.bf16 %v51, %v50
  %v56 = vunpack.c.l.b16 %v52
  %v57 = vunpack.c.h.b16 %v52
  %v58 = vunpack.c.l.b16 %v53
  %v59 = vunpack.c.h.b16 %v53
  %v60 = vpack.c.b16 %v56, %v56
  %v61 = vpack.c.b16 %v57, %v57
  %v62 = vpack.c.b16 %v58, %v58
  %v63 = vpack.c.b16 %v59, %v59
  %68 = vst [vmem:[%s3] sm:$0xf] %v60
  %69 = vst [vmem:[%s3 + $0x4] sm:$0xf] %v61
  %70 = vst [vmem:[%s3 + $0x8] sm:$0xf] %v62
  %71 = vst [vmem:[%s3 + $0xc] sm:$0xf] %v63
  // Predicated region
  $region14: #{discriminator_forward.14} parent=0 // pred_check
    _
  $region15: #{discriminator_forward.14} parent=0 // pred_check_branch
    %73 = sbr.rel (0) target = $region17
  $region16: #{discriminator_forward.14} parent=0 // pred_region
    _
  $region17: #{discriminator_forward.14} parent=0 // pred_fallthru
    _
  // Predicated region
  $region18: #{discriminator_forward.14} parent=0 // pred_check
    _
  $region19: #{discriminator_forward.14} parent=0 // pred_check_branch
    %75 = sbr.rel (0) target = $region21
  $region20: #{discriminator_forward.14} parent=0 // pred_region
    _
  $region21: #{discriminator_forward.14} parent=0 // pred_fallthru
    _

// kernel: discriminator_forward.13
$region0: #{discriminator_forward.13}
  #allocation0 [shape = 'u32[]', space=smem, size = 0x4, offset = 0x4, fixed_abs, tag = 'smem constant byte address 0x4 - core index']
  #allocation1 [shape = 'u32[144,128]{1,0:T(1,128)}', space=vmem, size = 0x12000, scoped, tag = 'internal scratch']
  %s0 = inlined_call_operand.vmem [shape: bf16[32,512], index: 0, kind: input, shape index: {}]
  %s1 = inlined_call_operand.vmem [shape: bf16[512,128], index: 1, kind: input, shape index: {}]
  %s2 = inlined_call_operand.vmem [shape: f32[32,128], index: 2, kind: output, shape index: {0}]
  %s3 = inlined_call_operand.vmem [shape: f32[2,128], index: 3, kind: output, shape index: {1}]
  %4 = xla_tuple %s2, %s3
  %s5 = sld [smem:[#allocation0]]
  $region30: #{discriminator_forward.13} parent=0
    _
  %s7 = ssub.s32 1, %s5
  %s8 = scalar_select 0, %s7, %s5
  // Predicated region
  $region2: #{discriminator_forward.13} parent=0 // pred_check
    _
  $region3: #{discriminator_forward.13} parent=0 // pred_check_branch
    %10 = sbr.rel (0) target = $region5
  $region4: #{discriminator_forward.13} parent=0 // pred_region
    _
  $region5: #{discriminator_forward.13} parent=0 // pred_fallthru
    _
  // Predicated region
  $region6: #{discriminator_forward.13} parent=0 // pred_check
    _
  $region7: #{discriminator_forward.13} parent=0 // pred_check_branch
    %12 = sbr.rel (0) target = $region9
  $region8: #{discriminator_forward.13} parent=0 // pred_region
    _
  $region9: #{discriminator_forward.13} parent=0 // pred_fallthru
    _
  %v14 = vld [vmem:[%s0] sm:$0xff]
  %v15 = vld [vmem:[%s0 + $0x8] sm:$0xff]
  %v16 = vld [vmem:[%s0 + $0x10] sm:$0xff]
  %v17 = vld [vmem:[%s0 + $0x18] sm:$0xff]
  %v18 = vld [vmem:[%s0 + $0x20] sm:$0xff]
  %v19 = vld [vmem:[%s0 + $0x28] sm:$0xff]
  %v20 = vld [vmem:[%s0 + $0x30] sm:$0xff]
  %v21 = vld [vmem:[%s0 + $0x38] sm:$0xff]
  %v22 = vld [vmem:[%s1] sm:$0xf]
  %v23 = vld [vmem:[%s1 + $0x4] sm:$0xf]
  %v24 = vld [vmem:[%s1 + $0x8] sm:$0xf]
  %v25 = vld [vmem:[%s1 + $0xc] sm:$0xf]
  %v26 = vld [vmem:[%s1 + $0x10] sm:$0xf]
  %v27 = vld [vmem:[%s1 + $0x14] sm:$0xf]
  %v28 = vld [vmem:[%s1 + $0x18] sm:$0xf]
  %v29 = vld [vmem:[%s1 + $0x1c] sm:$0xf]
  %v30 = vld [vmem:[%s1 + $0x20] sm:$0xf]
  %v31 = vld [vmem:[%s1 + $0x24] sm:$0xf]
  %v32 = vld [vmem:[%s1 + $0x28] sm:$0xf]
  %v33 = vld [vmem:[%s1 + $0x2c] sm:$0xf]
  %v34 = vld [vmem:[%s1 + $0x30] sm:$0xf]
  %v35 = vld [vmem:[%s1 + $0x34] sm:$0xf]
  %v36 = vld [vmem:[%s1 + $0x38] sm:$0xf]
  %v37 = vld [vmem:[%s1 + $0x3c] sm:$0xf]
  %v38 = vld [vmem:[%s1 + $0x40] sm:$0xf]
  %v39 = vld [vmem:[%s1 + $0x44] sm:$0xf]
  %v40 = vld [vmem:[%s1 + $0x48] sm:$0xf]
  %v41 = vld [vmem:[%s1 + $0x4c] sm:$0xf]
  %v42 = vld [vmem:[%s1 + $0x50] sm:$0xf]
  %v43 = vld [vmem:[%s1 + $0x54] sm:$0xf]
  %v44 = vld [vmem:[%s1 + $0x58] sm:$0xf]
  %v45 = vld [vmem:[%s1 + $0x5c] sm:$0xf]
  %v46 = vld [vmem:[%s1 + $0x60] sm:$0xf]
  %v47 = vld [vmem:[%s1 + $0x64] sm:$0xf]
  %v48 = vld [vmem:[%s1 + $0x68] sm:$0xf]
  %v49 = vld [vmem:[%s1 + $0x6c] sm:$0xf]
  %v50 = vld [vmem:[%s1 + $0x70] sm:$0xf]
  %v51 = vld [vmem:[%s1 + $0x74] sm:$0xf]
  %v52 = vld [vmem:[%s1 + $0x78] sm:$0xf]
  %v53 = vld [vmem:[%s1 + $0x7c] sm:$0xf]
  %v54 = vld [vmem:[%s1 + $0x80] sm:$0xf]
  %v55 = vld [vmem:[%s1 + $0x84] sm:$0xf]
  %v56 = vld [vmem:[%s1 + $0x88] sm:$0xf]
  %v57 = vld [vmem:[%s1 + $0x8c] sm:$0xf]
  %v58 = vld [vmem:[%s1 + $0x90] sm:$0xf]
  %v59 = vld [vmem:[%s1 + $0x94] sm:$0xf]
  %v60 = vld [vmem:[%s1 + $0x98] sm:$0xf]
  %v61 = vld [vmem:[%s1 + $0x9c] sm:$0xf]
  %v62 = vld [vmem:[%s1 + $0xa0] sm:$0xf]
  %v63 = vld [vmem:[%s1 + $0xa4] sm:$0xf]
  %v64 = vld [vmem:[%s1 + $0xa8] sm:$0xf]
  %v65 = vld [vmem:[%s1 + $0xac] sm:$0xf]
  %v66 = vld [vmem:[%s1 + $0xb0] sm:$0xf]
  %v67 = vld [vmem:[%s1 + $0xb4] sm:$0xf]
  %v68 = vld [vmem:[%s1 + $0xb8] sm:$0xf]
  %v69 = vld [vmem:[%s1 + $0xbc] sm:$0xf]
  %v70 = vld [vmem:[%s1 + $0xc0] sm:$0xf]
  %v71 = vld [vmem:[%s1 + $0xc4] sm:$0xf]
  %v72 = vld [vmem:[%s1 + $0xc8] sm:$0xf]
  %v73 = vld [vmem:[%s1 + $0xcc] sm:$0xf]
  %v74 = vld [vmem:[%s1 + $0xd0] sm:$0xf]
  %v75 = vld [vmem:[%s1 + $0xd4] sm:$0xf]
  %v76 = vld [vmem:[%s1 + $0xd8] sm:$0xf]
  %v77 = vld [vmem:[%s1 + $0xdc] sm:$0xf]
  %v78 = vld [vmem:[%s1 + $0xe0] sm:$0xf]
  %v79 = vld [vmem:[%s1 + $0xe4] sm:$0xf]
  %v80 = vld [vmem:[%s1 + $0xe8] sm:$0xf]
  %v81 = vld [vmem:[%s1 + $0xec] sm:$0xf]
  %v82 = vld [vmem:[%s1 + $0xf0] sm:$0xf]
  %v83 = vld [vmem:[%s1 + $0xf4] sm:$0xf]
  %v84 = vld [vmem:[%s1 + $0xf8] sm:$0xf]
  %v85 = vld [vmem:[%s1 + $0xfc] sm:$0xf]
  %v94 = vunpack.c.l.b16 %v14
  %v95 = vunpack.c.h.b16 %v14
  %v96 = vunpack.c.l.b16 %v15
  %v97 = vunpack.c.h.b16 %v15
  %v98 = vunpack.c.l.b16 %v16
  %v99 = vunpack.c.h.b16 %v16
  %v100 = vunpack.c.l.b16 %v17
  %v101 = vunpack.c.h.b16 %v17
  %v102 = vunpack.c.l.b16 %v18
  %v103 = vunpack.c.h.b16 %v18
  %v104 = vunpack.c.l.b16 %v19
  %v105 = vunpack.c.h.b16 %v19
  %v106 = vunpack.c.l.b16 %v20
  %v107 = vunpack.c.h.b16 %v20
  %v108 = vunpack.c.l.b16 %v21
  %v109 = vunpack.c.h.b16 %v21
  %v110 = vpack.c.b16 %v98, %v94
  %v111 = vpack.c.b16 %v99, %v95
  %v112 = vpack.c.b16 %v100, %v96
  %v113 = vpack.c.b16 %v101, %v97
  %v114 = vpack.c.b16 %v106, %v102
  %v115 = vpack.c.b16 %v107, %v103
  %v116 = vpack.c.b16 %v108, %v104
  %v117 = vpack.c.b16 %v109, %v105
  %v190 = vunpack.c.l.b16 %v22
  %v191 = vunpack.c.l.b16 %v23
  %v192 = vunpack.c.l.b16 %v24
  %v193 = vunpack.c.l.b16 %v25
  %v194 = vunpack.c.l.b16 %v26
  %v195 = vunpack.c.l.b16 %v27
  %v196 = vunpack.c.l.b16 %v28
  %v197 = vunpack.c.l.b16 %v29
  %v198 = vunpack.c.l.b16 %v30
  %v199 = vunpack.c.l.b16 %v31
  %v200 = vunpack.c.l.b16 %v32
  %v201 = vunpack.c.l.b16 %v33
  %v202 = vunpack.c.l.b16 %v34
  %v203 = vunpack.c.l.b16 %v35
  %v204 = vunpack.c.l.b16 %v36
  %v205 = vunpack.c.l.b16 %v37
  %v206 = vunpack.c.l.b16 %v38
  %v207 = vunpack.c.l.b16 %v39
  %v208 = vunpack.c.l.b16 %v40
  %v209 = vunpack.c.l.b16 %v41
  %v210 = vunpack.c.l.b16 %v42
  %v211 = vunpack.c.l.b16 %v43
  %v212 = vunpack.c.l.b16 %v44
  %v213 = vunpack.c.l.b16 %v45
  %v214 = vunpack.c.l.b16 %v46
  %v215 = vunpack.c.l.b16 %v47
  %v216 = vunpack.c.l.b16 %v48
  %v217 = vunpack.c.l.b16 %v49
  %v218 = vunpack.c.l.b16 %v50
  %v219 = vunpack.c.l.b16 %v51
  %v220 = vunpack.c.l.b16 %v52
  %v221 = vunpack.c.l.b16 %v53
  %v222 = vunpack.c.l.b16 %v54
  %v223 = vunpack.c.l.b16 %v55
  %v224 = vunpack.c.l.b16 %v56
  %v225 = vunpack.c.l.b16 %v57
  %v226 = vunpack.c.l.b16 %v58
  %v227 = vunpack.c.l.b16 %v59
  %v228 = vunpack.c.l.b16 %v60
  %v229 = vunpack.c.l.b16 %v61
  %v230 = vunpack.c.l.b16 %v62
  %v231 = vunpack.c.l.b16 %v63
  %v232 = vunpack.c.l.b16 %v64
  %v233 = vunpack.c.l.b16 %v65
  %v234 = vunpack.c.l.b16 %v66
  %v235 = vunpack.c.l.b16 %v67
  %v236 = vunpack.c.l.b16 %v68
  %v237 = vunpack.c.l.b16 %v69
  %v238 = vunpack.c.l.b16 %v70
  %v239 = vunpack.c.l.b16 %v71
  %v240 = vunpack.c.l.b16 %v72
  %v241 = vunpack.c.l.b16 %v73
  %v242 = vunpack.c.l.b16 %v74
  %v243 = vunpack.c.l.b16 %v75
  %v244 = vunpack.c.l.b16 %v76
  %v245 = vunpack.c.l.b16 %v77
  %v246 = vunpack.c.l.b16 %v78
  %v247 = vunpack.c.l.b16 %v79
  %v248 = vunpack.c.l.b16 %v80
  %v249 = vunpack.c.l.b16 %v81
  %v250 = vunpack.c.l.b16 %v82
  %v251 = vunpack.c.l.b16 %v83
  %v252 = vunpack.c.l.b16 %v84
  %v253 = vunpack.c.l.b16 %v85
  %v254 = vpack.c.b16 %v191, %v190
  %v255 = vpack.c.b16 %v193, %v192
  %v256 = vpack.c.b16 %v195, %v194
  %v257 = vpack.c.b16 %v197, %v196
  %v258 = vpack.c.b16 %v199, %v198
  %v259 = vpack.c.b16 %v201, %v200
  %v260 = vpack.c.b16 %v203, %v202
  %v261 = vpack.c.b16 %v205, %v204
  %v262 = vpack.c.b16 %v207, %v206
  %v263 = vpack.c.b16 %v209, %v208
  %v264 = vpack.c.b16 %v211, %v210
  %v265 = vpack.c.b16 %v213, %v212
  %v266 = vpack.c.b16 %v215, %v214
  %v267 = vpack.c.b16 %v217, %v216
  %v268 = vpack.c.b16 %v219, %v218
  %v269 = vpack.c.b16 %v221, %v220
  %v270 = vpack.c.b16 %v223, %v222
  %v271 = vpack.c.b16 %v225, %v224
  %v272 = vpack.c.b16 %v227, %v226
  %v273 = vpack.c.b16 %v229, %v228
  %v274 = vpack.c.b16 %v231, %v230
  %v275 = vpack.c.b16 %v233, %v232
  %v276 = vpack.c.b16 %v235, %v234
  %v277 = vpack.c.b16 %v237, %v236
  %v278 = vpack.c.b16 %v239, %v238
  %v279 = vpack.c.b16 %v241, %v240
  %v280 = vpack.c.b16 %v243, %v242
  %v281 = vpack.c.b16 %v245, %v244
  %v282 = vpack.c.b16 %v247, %v246
  %v283 = vpack.c.b16 %v249, %v248
  %v284 = vpack.c.b16 %v251, %v250
  %v285 = vpack.c.b16 %v253, %v252
  %318 = vmatprep.subr.bf16.mxu0 0
  %319 = vmatpush1.bf16.msra.mxu0 %v261
  %320 = vmatprep.subr.bf16.mxu0 0
  %321 = vmatpush1.bf16.msra.mxu0 %v260
  %322 = vmatprep.subr.bf16.mxu0 0
  %323 = vmatpush1.bf16.msra.mxu0 %v259
  %324 = vmatprep.subr.bf16.mxu0 0
  %325 = vmatpush1.bf16.msra.mxu0 %v258
  %326 = vmatprep.subr.bf16.mxu0 0
  %327 = vmatpush1.bf16.msra.mxu0 %v257
  %328 = vmatprep.subr.bf16.mxu0 0
  %329 = vmatpush1.bf16.msra.mxu0 %v256
  %330 = vmatprep.subr.bf16.mxu0 0
  %331 = vmatpush1.bf16.msra.mxu0 %v255
  %332 = vmatprep.subr.bf16.mxu0 0
  %333 = vmatpush1.bf16.msra.mxu0 %v254
  %334 = vmatprep.subr.bf16.mxu0 0
  %335 = vmatpush2.bf16.msra.mxu0 %v269
  %336 = vmatprep.subr.bf16.mxu0 0
  %337 = vmatpush2.bf16.msra.mxu0 %v268
  %338 = vmatprep.subr.bf16.mxu0 0
  %339 = vmatpush2.bf16.msra.mxu0 %v267
  %340 = vmatprep.subr.bf16.mxu0 0
  %341 = vmatpush2.bf16.msra.mxu0 %v266
  %342 = vmatprep.subr.bf16.mxu0 0
  %343 = vmatpush2.bf16.msra.mxu0 %v265
  %344 = vmatprep.subr.bf16.mxu0 0
  %345 = vmatpush2.bf16.msra.mxu0 %v264
  %346 = vmatprep.subr.bf16.mxu0 0
  %347 = vmatpush2.bf16.msra.mxu0 %v263
  %348 = vmatprep.subr.bf16.mxu0 0
  %349 = vmatpush2.bf16.msra.mxu0 %v262
  %350 = vmatprep.mubr.bf16.mxu0 %v111
  %351 = vmatmul.mubr.bf16.gmra.mxu0 %v110
  %v352 = vpop.f32.mrf.mxu0
  %v353 = vadd.f32 0.0, %v352
  %v354 = vpop.f32.mrf.mxu0
  %v355 = vpop.f32.mrf.mxu0
  %v356 = vadd.f32 0.0, %v355
  %v357 = vpop.f32.mrf.mxu0
  %358 = vmatprep.mubr.bf16.mxu0 %v115
  %359 = vmatmul.mubr.bf16.gmra.mxu0 %v114
  %v360 = vpop.f32.mrf.mxu0
  %v361 = vadd.f32 0.0, %v360
  %v362 = vpop.f32.mrf.mxu0
  %v363 = vpop.f32.mrf.mxu0
  %v364 = vadd.f32 0.0, %v363
  %v365 = vpop.f32.mrf.mxu0
  %366 = vdwg.mxu0
  %367 = vmatprep.subr.bf16.mxu0 0
  %368 = vmatpush1.bf16.msra.mxu0 %v277
  %369 = vmatprep.subr.bf16.mxu0 0
  %370 = vmatpush1.bf16.msra.mxu0 %v276
  %371 = vmatprep.subr.bf16.mxu0 0
  %372 = vmatpush1.bf16.msra.mxu0 %v275
  %373 = vmatprep.subr.bf16.mxu0 0
  %374 = vmatpush1.bf16.msra.mxu0 %v274
  %375 = vmatprep.subr.bf16.mxu0 0
  %376 = vmatpush1.bf16.msra.mxu0 %v273
  %377 = vmatprep.subr.bf16.mxu0 0
  %378 = vmatpush1.bf16.msra.mxu0 %v272
  %379 = vmatprep.subr.bf16.mxu0 0
  %380 = vmatpush1.bf16.msra.mxu0 %v271
  %381 = vmatprep.subr.bf16.mxu0 0
  %382 = vmatpush1.bf16.msra.mxu0 %v270
  %383 = vmatprep.subr.bf16.mxu0 0
  %384 = vmatpush2.bf16.msra.mxu0 %v285
  %385 = vmatprep.subr.bf16.mxu0 0
  %386 = vmatpush2.bf16.msra.mxu0 %v284
  %387 = vmatprep.subr.bf16.mxu0 0
  %388 = vmatpush2.bf16.msra.mxu0 %v283
  %389 = vmatprep.subr.bf16.mxu0 0
  %390 = vmatpush2.bf16.msra.mxu0 %v282
  %391 = vmatprep.subr.bf16.mxu0 0
  %392 = vmatpush2.bf16.msra.mxu0 %v281
  %393 = vmatprep.subr.bf16.mxu0 0
  %394 = vmatpush2.bf16.msra.mxu0 %v280
  %395 = vmatprep.subr.bf16.mxu0 0
  %396 = vmatpush2.bf16.msra.mxu0 %v279
  %397 = vmatprep.subr.bf16.mxu0 0
  %398 = vmatpush2.bf16.msra.mxu0 %v278
  %399 = vmatprep.mubr.bf16.mxu0 %v113
  %400 = vmatmul.mubr.bf16.gmra.mxu0 %v112
  %v401 = vpop.f32.mrf.mxu0
  %v402 = vadd.f32 %v353, %v401
  %v403 = vpop.f32.mrf.mxu0
  %v404 = vpop.f32.mrf.mxu0
  %v405 = vadd.f32 %v356, %v404
  %v406 = vpop.f32.mrf.mxu0
  %407 = vmatprep.mubr.bf16.mxu0 %v117
  %408 = vmatmul.mubr.bf16.gmra.mxu0 %v116
  %v409 = vpop.f32.mrf.mxu0
  %v410 = vadd.f32 %v361, %v409
  %v411 = vpop.f32.mrf.mxu0
  %v412 = vpop.f32.mrf.mxu0
  %v413 = vadd.f32 %v364, %v412
  %v414 = vpop.f32.mrf.mxu0
  %415 = vdwg.mxu0
  %416 = vst [vmem:[%s2] sm:$0xff] %v402
  %417 = vst [vmem:[%s2 + $0x8] sm:$0xff] %v405
  %418 = vst [vmem:[%s2 + $0x10] sm:$0xff] %v410
  %419 = vst [vmem:[%s2 + $0x18] sm:$0xff] %v413
  %p420 = scmp.eq.s32.totalorder 0, 0
  // Predicated region
  $region10: #{discriminator_forward.13} parent=0 // pred_check
    %p421 = pneg %p420
  $region11: #{discriminator_forward.13} parent=0 // pred_check_branch
    %423 = sbr.rel (%p421) target = $region13
  $region12: #{discriminator_forward.13} parent=0 // pred_region
    %424 = vst [vmem:[%s3] sm:$0x3] 0.0
  $region13: #{discriminator_forward.13} parent=0 // pred_fallthru
    _
  %v425 = vadd.f32 %v402, %v405
  %v426 = vadd.f32 %v425, %v410
  %v427 = vadd.f32 %v426, %v413
  %v428 = vrot.slane %v427, 4
  %v429 = vadd.f32 %v427, %v428
  %v430 = vrot.slane %v429, 2
  %v431 = vadd.f32 %v429, %v430
  %v432 = vrot.slane %v431, 1
  %v433 = vadd.f32 %v431, %v432
  %v434 = vmul.f32 %v402, %v402
  %v435 = vmul.f32 %v405, %v405
  %v436 = vmul.f32 %v410, %v410
  %v437 = vmul.f32 %v413, %v413
  %v438 = vadd.f32 %v434, %v435
  %v439 = vadd.f32 %v438, %v436
  %v440 = vadd.f32 %v439, %v437
  %v441 = vrot.slane %v440, 4
  %v442 = vadd.f32 %v440, %v441
  %v443 = vrot.slane %v442, 2
  %v444 = vadd.f32 %v442, %v443
  %v445 = vrot.slane %v444, 1
  %v446 = vadd.f32 %v444, %v445
  %v447 = vld [vmem:[%s3] sm:$0x3]
  %vm448 = vcmask 1040384
  %v449 = vsel %vm448, %v433, %v446
  %v450 = vadd.f32 %v447, %v449
  %451 = vst [vmem:[%s3] sm:$0x3] %v450
  // Predicated region
  $region14: #{discriminator_forward.13} parent=0 // pred_check
    _
  $region15: #{discriminator_forward.13} parent=0 // pred_check_branch
    %453 = sbr.rel (0) target = $region17
  $region16: #{discriminator_forward.13} parent=0 // pred_region
    _
  $region17: #{discriminator_forward.13} parent=0 // pred_fallthru
    _
  // Predicated region
  $region18: #{discriminator_forward.13} parent=0 // pred_check
    _
  $region19: #{discriminator_forward.13} parent=0 // pred_check_branch
    %455 = sbr.rel (0) target = $region21
  $region20: #{discriminator_forward.13} parent=0 // pred_region
    _
  $region21: #{discriminator_forward.13} parent=0 // pred_fallthru
    _
  // Predicated region
  $region22: #{discriminator_forward.13} parent=0 // pred_check
    _
  $region23: #{discriminator_forward.13} parent=0 // pred_check_branch
    %457 = sbr.rel (0) target = $region25
  $region24: #{discriminator_forward.13} parent=0 // pred_region
    _
  $region25: #{discriminator_forward.13} parent=0 // pred_fallthru
    _
  // Predicated region
  $region26: #{discriminator_forward.13} parent=0 // pred_check
    _
  $region27: #{discriminator_forward.13} parent=0 // pred_check_branch
    %459 = sbr.rel (0) target = $region29
  $region28: #{discriminator_forward.13} parent=0 // pred_region
    _
  $region29: #{discriminator_forward.13} parent=0 // pred_fallthru
    _

// kernel: discriminator_forward.15
$region0: #{discriminator_forward.15}
  #allocation0 [shape = 'u32[]', space=smem, size = 0x4, offset = 0x4, fixed_abs, tag = 'smem constant byte address 0x4 - core index']
  #allocation1 [shape = 'u32[144,128]{1,0:T(1,128)}', space=vmem, size = 0x12000, scoped, tag = 'internal scratch']
  %s0 = inlined_call_operand.vmem [shape: bf16[8,1024], index: 0, kind: input, shape index: {}]
  %s1 = inlined_call_operand.vmem [shape: bf16[1024,128], index: 1, kind: input, shape index: {}]
  %s2 = inlined_call_operand.vmem [shape: f32[8,128], index: 2, kind: output, shape index: {}]
  %s3 = sld [smem:[#allocation0]]
  $region18: #{discriminator_forward.15} parent=0
    _
  %s5 = ssub.s32 1, %s3
  %s6 = scalar_select 0, %s5, %s3
  // Predicated region
  $region2: #{discriminator_forward.15} parent=0 // pred_check
    _
  $region3: #{discriminator_forward.15} parent=0 // pred_check_branch
    %8 = sbr.rel (0) target = $region5
  $region4: #{discriminator_forward.15} parent=0 // pred_region
    _
  $region5: #{discriminator_forward.15} parent=0 // pred_fallthru
    _
  // Predicated region
  $region6: #{discriminator_forward.15} parent=0 // pred_check
    _
  $region7: #{discriminator_forward.15} parent=0 // pred_check_branch
    %10 = sbr.rel (0) target = $region9
  $region8: #{discriminator_forward.15} parent=0 // pred_region
    _
  $region9: #{discriminator_forward.15} parent=0 // pred_fallthru
    _
  %v12 = vld [vmem:[%s0] sm:$0xff]
  %v13 = vld [vmem:[%s0 + $0x8] sm:$0xff]
  %v14 = vld [vmem:[%s0 + $0x10] sm:$0xff]
  %v15 = vld [vmem:[%s0 + $0x18] sm:$0xff]
  %v16 = vld [vmem:[%s1] sm:$0xf]
  %v17 = vld [vmem:[%s1 + $0x4] sm:$0xf]
  %v18 = vld [vmem:[%s1 + $0x8] sm:$0xf]
  %v19 = vld [vmem:[%s1 + $0xc] sm:$0xf]
  %v20 = vld [vmem:[%s1 + $0x10] sm:$0xf]
  %v21 = vld [vmem:[%s1 + $0x14] sm:$0xf]
  %v22 = vld [vmem:[%s1 + $0x18] sm:$0xf]
  %v23 = vld [vmem:[%s1 + $0x1c] sm:$0xf]
  %v24 = vld [vmem:[%s1 + $0x20] sm:$0xf]
  %v25 = vld [vmem:[%s1 + $0x24] sm:$0xf]
  %v26 = vld [vmem:[%s1 + $0x28] sm:$0xf]
  %v27 = vld [vmem:[%s1 + $0x2c] sm:$0xf]
  %v28 = vld [vmem:[%s1 + $0x30] sm:$0xf]
  %v29 = vld [vmem:[%s1 + $0x34] sm:$0xf]
  %v30 = vld [vmem:[%s1 + $0x38] sm:$0xf]
  %v31 = vld [vmem:[%s1 + $0x3c] sm:$0xf]
  %v32 = vld [vmem:[%s1 + $0x40] sm:$0xf]
  %v33 = vld [vmem:[%s1 + $0x44] sm:$0xf]
  %v34 = vld [vmem:[%s1 + $0x48] sm:$0xf]
  %v35 = vld [vmem:[%s1 + $0x4c] sm:$0xf]
  %v36 = vld [vmem:[%s1 + $0x50] sm:$0xf]
  %v37 = vld [vmem:[%s1 + $0x54] sm:$0xf]
  %v38 = vld [vmem:[%s1 + $0x58] sm:$0xf]
  %v39 = vld [vmem:[%s1 + $0x5c] sm:$0xf]
  %v40 = vld [vmem:[%s1 + $0x60] sm:$0xf]
  %v41 = vld [vmem:[%s1 + $0x64] sm:$0xf]
  %v42 = vld [vmem:[%s1 + $0x68] sm:$0xf]
  %v43 = vld [vmem:[%s1 + $0x6c] sm:$0xf]
  %v44 = vld [vmem:[%s1 + $0x70] sm:$0xf]
  %v45 = vld [vmem:[%s1 + $0x74] sm:$0xf]
  %v46 = vld [vmem:[%s1 + $0x78] sm:$0xf]
  %v47 = vld [vmem:[%s1 + $0x7c] sm:$0xf]
  %v48 = vld [vmem:[%s1 + $0x80] sm:$0xf]
  %v49 = vld [vmem:[%s1 + $0x84] sm:$0xf]
  %v50 = vld [vmem:[%s1 + $0x88] sm:$0xf]
  %v51 = vld [vmem:[%s1 + $0x8c] sm:$0xf]
  %v52 = vld [vmem:[%s1 + $0x90] sm:$0xf]
  %v53 = vld [vmem:[%s1 + $0x94] sm:$0xf]
  %v54 = vld [vmem:[%s1 + $0x98] sm:$0xf]
  %v55 = vld [vmem:[%s1 + $0x9c] sm:$0xf]
  %v56 = vld [vmem:[%s1 + $0xa0] sm:$0xf]
  %v57 = vld [vmem:[%s1 + $0xa4] sm:$0xf]
  %v58 = vld [vmem:[%s1 + $0xa8] sm:$0xf]
  %v59 = vld [vmem:[%s1 + $0xac] sm:$0xf]
  %v60 = vld [vmem:[%s1 + $0xb0] sm:$0xf]
  %v61 = vld [vmem:[%s1 + $0xb4] sm:$0xf]
  %v62 = vld [vmem:[%s1 + $0xb8] sm:$0xf]
  %v63 = vld [vmem:[%s1 + $0xbc] sm:$0xf]
  %v64 = vld [vmem:[%s1 + $0xc0] sm:$0xf]
  %v65 = vld [vmem:[%s1 + $0xc4] sm:$0xf]
  %v66 = vld [vmem:[%s1 + $0xc8] sm:$0xf]
  %v67 = vld [vmem:[%s1 + $0xcc] sm:$0xf]
  %v68 = vld [vmem:[%s1 + $0xd0] sm:$0xf]
  %v69 = vld [vmem:[%s1 + $0xd4] sm:$0xf]
  %v70 = vld [vmem:[%s1 + $0xd8] sm:$0xf]
  %v71 = vld [vmem:[%s1 + $0xdc] sm:$0xf]
  %v72 = vld [vmem:[%s1 + $0xe0] sm:$0xf]
  %v73 = vld [vmem:[%s1 + $0xe4] sm:$0xf]
  %v74 = vld [vmem:[%s1 + $0xe8] sm:$0xf]
  %v75 = vld [vmem:[%s1 + $0xec] sm:$0xf]
  %v76 = vld [vmem:[%s1 + $0xf0] sm:$0xf]
  %v77 = vld [vmem:[%s1 + $0xf4] sm:$0xf]
  %v78 = vld [vmem:[%s1 + $0xf8] sm:$0xf]
  %v79 = vld [vmem:[%s1 + $0xfc] sm:$0xf]
  %v80 = vld [vmem:[%s1 + $0x100] sm:$0xf]
  %v81 = vld [vmem:[%s1 + $0x104] sm:$0xf]
  %v82 = vld [vmem:[%s1 + $0x108] sm:$0xf]
  %v83 = vld [vmem:[%s1 + $0x10c] sm:$0xf]
  %v84 = vld [vmem:[%s1 + $0x110] sm:$0xf]
  %v85 = vld [vmem:[%s1 + $0x114] sm:$0xf]
  %v86 = vld [vmem:[%s1 + $0x118] sm:$0xf]
  %v87 = vld [vmem:[%s1 + $0x11c] sm:$0xf]
  %v88 = vld [vmem:[%s1 + $0x120] sm:$0xf]
  %v89 = vld [vmem:[%s1 + $0x124] sm:$0xf]
  %v90 = vld [vmem:[%s1 + $0x128] sm:$0xf]
  %v91 = vld [vmem:[%s1 + $0x12c] sm:$0xf]
  %v92 = vld [vmem:[%s1 + $0x130] sm:$0xf]
  %v93 = vld [vmem:[%s1 + $0x134] sm:$0xf]
  %v94 = vld [vmem:[%s1 + $0x138] sm:$0xf]
  %v95 = vld [vmem:[%s1 + $0x13c] sm:$0xf]
  %v96 = vld [vmem:[%s1 + $0x140] sm:$0xf]
  %v97 = vld [vmem:[%s1 + $0x144] sm:$0xf]
  %v98 = vld [vmem:[%s1 + $0x148] sm:$0xf]
  %v99 = vld [vmem:[%s1 + $0x14c] sm:$0xf]
  %v100 = vld [vmem:[%s1 + $0x150] sm:$0xf]
  %v101 = vld [vmem:[%s1 + $0x154] sm:$0xf]
  %v102 = vld [vmem:[%s1 + $0x158] sm:$0xf]
  %v103 = vld [vmem:[%s1 + $0x15c] sm:$0xf]
  %v104 = vld [vmem:[%s1 + $0x160] sm:$0xf]
  %v105 = vld [vmem:[%s1 + $0x164] sm:$0xf]
  %v106 = vld [vmem:[%s1 + $0x168] sm:$0xf]
  %v107 = vld [vmem:[%s1 + $0x16c] sm:$0xf]
  %v108 = vld [vmem:[%s1 + $0x170] sm:$0xf]
  %v109 = vld [vmem:[%s1 + $0x174] sm:$0xf]
  %v110 = vld [vmem:[%s1 + $0x178] sm:$0xf]
  %v111 = vld [vmem:[%s1 + $0x17c] sm:$0xf]
  %v112 = vld [vmem:[%s1 + $0x180] sm:$0xf]
  %v113 = vld [vmem:[%s1 + $0x184] sm:$0xf]
  %v114 = vld [vmem:[%s1 + $0x188] sm:$0xf]
  %v115 = vld [vmem:[%s1 + $0x18c] sm:$0xf]
  %v116 = vld [vmem:[%s1 + $0x190] sm:$0xf]
  %v117 = vld [vmem:[%s1 + $0x194] sm:$0xf]
  %v118 = vld [vmem:[%s1 + $0x198] sm:$0xf]
  %v119 = vld [vmem:[%s1 + $0x19c] sm:$0xf]
  %v120 = vld [vmem:[%s1 + $0x1a0] sm:$0xf]
  %v121 = vld [vmem:[%s1 + $0x1a4] sm:$0xf]
  %v122 = vld [vmem:[%s1 + $0x1a8] sm:$0xf]
  %v123 = vld [vmem:[%s1 + $0x1ac] sm:$0xf]
  %v124 = vld [vmem:[%s1 + $0x1b0] sm:$0xf]
  %v125 = vld [vmem:[%s1 + $0x1b4] sm:$0xf]
  %v126 = vld [vmem:[%s1 + $0x1b8] sm:$0xf]
  %v127 = vld [vmem:[%s1 + $0x1bc] sm:$0xf]
  %v128 = vld [vmem:[%s1 + $0x1c0] sm:$0xf]
  %v129 = vld [vmem:[%s1 + $0x1c4] sm:$0xf]
  %v130 = vld [vmem:[%s1 + $0x1c8] sm:$0xf]
  %v131 = vld [vmem:[%s1 + $0x1cc] sm:$0xf]
  %v132 = vld [vmem:[%s1 + $0x1d0] sm:$0xf]
  %v133 = vld [vmem:[%s1 + $0x1d4] sm:$0xf]
  %v134 = vld [vmem:[%s1 + $0x1d8] sm:$0xf]
  %v135 = vld [vmem:[%s1 + $0x1dc] sm:$0xf]
  %v136 = vld [vmem:[%s1 + $0x1e0] sm:$0xf]
  %v137 = vld [vmem:[%s1 + $0x1e4] sm:$0xf]
  %v138 = vld [vmem:[%s1 + $0x1e8] sm:$0xf]
  %v139 = vld [vmem:[%s1 + $0x1ec] sm:$0xf]
  %v140 = vld [vmem:[%s1 + $0x1f0] sm:$0xf]
  %v141 = vld [vmem:[%s1 + $0x1f4] sm:$0xf]
  %v142 = vld [vmem:[%s1 + $0x1f8] sm:$0xf]
  %v143 = vld [vmem:[%s1 + $0x1fc] sm:$0xf]
  %v148 = vunpack.c.l.b16 %v12
  %v149 = vunpack.c.h.b16 %v12
  %v150 = vunpack.c.l.b16 %v13
  %v151 = vunpack.c.h.b16 %v13
  %v152 = vunpack.c.l.b16 %v14
  %v153 = vunpack.c.h.b16 %v14
  %v154 = vunpack.c.l.b16 %v15
  %v155 = vunpack.c.h.b16 %v15
  %v156 = vpack.c.b16 %v148, %v148
  %v157 = vpack.c.b16 %v149, %v149
  %v158 = vpack.c.b16 %v150, %v150
  %v159 = vpack.c.b16 %v151, %v151
  %v160 = vpack.c.b16 %v152, %v152
  %v161 = vpack.c.b16 %v153, %v153
  %v162 = vpack.c.b16 %v154, %v154
  %v163 = vpack.c.b16 %v155, %v155
  %v300 = vunpack.c.l.b16 %v16
  %v301 = vunpack.c.l.b16 %v17
  %v302 = vunpack.c.l.b16 %v18
  %v303 = vunpack.c.l.b16 %v19
  %v304 = vunpack.c.l.b16 %v20
  %v305 = vunpack.c.l.b16 %v21
  %v306 = vunpack.c.l.b16 %v22
  %v307 = vunpack.c.l.b16 %v23
  %v308 = vunpack.c.l.b16 %v24
  %v309 = vunpack.c.l.b16 %v25
  %v310 = vunpack.c.l.b16 %v26
  %v311 = vunpack.c.l.b16 %v27
  %v312 = vunpack.c.l.b16 %v28
  %v313 = vunpack.c.l.b16 %v29
  %v314 = vunpack.c.l.b16 %v30
  %v315 = vunpack.c.l.b16 %v31
  %v316 = vunpack.c.l.b16 %v32
  %v317 = vunpack.c.l.b16 %v33
  %v318 = vunpack.c.l.b16 %v34
  %v319 = vunpack.c.l.b16 %v35
  %v320 = vunpack.c.l.b16 %v36
  %v321 = vunpack.c.l.b16 %v37
  %v322 = vunpack.c.l.b16 %v38
  %v323 = vunpack.c.l.b16 %v39
  %v324 = vunpack.c.l.b16 %v40
  %v325 = vunpack.c.l.b16 %v41
  %v326 = vunpack.c.l.b16 %v42
  %v327 = vunpack.c.l.b16 %v43
  %v328 = vunpack.c.l.b16 %v44
  %v329 = vunpack.c.l.b16 %v45
  %v330 = vunpack.c.l.b16 %v46
  %v331 = vunpack.c.l.b16 %v47
  %v332 = vunpack.c.l.b16 %v48
  %v333 = vunpack.c.l.b16 %v49
  %v334 = vunpack.c.l.b16 %v50
  %v335 = vunpack.c.l.b16 %v51
  %v336 = vunpack.c.l.b16 %v52
  %v337 = vunpack.c.l.b16 %v53
  %v338 = vunpack.c.l.b16 %v54
  %v339 = vunpack.c.l.b16 %v55
  %v340 = vunpack.c.l.b16 %v56
  %v341 = vunpack.c.l.b16 %v57
  %v342 = vunpack.c.l.b16 %v58
  %v343 = vunpack.c.l.b16 %v59
  %v344 = vunpack.c.l.b16 %v60
  %v345 = vunpack.c.l.b16 %v61
  %v346 = vunpack.c.l.b16 %v62
  %v347 = vunpack.c.l.b16 %v63
  %v348 = vunpack.c.l.b16 %v64
  %v349 = vunpack.c.l.b16 %v65
  %v350 = vunpack.c.l.b16 %v66
  %v351 = vunpack.c.l.b16 %v67
  %v352 = vunpack.c.l.b16 %v68
  %v353 = vunpack.c.l.b16 %v69
  %v354 = vunpack.c.l.b16 %v70
  %v355 = vunpack.c.l.b16 %v71
  %v356 = vunpack.c.l.b16 %v72
  %v357 = vunpack.c.l.b16 %v73
  %v358 = vunpack.c.l.b16 %v74
  %v359 = vunpack.c.l.b16 %v75
  %v360 = vunpack.c.l.b16 %v76
  %v361 = vunpack.c.l.b16 %v77
  %v362 = vunpack.c.l.b16 %v78
  %v363 = vunpack.c.l.b16 %v79
  %v364 = vunpack.c.l.b16 %v80
  %v365 = vunpack.c.l.b16 %v81
  %v366 = vunpack.c.l.b16 %v82
  %v367 = vunpack.c.l.b16 %v83
  %v368 = vunpack.c.l.b16 %v84
  %v369 = vunpack.c.l.b16 %v85
  %v370 = vunpack.c.l.b16 %v86
  %v371 = vunpack.c.l.b16 %v87
  %v372 = vunpack.c.l.b16 %v88
  %v373 = vunpack.c.l.b16 %v89
  %v374 = vunpack.c.l.b16 %v90
  %v375 = vunpack.c.l.b16 %v91
  %v376 = vunpack.c.l.b16 %v92
  %v377 = vunpack.c.l.b16 %v93
  %v378 = vunpack.c.l.b16 %v94
  %v379 = vunpack.c.l.b16 %v95
  %v380 = vunpack.c.l.b16 %v96
  %v381 = vunpack.c.l.b16 %v97
  %v382 = vunpack.c.l.b16 %v98
  %v383 = vunpack.c.l.b16 %v99
  %v384 = vunpack.c.l.b16 %v100
  %v385 = vunpack.c.l.b16 %v101
  %v386 = vunpack.c.l.b16 %v102
  %v387 = vunpack.c.l.b16 %v103
  %v388 = vunpack.c.l.b16 %v104
  %v389 = vunpack.c.l.b16 %v105
  %v390 = vunpack.c.l.b16 %v106
  %v391 = vunpack.c.l.b16 %v107
  %v392 = vunpack.c.l.b16 %v108
  %v393 = vunpack.c.l.b16 %v109
  %v394 = vunpack.c.l.b16 %v110
  %v395 = vunpack.c.l.b16 %v111
  %v396 = vunpack.c.l.b16 %v112
  %v397 = vunpack.c.l.b16 %v113
  %v398 = vunpack.c.l.b16 %v114
  %v399 = vunpack.c.l.b16 %v115
  %v400 = vunpack.c.l.b16 %v116
  %v401 = vunpack.c.l.b16 %v117
  %v402 = vunpack.c.l.b16 %v118
  %v403 = vunpack.c.l.b16 %v119
  %v404 = vunpack.c.l.b16 %v120
  %v405 = vunpack.c.l.b16 %v121
  %v406 = vunpack.c.l.b16 %v122
  %v407 = vunpack.c.l.b16 %v123
  %v408 = vunpack.c.l.b16 %v124
  %v409 = vunpack.c.l.b16 %v125
  %v410 = vunpack.c.l.b16 %v126
  %v411 = vunpack.c.l.b16 %v127
  %v412 = vunpack.c.l.b16 %v128
  %v413 = vunpack.c.l.b16 %v129
  %v414 = vunpack.c.l.b16 %v130
  %v415 = vunpack.c.l.b16 %v131
  %v416 = vunpack.c.l.b16 %v132
  %v417 = vunpack.c.l.b16 %v133
  %v418 = vunpack.c.l.b16 %v134
  %v419 = vunpack.c.l.b16 %v135
  %v420 = vunpack.c.l.b16 %v136
  %v421 = vunpack.c.l.b16 %v137
  %v422 = vunpack.c.l.b16 %v138
  %v423 = vunpack.c.l.b16 %v139
  %v424 = vunpack.c.l.b16 %v140
  %v425 = vunpack.c.l.b16 %v141
  %v426 = vunpack.c.l.b16 %v142
  %v427 = vunpack.c.l.b16 %v143
  %v428 = vpack.c.b16 %v301, %v300
  %v429 = vpack.c.b16 %v303, %v302
  %v430 = vpack.c.b16 %v305, %v304
  %v431 = vpack.c.b16 %v307, %v306
  %v432 = vpack.c.b16 %v309, %v308
  %v433 = vpack.c.b16 %v311, %v310
  %v434 = vpack.c.b16 %v313, %v312
  %v435 = vpack.c.b16 %v315, %v314
  %v436 = vpack.c.b16 %v317, %v316
  %v437 = vpack.c.b16 %v319, %v318
  %v438 = vpack.c.b16 %v321, %v320
  %v439 = vpack.c.b16 %v323, %v322
  %v440 = vpack.c.b16 %v325, %v324
  %v441 = vpack.c.b16 %v327, %v326
  %v442 = vpack.c.b16 %v329, %v328
  %v443 = vpack.c.b16 %v331, %v330
  %v444 = vpack.c.b16 %v333, %v332
  %v445 = vpack.c.b16 %v335, %v334
  %v446 = vpack.c.b16 %v337, %v336
  %v447 = vpack.c.b16 %v339, %v338
  %v448 = vpack.c.b16 %v341, %v340
  %v449 = vpack.c.b16 %v343, %v342
  %v450 = vpack.c.b16 %v345, %v344
  %v451 = vpack.c.b16 %v347, %v346
  %v452 = vpack.c.b16 %v349, %v348
  %v453 = vpack.c.b16 %v351, %v350
  %v454 = vpack.c.b16 %v353, %v352
  %v455 = vpack.c.b16 %v355, %v354
  %v456 = vpack.c.b16 %v357, %v356
  %v457 = vpack.c.b16 %v359, %v358
  %v458 = vpack.c.b16 %v361, %v360
  %v459 = vpack.c.b16 %v363, %v362
  %v460 = vpack.c.b16 %v365, %v364
  %v461 = vpack.c.b16 %v367, %v366
  %v462 = vpack.c.b16 %v369, %v368
  %v463 = vpack.c.b16 %v371, %v370
  %v464 = vpack.c.b16 %v373, %v372
  %v465 = vpack.c.b16 %v375, %v374
  %v466 = vpack.c.b16 %v377, %v376
  %v467 = vpack.c.b16 %v379, %v378
  %v468 = vpack.c.b16 %v381, %v380
  %v469 = vpack.c.b16 %v383, %v382
  %v470 = vpack.c.b16 %v385, %v384
  %v471 = vpack.c.b16 %v387, %v386
  %v472 = vpack.c.b16 %v389, %v388
  %v473 = vpack.c.b16 %v391, %v390
  %v474 = vpack.c.b16 %v393, %v392
  %v475 = vpack.c.b16 %v395, %v394
  %v476 = vpack.c.b16 %v397, %v396
  %v477 = vpack.c.b16 %v399, %v398
  %v478 = vpack.c.b16 %v401, %v400
  %v479 = vpack.c.b16 %v403, %v402
  %v480 = vpack.c.b16 %v405, %v404
  %v481 = vpack.c.b16 %v407, %v406
  %v482 = vpack.c.b16 %v409, %v408
  %v483 = vpack.c.b16 %v411, %v410
  %v484 = vpack.c.b16 %v413, %v412
  %v485 = vpack.c.b16 %v415, %v414
  %v486 = vpack.c.b16 %v417, %v416
  %v487 = vpack.c.b16 %v419, %v418
  %v488 = vpack.c.b16 %v421, %v420
  %v489 = vpack.c.b16 %v423, %v422
  %v490 = vpack.c.b16 %v425, %v424
  %v491 = vpack.c.b16 %v427, %v426
  %556 = vmatprep.subr.bf16.mxu0 0
  %557 = vmatpush1.bf16.msra.mxu0 %v435
  %558 = vmatprep.subr.bf16.mxu0 0
  %559 = vmatpush1.bf16.msra.mxu0 %v434
  %560 = vmatprep.subr.bf16.mxu0 0
  %561 = vmatpush1.bf16.msra.mxu0 %v433
  %562 = vmatprep.subr.bf16.mxu0 0
  %563 = vmatpush1.bf16.msra.mxu0 %v432
  %564 = vmatprep.subr.bf16.mxu0 0
  %565 = vmatpush1.bf16.msra.mxu0 %v431
  %566 = vmatprep.subr.bf16.mxu0 0
  %567 = vmatpush1.bf16.msra.mxu0 %v430
  %568 = vmatprep.subr.bf16.mxu0 0
  %569 = vmatpush1.bf16.msra.mxu0 %v429
  %570 = vmatprep.subr.bf16.mxu0 0
  %571 = vmatpush1.bf16.msra.mxu0 %v428
  %572 = vmatprep.subr.bf16.mxu0 0
  %573 = vmatpush2.bf16.msra.mxu0 %v443
  %574 = vmatprep.subr.bf16.mxu0 0
  %575 = vmatpush2.bf16.msra.mxu0 %v442
  %576 = vmatprep.subr.bf16.mxu0 0
  %577 = vmatpush2.bf16.msra.mxu0 %v441
  %578 = vmatprep.subr.bf16.mxu0 0
  %579 = vmatpush2.bf16.msra.mxu0 %v440
  %580 = vmatprep.subr.bf16.mxu0 0
  %581 = vmatpush2.bf16.msra.mxu0 %v439
  %582 = vmatprep.subr.bf16.mxu0 0
  %583 = vmatpush2.bf16.msra.mxu0 %v438
  %584 = vmatprep.subr.bf16.mxu0 0
  %585 = vmatpush2.bf16.msra.mxu0 %v437
  %586 = vmatprep.subr.bf16.mxu0 0
  %587 = vmatpush2.bf16.msra.mxu0 %v436
  %588 = vmatprep.mubr.bf16.mxu0 %v157
  %589 = vmatmul.mubr.bf16.gmra.mxu0 %v156
  %v590 = vpop.f32.mrf.mxu0
  %v591 = vadd.f32 0.0, %v590
  %v592 = vpop.f32.mrf.mxu0
  %v593 = vpop.f32.mrf.mxu0
  %v594 = vpop.f32.mrf.mxu0
  %595 = vdwg.mxu0
  %596 = vmatprep.subr.bf16.mxu0 0
  %597 = vmatpush1.bf16.msra.mxu0 %v451
  %598 = vmatprep.subr.bf16.mxu0 0
  %599 = vmatpush1.bf16.msra.mxu0 %v450
  %600 = vmatprep.subr.bf16.mxu0 0
  %601 = vmatpush1.bf16.msra.mxu0 %v449
  %602 = vmatprep.subr.bf16.mxu0 0
  %603 = vmatpush1.bf16.msra.mxu0 %v448
  %604 = vmatprep.subr.bf16.mxu0 0
  %605 = vmatpush1.bf16.msra.mxu0 %v447
  %606 = vmatprep.subr.bf16.mxu0 0
  %607 = vmatpush1.bf16.msra.mxu0 %v446
  %608 = vmatprep.subr.bf16.mxu0 0
  %609 = vmatpush1.bf16.msra.mxu0 %v445
  %610 = vmatprep.subr.bf16.mxu0 0
  %611 = vmatpush1.bf16.msra.mxu0 %v444
  %612 = vmatprep.subr.bf16.mxu0 0
  %613 = vmatpush2.bf16.msra.mxu0 %v459
  %614 = vmatprep.subr.bf16.mxu0 0
  %615 = vmatpush2.bf16.msra.mxu0 %v458
  %616 = vmatprep.subr.bf16.mxu0 0
  %617 = vmatpush2.bf16.msra.mxu0 %v457
  %618 = vmatprep.subr.bf16.mxu0 0
  %619 = vmatpush2.bf16.msra.mxu0 %v456
  %620 = vmatprep.subr.bf16.mxu0 0
  %621 = vmatpush2.bf16.msra.mxu0 %v455
  %622 = vmatprep.subr.bf16.mxu0 0
  %623 = vmatpush2.bf16.msra.mxu0 %v454
  %624 = vmatprep.subr.bf16.mxu0 0
  %625 = vmatpush2.bf16.msra.mxu0 %v453
  %626 = vmatprep.subr.bf16.mxu0 0
  %627 = vmatpush2.bf16.msra.mxu0 %v452
  %628 = vmatprep.mubr.bf16.mxu0 %v159
  %629 = vmatmul.mubr.bf16.gmra.mxu0 %v158
  %v630 = vpop.f32.mrf.mxu0
  %v631 = vadd.f32 %v591, %v630
  %v632 = vpop.f32.mrf.mxu0
  %v633 = vpop.f32.mrf.mxu0
  %v634 = vpop.f32.mrf.mxu0
  %635 = vdwg.mxu0
  %636 = vmatprep.subr.bf16.mxu0 0
  %637 = vmatpush1.bf16.msra.mxu0 %v467
  %638 = vmatprep.subr.bf16.mxu0 0
  %639 = vmatpush1.bf16.msra.mxu0 %v466
  %640 = vmatprep.subr.bf16.mxu0 0
  %641 = vmatpush1.bf16.msra.mxu0 %v465
  %642 = vmatprep.subr.bf16.mxu0 0
  %643 = vmatpush1.bf16.msra.mxu0 %v464
  %644 = vmatprep.subr.bf16.mxu0 0
  %645 = vmatpush1.bf16.msra.mxu0 %v463
  %646 = vmatprep.subr.bf16.mxu0 0
  %647 = vmatpush1.bf16.msra.mxu0 %v462
  %648 = vmatprep.subr.bf16.mxu0 0
  %649 = vmatpush1.bf16.msra.mxu0 %v461
  %650 = vmatprep.subr.bf16.mxu0 0
  %651 = vmatpush1.bf16.msra.mxu0 %v460
  %652 = vmatprep.subr.bf16.mxu0 0
  %653 = vmatpush2.bf16.msra.mxu0 %v475
  %654 = vmatprep.subr.bf16.mxu0 0
  %655 = vmatpush2.bf16.msra.mxu0 %v474
  %656 = vmatprep.subr.bf16.mxu0 0
  %657 = vmatpush2.bf16.msra.mxu0 %v473
  %658 = vmatprep.subr.bf16.mxu0 0
  %659 = vmatpush2.bf16.msra.mxu0 %v472
  %660 = vmatprep.subr.bf16.mxu0 0
  %661 = vmatpush2.bf16.msra.mxu0 %v471
  %662 = vmatprep.subr.bf16.mxu0 0
  %663 = vmatpush2.bf16.msra.mxu0 %v470
  %664 = vmatprep.subr.bf16.mxu0 0
  %665 = vmatpush2.bf16.msra.mxu0 %v469
  %666 = vmatprep.subr.bf16.mxu0 0
  %667 = vmatpush2.bf16.msra.mxu0 %v468
  %668 = vmatprep.mubr.bf16.mxu0 %v161
  %669 = vmatmul.mubr.bf16.gmra.mxu0 %v160
  %v670 = vpop.f32.mrf.mxu0
  %v671 = vadd.f32 %v631, %v670
  %v672 = vpop.f32.mrf.mxu0
  %v673 = vpop.f32.mrf.mxu0
  %v674 = vpop.f32.mrf.mxu0
  %675 = vdwg.mxu0
  %676 = vmatprep.subr.bf16.mxu0 0
  %677 = vmatpush1.bf16.msra.mxu0 %v483
  %678 = vmatprep.subr.bf16.mxu0 0
  %679 = vmatpush1.bf16.msra.mxu0 %v482
  %680 = vmatprep.subr.bf16.mxu0 0
  %681 = vmatpush1.bf16.msra.mxu0 %v481
  %682 = vmatprep.subr.bf16.mxu0 0
  %683 = vmatpush1.bf16.msra.mxu0 %v480
  %684 = vmatprep.subr.bf16.mxu0 0
  %685 = vmatpush1.bf16.msra.mxu0 %v479
  %686 = vmatprep.subr.bf16.mxu0 0
  %687 = vmatpush1.bf16.msra.mxu0 %v478
  %688 = vmatprep.subr.bf16.mxu0 0
  %689 = vmatpush1.bf16.msra.mxu0 %v477
  %690 = vmatprep.subr.bf16.mxu0 0
  %691 = vmatpush1.bf16.msra.mxu0 %v476
  %692 = vmatprep.subr.bf16.mxu0 0
  %693 = vmatpush2.bf16.msra.mxu0 %v491
  %694 = vmatprep.subr.bf16.mxu0 0
  %695 = vmatpush2.bf16.msra.mxu0 %v490
  %696 = vmatprep.subr.bf16.mxu0 0
  %697 = vmatpush2.bf16.msra.mxu0 %v489
  %698 = vmatprep.subr.bf16.mxu0 0
  %699 = vmatpush2.bf16.msra.mxu0 %v488
  %700 = vmatprep.subr.bf16.mxu0 0
  %701 = vmatpush2.bf16.msra.mxu0 %v487
  %702 = vmatprep.subr.bf16.mxu0 0
  %703 = vmatpush2.bf16.msra.mxu0 %v486
  %704 = vmatprep.subr.bf16.mxu0 0
  %705 = vmatpush2.bf16.msra.mxu0 %v485
  %706 = vmatprep.subr.bf16.mxu0 0
  %707 = vmatpush2.bf16.msra.mxu0 %v484
  %708 = vmatprep.mubr.bf16.mxu0 %v163
  %709 = vmatmul.mubr.bf16.gmra.mxu0 %v162
  %v710 = vpop.f32.mrf.mxu0
  %v711 = vadd.f32 %v671, %v710
  %v712 = vpop.f32.mrf.mxu0
  %v713 = vpop.f32.mrf.mxu0
  %v714 = vpop.f32.mrf.mxu0
  %715 = vdwg.mxu0
  %v716 = vxor.u32 %v711, 2147483648
  %v717 = vmul.f32 %v716, 1.442695
  %v718 = vpow.pop %v717
  %v719 = vadd.f32 %v718, 1.0
  %v720 = vrcp.pop %v719
  %v721 = vmul.f32 1.0, %v720
  %722 = vst [vmem:[%s2] sm:$0xff] %v721
  // Predicated region
  $region10: #{discriminator_forward.15} parent=0 // pred_check
    _
  $region11: #{discriminator_forward.15} parent=0 // pred_check_branch
    %724 = sbr.rel (0) target = $region13
  $region12: #{discriminator_forward.15} parent=0 // pred_region
    _
  $region13: #{discriminator_forward.15} parent=0 // pred_fallthru
    _
  // Predicated region
  $region14: #{discriminator_forward.15} parent=0 // pred_check
    _
  $region15: #{discriminator_forward.15} parent=0 // pred_check_branch
    %726 = sbr.rel (0) target = $region17
  $region16: #{discriminator_forward.15} parent=0 // pred_region
    _
  $region17: #{discriminator_forward.15} parent=0 // pred_fallthru
    _

</llo_original>
